<compile_context>
chip_gen: v6e
topology: v6e:2x2x1
jax: 0.10.0
libtpu: 0.0.40
codegen_flags: <defaults>
</compile_context>

<pallas_src>
import functools

import jax
import jax.numpy as jnp
from jax.experimental import pallas as pl
from jax.experimental.pallas import tpu as pltpu

LANE = 128            # lane width -> output-channel padding quantum
ROW_ALIGN = 16        # bf16 sublane-packing quantum for row tiles
K_ALIGN = 16          # contraction-dim alignment (sublane only, NOT 128)
MAX_ROW_TILE = 512
LEAKY_SLOPE = 0.2     # LeakyReLU(0.2), matching act('LeakyReLU')
BN_EPS = 1e-5         # PyTorch BatchNorm2d default
ACT_DTYPE = jnp.bfloat16   # MXU operand + inter-layer activation storage dtype


def _round_up(x, m):
    return (x + m - 1) // m * m


def _row_tile(m):
    # Near-equal, sublane-aligned row tiles of at most MAX_ROW_TILE rows; big
    # tiles amortize the ~0.35us per-grid-step overhead on these tiny grids.
    return _round_up(pl.cdiv(m, pl.cdiv(m, MAX_ROW_TILE)), ROW_ALIGN)


def _col_tile(n_p):
    # 256-wide bf16 output tiles feed v6e/v7x's 256x256 MXU when possible;
    # Np is always a lane multiple so 128 is the fallback (right for v5e).
    return 256 if n_p % 256 == 0 else 128


# ----------------------------- Pallas kernel --------------------------------

def _fused_conv_bn_act_kernel(p_ref, w_ref, g_ref, b_ref, o_ref,
                              acc_ref, sum_ref, ssq_ref,
                              *, inv_m, slope, eps, tm, n_row):
    """Conv-as-GEMM column stripe with fused training-mode BatchNorm + LeakyReLU.

    grid = (col tiles, row tiles); rows are the last ("arbitrary") axis and the
    output block index is constant along it, so the (m_p, tn) stripe stays
    VMEM-resident across the whole pass.  Each row step: one bf16 MXU matmul
    (f32 accumulate) stashed into the f32 stripe scratch + per-channel
    sum / sum-of-squares accumulation.  The last row step folds the batch
    statistics with gamma/beta into one scale/shift, applies LeakyReLU, and
    writes the stripe to HBM exactly once.
    """
    i = pl.program_id(1)

    @pl.when(i == 0)
    def _init():
        sum_ref[...] = jnp.zeros_like(sum_ref)
        ssq_ref[...] = jnp.zeros_like(ssq_ref)

    # bf16 x bf16 -> f32 accumulate on the MXU (no bias: cancelled by BN).
    y = jnp.dot(p_ref[...], w_ref[...], preferred_element_type=jnp.float32)
    acc_ref[i] = y
    sum_ref[...] += jnp.sum(y, axis=0, keepdims=True)
    ssq_ref[...] += jnp.sum(y * y, axis=0, keepdims=True)
    # TODO(synk): if this tile shows up VALU-bound, fold the column sum into
    # an MXU ones-row matmul so the stats ride in MXU slack.

    @pl.when(i == pl.num_programs(1) - 1)
    def _finalize():
        mean = sum_ref[...] * inv_m
        # Biased batch variance (training-mode BatchNorm2d normalizer).
        # TODO(synk): shifted/Welford accumulation if channel means ever get
        # large relative to the std (f32 cancellation).
        var = jnp.maximum(ssq_ref[...] * inv_m - mean * mean, 0.0)
        scale = g_ref[...] * jax.lax.rsqrt(var + eps)
        shift = b_ref[...] - mean * scale
        for r in range(n_row):                    # static unroll, n_row is tiny
            z = acc_ref[r] * scale + shift
            o_ref[r * tm:(r + 1) * tm, :] = (
                jnp.where(z > 0, z, slope * z).astype(o_ref.dtype))


# ----------------------------- Pallas wrapper --------------------------------

def fused_conv_bn_act(patches, w_kn, gamma, beta, m_true, tm):
    """patches: (m_p, K) bf16 (rows beyond m_true are zero), w_kn: (K, Np) bf16,
    gamma/beta: (1, Np) f32 (zero in padded channels).

    Returns the (m_p, Np) bf16 normalized + activated conv output.  Padded
    output channels are exactly zero (gamma pad 0 -> scale = shift = 0);
    padded rows are garbage and must be sliced off by the caller.
    """
    m_p, K = patches.shape
    K2, Np = w_kn.shape
    assert K == K2 and Np % LANE == 0 and m_p % tm == 0
    tn = _col_tile(Np)
    n_row = m_p // tm

    # VMEM budget: f32 stripe scratch + (double-buffered) bf16 output stripe +
    # double-buffered input tiles.  Keep well inside v7x's 64 MiB physical.
    stripe_bytes = m_p * tn * (4 + 2 * 2)
    tile_bytes = 2 * 2 * (tm * K + K * tn) + 4 * 8 * tn
    vmem_bytes = stripe_bytes + tile_bytes + (2 << 20)
    assert vmem_bytes < 40 * 1024 * 1024, (
        "activation column stripe too large for VMEM residency; "
        "TODO(synk): add an unfused two-pass fallback for very large M")

    kernel = functools.partial(
        _fused_conv_bn_act_kernel,
        inv_m=1.0 / float(m_true), slope=LEAKY_SLOPE, eps=BN_EPS,
        tm=tm, n_row=n_row)

    return pl.pallas_call(
        kernel,
        out_shape=jax.ShapeDtypeStruct((m_p, Np), ACT_DTYPE),
        grid_spec=pltpu.PrefetchScalarGridSpec(
            num_scalar_prefetch=0,
            # Rows last ("arbitrary") so stats + the output stripe accumulate
            # across them; columns outer ("parallel").
            # TODO(synk): when Np // tn > 1 the patches tile is re-read once
            # per column tile; emit per-row-tile partial stats and swap the
            # axes (also gives v7x a >=2-step parallel axis).
            grid=(Np // tn, n_row),
            in_specs=[
                pl.BlockSpec((tm, K), lambda j, i: (i, 0)),
                pl.BlockSpec((K, tn), lambda j, i: (0, j)),
                pl.BlockSpec((1, tn), lambda j, i: (0, j)),
                pl.BlockSpec((1, tn), lambda j, i: (0, j)),
            ],
            out_specs=pl.BlockSpec((m_p, tn), lambda j, i: (0, j)),
            scratch_shapes=[
                pltpu.VMEM((n_row, tm, tn), jnp.float32),   # raw GEMM stripe
                pltpu.VMEM((1, tn), jnp.float32),           # per-channel sum
                pltpu.VMEM((1, tn), jnp.float32),           # per-channel ssq
            ],
        ),
        compiler_params=pltpu.CompilerParams(
            dimension_semantics=("parallel", "arbitrary"),
            vmem_limit_bytes=max(vmem_bytes, 32 * 1024 * 1024),
        ),
    )(patches, w_kn, gamma, beta)


# ------------------------------- conv glue ----------------------------------

def im2col_nhwc(x, c_eff, k, stride):
    """x: (B, H, W, C_store) bf16 channel-last; first c_eff channels are consumed.

    For 1x1 stride-1 convs this is a free reshape (the prepared weight has
    explicit zero rows for lane-padding channels).  For 3x3 convs the true
    channels are sliced first so the k*k expansion never touches lane padding.
    Patch element order is (dh, dw, c), matching the weight layout.
    """
    B, H, W, C = x.shape
    xc = x[..., :c_eff] if c_eff != C else x
    if k == 1 and stride == 1:
        return xc.reshape(B * H * W, c_eff), H, W
    pad = (k - 1) // 2
    xp = jnp.pad(xc, ((0, 0), (pad, pad), (pad, pad), (0, 0)))
    Ho = (H + 2 * pad - k) // stride + 1
    Wo = (W + 2 * pad - k) // stride + 1
    taps = [
        xp[:, dh:dh + stride * Ho:stride, dw:dw + stride * Wo:stride, :]
        for dh in range(k) for dw in range(k)
    ]
    p = jnp.stack(taps, axis=3)                      # (B, Ho, Wo, k*k, c_eff)
    return p.reshape(B * Ho * Wo, k * k * c_eff), Ho, Wo


def conv_bn_act(x_nhwc, layer, conv_meta, stride):
    """Conv2d (zero pad, bias cancelled by BN) + training-mode BN + LeakyReLU.

    Input and output are channel-last bf16; the output keeps its lane-padded
    channel width (padded channels are identically zero).
    """
    c_eff, k, _ = conv_meta
    B = x_nhwc.shape[0]
    patches, Ho, Wo = im2col_nhwc(x_nhwc, c_eff, k, stride)
    M = B * Ho * Wo
    K_p, Np = layer["w_kn"].shape
    tm = _row_tile(M)
    m_p = _round_up(M, tm)
    pad_k = K_p - patches.shape[1]
    pad_m = m_p - M
    if pad_k or pad_m:
        patches = jnp.pad(patches, ((0, pad_m), (0, pad_k)))

    out = fused_conv_bn_act(patches, layer["w_kn"], layer["gamma"],
                            layer["beta"], M, tm)
    if pad_m:
        out = out[:M]
    return out.reshape(B, Ho, Wo, Np)


def _nhwc_to_nchw(x, c_true):
    return jnp.transpose(x[..., :c_true], (0, 3, 1, 2)).astype(jnp.float32)


# ------------------------------ parameters ----------------------------------

def init_params(key, num_input_channels, num_channels_down, num_channels_skip,
                filter_size_down=3, filter_skip_size=1):
    """Raw (PyTorch-layout) parameters: conv (C_out, C_in, k, k) + bias, BN affine."""
    assert len(num_channels_down) == len(num_channels_skip)
    params = []
    in_ch = num_input_channels
    for i in range(len(num_channels_down)):
        key, k0, k1, k2, k3, k4, k5 = jax.random.split(key, 7)
        scale = {}
        if num_channels_skip[i] != 0:
            sc = num_channels_skip[i]
            scale["skip"] = dict(
                w=0.1 * jax.random.normal(
                    k0, (sc, in_ch, filter_skip_size, filter_skip_size), jnp.float32),
                b=0.01 * jax.random.normal(k1, (sc,), jnp.float32),
                gamma=jnp.ones((sc,), jnp.float32),
                beta=jnp.zeros((sc,), jnp.float32),
            )
        else:
            scale["skip"] = None
        dc = num_channels_down[i]
        fd = filter_size_down
        scale["down1"] = dict(   # stride-2 conv
            w=0.1 * jax.random.normal(k2, (dc, in_ch, fd, fd), jnp.float32),
            b=0.01 * jax.random.normal(k3, (dc,), jnp.float32),
            gamma=jnp.ones((dc,), jnp.float32),
            beta=jnp.zeros((dc,), jnp.float32),
        )
        scale["down2"] = dict(   # stride-1 conv
            w=0.1 * jax.random.normal(k4, (dc, dc, fd, fd), jnp.float32),
            b=0.01 * jax.random.normal(k5, (dc,), jnp.float32),
            gamma=jnp.ones((dc,), jnp.float32),
            beta=jnp.zeros((dc,), jnp.float32),
        )
        params.append(scale)
        in_ch = dc
    return params


def _prep_conv(w, gamma, beta, c_eff):
    """One conv+BN block -> kernel layout.

    Weight (C_out, C_in, k, k) -> (K_p, N_p) bf16, patch element order
    (dh, dw, c); K_p is only sublane-aligned (16), N_p is lane-padded (128).
    Conv bias is intentionally dropped: training-mode BN subtracts the batch
    mean, which cancels an additive per-channel bias exactly.
    """
    c_out, c_in, k, _ = w.shape
    assert c_eff == c_in or k == 1
    n_p = _round_up(c_out, LANE)
    w_kn = jnp.asarray(w, jnp.float32).transpose(2, 3, 1, 0).reshape(k * k * c_in, c_out)
    if k == 1 and c_eff != c_in:
        # 1x1 conv consuming a lane-padded activation: zero rows for padding.
        w_kn = jnp.pad(w_kn, ((0, c_eff - c_in), (0, 0)))
    k_p = _round_up(w_kn.shape[0], K_ALIGN)
    w_kn = jnp.pad(w_kn, ((0, k_p - w_kn.shape[0]), (0, n_p - c_out)))
    prepped = dict(
        w_kn=w_kn.astype(ACT_DTYPE),
        # gamma/beta padded with ZEROS -> scale = shift = 0 for padded
        # channels, so they stay exactly zero (load-bearing for downstream
        # 1x1 convs).  Do not change to ones-padding.
        gamma=jnp.pad(jnp.asarray(gamma, jnp.float32), (0, n_p - c_out)).reshape(1, n_p),
        beta=jnp.pad(jnp.asarray(beta, jnp.float32), (0, n_p - c_out)).reshape(1, n_p),
    )
    return prepped, (c_eff, k, c_out)


def prepare_params(raw_params, num_input_channels):
    """One-time layout conversion (hoisted out of the forward path).

    Returns (params, meta): params hold only arrays (jit-traceable pytree),
    meta holds static per-conv layout info (c_eff, k, c_out).
    """
    params, meta = [], []
    c_store = num_input_channels          # stored channel width of scale input
    for scale in raw_params:
        p, m = {}, {}
        if scale["skip"] is not None:
            s = scale["skip"]
            k = s["w"].shape[2]
            c_eff = c_store if k == 1 else s["w"].shape[1]
            p["skip"], m["skip"] = _prep_conv(s["w"], s["gamma"], s["beta"], c_eff)
        else:
            p["skip"], m["skip"] = None, None

        d1 = scale["down1"]
        k1 = d1["w"].shape[2]
        c_eff1 = c_store if k1 == 1 else d1["w"].shape[1]
        p["down1"], m["down1"] = _prep_conv(d1["w"], d1["gamma"], d1["beta"], c_eff1)

        dc = d1["w"].shape[0]
        c_mid = _round_up(dc, LANE)
        d2 = scale["down2"]
        k2 = d2["w"].shape[2]
        c_eff2 = c_mid if k2 == 1 else d2["w"].shape[1]
        p["down2"], m["down2"] = _prep_conv(d2["w"], d2["gamma"], d2["beta"], c_eff2)

        params.append(p)
        meta.append((m["skip"], m["down1"], m["down2"]))
        c_store = c_mid
    return params, tuple(meta)


# ------------------------------ SkipEncoder ----------------------------------

def skip_encoder_forward(x_nchw, params, meta):
    """Mirrors SkipEncoder.forward: returns (encoded, skips), NCHW f32 at the API."""
    out = jnp.transpose(x_nchw, (0, 2, 3, 1)).astype(ACT_DTYPE)   # NHWC bf16 inside
    skips = []
    for scale_p, scale_m in zip(params, meta):
        skip_m, d1_m, d2_m = scale_m
        if scale_p["skip"] is not None:
            s = conv_bn_act(out, scale_p["skip"], skip_m, stride=1)
            skips.append(_nhwc_to_nchw(s, skip_m[2]))
        else:
            skips.append(None)
        out = conv_bn_act(out, scale_p["down1"], d1_m, stride=2)
        out = conv_bn_act(out, scale_p["down2"], d2_m, stride=1)
    encoded = _nhwc_to_nchw(out, meta[-1][2][2])
    return encoded, skips


# --------------------------- pure-JAX reference ------------------------------

def _reference_forward(x, raw_params):
    """f32 XLA reference (with bias + explicit BN) used only for validation."""
    def conv_bn_act_ref(x, p, stride):
        w, b = p["w"], p["b"]
        pad_h, pad_w = w.shape[2] // 2, w.shape[3] // 2
        y = jax.lax.conv_general_dilated(
            x, w, window_strides=(stride, stride),
            padding=((pad_h, pad_h), (pad_w, pad_w)),
            dimension_numbers=("NCHW", "OIHW", "NCHW"))
        y = y + b[None, :, None, None]
        mean = jnp.mean(y, axis=(0, 2, 3), keepdims=True)
        var = jnp.mean((y - mean) ** 2, axis=(0, 2, 3), keepdims=True)
        y = (y - mean) / jnp.sqrt(var + BN_EPS)
        y = y * p["gamma"][None, :, None, None] + p["beta"][None, :, None, None]
        return jnp.where(y > 0, y, LEAKY_SLOPE * y)

    skips, out = [], x
    for scale in raw_params:
        if scale["skip"] is not None:
            skips.append(conv_bn_act_ref(out, scale["skip"], 1))
        else:
            skips.append(None)
        out = conv_bn_act_ref(out, scale["down1"], 2)
        out = conv_bn_act_ref(out, scale["down2"], 1)
    return out, skips


# ---------------------------------- main -------------------------------------

if __name__ == "__main__":
    key = jax.random.PRNGKey(0)
    kx, kp = jax.random.split(key)

    B, C, H, W = 2, 4, 16, 16
    num_channels_down = [8, 16]
    num_channels_skip = [4, 4]

    x = jax.random.normal(kx, (B, C, H, W), jnp.float32)
    raw_params = init_params(kp, C, num_channels_down, num_channels_skip,
                             filter_size_down=3, filter_skip_size=1)
    params, meta = prepare_params(raw_params, C)

    forward = jax.jit(functools.partial(skip_encoder_forward, meta=meta))
    encoded, skips = forward(x, params)
    jax.block_until_ready(encoded)
    for s in skips:
        if s is not None:
            jax.block_until_ready(s)

    assert encoded.shape == (2, 16, 4, 4), encoded.shape
    assert skips[0].shape == (2, 4, 16, 16), skips[0].shape
    assert skips[1].shape == (2, 4, 8, 8), skips[1].shape
    assert bool(jnp.all(jnp.isfinite(encoded)))

    # Validate against an f32 XLA reference.  The kernel path uses bf16 MXU
    # operands and bf16 inter-layer activation storage (f32 accumulation and
    # f32 BN math), so the comparison uses bf16-level tolerances; outputs are
    # BN-normalized (unit scale), making the absolute tolerance meaningful.
    ref_enc, ref_skips = _reference_forward(x, raw_params)
    assert jnp.allclose(encoded, ref_enc, atol=5e-2, rtol=5e-2), \
        float(jnp.max(jnp.abs(encoded - ref_enc)))
    for s, r in zip(skips, ref_skips):
        if s is not None:
            assert jnp.allclose(s, r, atol=5e-2, rtol=5e-2), \
                float(jnp.max(jnp.abs(s - r)))

    print("KERNEL_OK")
</pallas_src>

<mosaic_0001>
module attributes {stable_mosaic.version = 11 : i64} {
  func.func @_fused_conv_bn_act_kernel(%arg0: i32, %arg1: i32, %arg2: memref<128x48xbf16, #tpu.memory_space<vmem>>, %arg3: memref<48x128xbf16, #tpu.memory_space<vmem>>, %arg4: memref<1x128xf32, #tpu.memory_space<vmem>>, %arg5: memref<1x128xf32, #tpu.memory_space<vmem>>, %arg6: memref<128x128xbf16, #tpu.memory_space<vmem>>, %arg7: memref<1x128x128xf32, #tpu.memory_space<vmem>>, %arg8: memref<1x128xf32, #tpu.memory_space<vmem>>, %arg9: memref<1x128xf32, #tpu.memory_space<vmem>>) attributes {dimension_semantics = [#tpu.dimension_semantics<parallel>, #tpu.dimension_semantics<arbitrary>], iteration_bounds = array<i64: 1, 1>, scalar_prefetch = 0 : i64, scratch_operands = 3 : i64, tpu.core_type = #tpu.core_type<tc>, window_params = [{transform_indices = @transform_0, window_bounds = array<i64: 128, 48>}, {transform_indices = @transform_1, window_bounds = array<i64: 48, 128>}, {transform_indices = @transform_2, window_bounds = array<i64: 1, 128>}, {transform_indices = @transform_3, window_bounds = array<i64: 1, 128>}, {transform_indices = @transform_4, window_bounds = array<i64: 128, 128>}]} {
    %c0_i32 = arith.constant 0 : i32
    %0 = arith.cmpi eq, %arg1, %c0_i32 : i32
    %1 = arith.extui %0 : i1 to i32
    %c0_i32_0 = arith.constant 0 : i32
    %2 = arith.cmpi ne, %1, %c0_i32_0 : i32
    scf.if %2 {
      %cst_18 = arith.constant 0.000000e+00 : f32
      %24 = vector.broadcast %cst_18 : f32 to vector<1x128xf32>
      %c0_19 = arith.constant 0 : index
      %c0_20 = arith.constant 0 : index
      %25 = vector.load %arg8[%c0_19, %c0_20] : memref<1x128xf32, #tpu.memory_space<vmem>>, vector<1x128xf32>
      tpu.vector_store %arg8[%c0_19, %c0_20], %24 {strides = array<i32>} : memref<1x128xf32, #tpu.memory_space<vmem>>, vector<1x128xf32>,
      %cst_21 = arith.constant 0.000000e+00 : f32
      %26 = vector.broadcast %cst_21 : f32 to vector<1x128xf32>
      %c0_22 = arith.constant 0 : index
      %c0_23 = arith.constant 0 : index
      %27 = vector.load %arg9[%c0_22, %c0_23] : memref<1x128xf32, #tpu.memory_space<vmem>>, vector<1x128xf32>
      tpu.vector_store %arg9[%c0_22, %c0_23], %26 {strides = array<i32>} : memref<1x128xf32, #tpu.memory_space<vmem>>, vector<1x128xf32>,
    } else {
    }
    %c0 = arith.constant 0 : index
    %c0_1 = arith.constant 0 : index
    %3 = vector.load %arg2[%c0, %c0_1] : memref<128x48xbf16, #tpu.memory_space<vmem>>, vector<128x48xbf16>
    %c0_2 = arith.constant 0 : index
    %c0_3 = arith.constant 0 : index
    %4 = vector.load %arg3[%c0_2, %c0_3] : memref<48x128xbf16, #tpu.memory_space<vmem>>, vector<48x128xbf16>
    %cst = arith.constant dense<0.000000e+00> : vector<128x128xf32>
    %5 = tpu.matmul %3, %4, %cst {dimension_numbers = #tpu.dot_dimension_numbers<[1], [0], [0], [1], [0, 0, 1, 1], [], []>} : vector<128x48xbf16>, vector<48x128xbf16>, vector<128x128xf32> -> vector<128x128xf32>
    %6 = arith.index_cast %arg1 : i32 to index
    %c0_4 = arith.constant 0 : index
    %c0_5 = arith.constant 0 : index
    %7 = vector.load %arg7[%6, %c0_4, %c0_5] : memref<1x128x128xf32, #tpu.memory_space<vmem>>, vector<1x128x128xf32>
    %8 = vector.shape_cast %7 : vector<1x128x128xf32> to vector<128x128xf32>
    %9 = vector.shape_cast %5 : vector<128x128xf32> to vector<1x128x128xf32>
    tpu.vector_store %arg7[%6, %c0_4, %c0_5], %9 {strides = array<i32>} : memref<1x128x128xf32, #tpu.memory_space<vmem>>, vector<1x128x128xf32>,
    %c0_6 = arith.constant 0 : index
    %c0_7 = arith.constant 0 : index
    %10 = vector.load %arg8[%c0_6, %c0_7] : memref<1x128xf32, #tpu.memory_space<vmem>>, vector<1x128xf32>
    %cst_8 = arith.constant dense<0.000000e+00> : vector<128xf32>
    %11 = vector.multi_reduction <add>, %5, %cst_8 [0] : vector<128x128xf32> to vector<128xf32>
    %12 = vector.shape_cast %11 : vector<128xf32> to vector<1x128xf32>
    %13 = arith.addf %10, %12 : vector<1x128xf32>
    %c0_9 = arith.constant 0 : index
    %c0_10 = arith.constant 0 : index
    %14 = vector.load %arg8[%c0_9, %c0_10] : memref<1x128xf32, #tpu.memory_space<vmem>>, vector<1x128xf32>
    tpu.vector_store %arg8[%c0_9, %c0_10], %13 {strides = array<i32>} : memref<1x128xf32, #tpu.memory_space<vmem>>, vector<1x128xf32>,
    %c0_11 = arith.constant 0 : index
    %c0_12 = arith.constant 0 : index
    %15 = vector.load %arg9[%c0_11, %c0_12] : memref<1x128xf32, #tpu.memory_space<vmem>>, vector<1x128xf32>
    %16 = arith.mulf %5, %5 : vector<128x128xf32>
    %cst_13 = arith.constant dense<0.000000e+00> : vector<128xf32>
    %17 = vector.multi_reduction <add>, %16, %cst_13 [0] : vector<128x128xf32> to vector<128xf32>
    %18 = vector.shape_cast %17 : vector<128xf32> to vector<1x128xf32>
    %19 = arith.addf %15, %18 : vector<1x128xf32>
    %c0_14 = arith.constant 0 : index
    %c0_15 = arith.constant 0 : index
    %20 = vector.load %arg9[%c0_14, %c0_15] : memref<1x128xf32, #tpu.memory_space<vmem>>, vector<1x128xf32>
    tpu.vector_store %arg9[%c0_14, %c0_15], %19 {strides = array<i32>} : memref<1x128xf32, #tpu.memory_space<vmem>>, vector<1x128xf32>,
    %c0_i32_16 = arith.constant 0 : i32
    %21 = arith.cmpi eq, %arg1, %c0_i32_16 : i32
    %22 = arith.extui %21 : i1 to i32
    %c0_i32_17 = arith.constant 0 : i32
    %23 = arith.cmpi ne, %22, %c0_i32_17 : i32
    scf.if %23 {
      %c0_18 = arith.constant 0 : index
      %c0_19 = arith.constant 0 : index
      %24 = vector.load %arg8[%c0_18, %c0_19] : memref<1x128xf32, #tpu.memory_space<vmem>>, vector<1x128xf32>
      %cst_20 = arith.constant 7.812500e-03 : f32
      %25 = vector.broadcast %cst_20 : f32 to vector<1x128xf32>
      %26 = arith.mulf %24, %25 : vector<1x128xf32>
      %c0_21 = arith.constant 0 : index
      %c0_22 = arith.constant 0 : index
      %27 = vector.load %arg9[%c0_21, %c0_22] : memref<1x128xf32, #tpu.memory_space<vmem>>, vector<1x128xf32>
      %cst_23 = arith.constant 7.812500e-03 : f32
      %28 = vector.broadcast %cst_23 : f32 to vector<1x128xf32>
      %29 = arith.mulf %27, %28 : vector<1x128xf32>
      %30 = arith.mulf %26, %26 : vector<1x128xf32>
      %31 = arith.subf %29, %30 : vector<1x128xf32>
      %cst_24 = arith.constant 0.000000e+00 : f32
      %32 = vector.broadcast %cst_24 : f32 to vector<1x128xf32>
      %33 = arith.maximumf %31, %32 : vector<1x128xf32>
      %c0_25 = arith.constant 0 : index
      %c0_26 = arith.constant 0 : index
      %34 = vector.load %arg4[%c0_25, %c0_26] : memref<1x128xf32, #tpu.memory_space<vmem>>, vector<1x128xf32>
      %cst_27 = arith.constant 9.99999974E-6 : f32
      %35 = vector.broadcast %cst_27 : f32 to vector<1x128xf32>
      %36 = arith.addf %33, %35 : vector<1x128xf32>
      %37 = math.rsqrt %36 : vector<1x128xf32>
      %38 = arith.mulf %34, %37 : vector<1x128xf32>
      %c0_28 = arith.constant 0 : index
      %c0_29 = arith.constant 0 : index
      %39 = vector.load %arg5[%c0_28, %c0_29] : memref<1x128xf32, #tpu.memory_space<vmem>>, vector<1x128xf32>
      %40 = arith.mulf %26, %38 : vector<1x128xf32>
      %41 = arith.subf %39, %40 : vector<1x128xf32>
      %c0_30 = arith.constant 0 : index
      %c0_31 = arith.constant 0 : index
      %c0_32 = arith.constant 0 : index
      %42 = vector.load %arg7[%c0_30, %c0_31, %c0_32] : memref<1x128x128xf32, #tpu.memory_space<vmem>>, vector<1x128x128xf32>
      %43 = vector.shape_cast %42 : vector<1x128x128xf32> to vector<128x128xf32>
      %44 = vector.broadcast %38 : vector<1x128xf32> to vector<128x128xf32>
      %45 = arith.mulf %43, %44 : vector<128x128xf32>
      %46 = vector.broadcast %41 : vector<1x128xf32> to vector<128x128xf32>
      %47 = arith.addf %45, %46 : vector<128x128xf32>
      %cst_33 = arith.constant 0.000000e+00 : f32
      %48 = vector.broadcast %cst_33 : f32 to vector<128x128xf32>
      %49 = arith.cmpf ogt, %47, %48 : vector<128x128xf32>
      %cst_34 = arith.constant 2.000000e-01 : f32
      %50 = vector.broadcast %cst_34 : f32 to vector<128x128xf32>
      %51 = arith.mulf %50, %47 : vector<128x128xf32>
      %52 = arith.select %49, %47, %51 : vector<128x128xi1>, vector<128x128xf32>
      %53 = arith.truncf %52 : vector<128x128xf32> to vector<128x128xbf16>
      %c0_35 = arith.constant 0 : index
      %c0_36 = arith.constant 0 : index
      %54 = vector.load %arg6[%c0_35, %c0_36] : memref<128x128xbf16, #tpu.memory_space<vmem>>, vector<128x128xbf16>
      tpu.vector_store %arg6[%c0_35, %c0_36], %53 {strides = array<i32>} : memref<128x128xbf16, #tpu.memory_space<vmem>>, vector<128x128xbf16>,
    } else {
    }
    return
  }
  func.func @transform_0(%arg0: i32, %arg1: i32) -> (i32, i32) {
    %c0_i32 = arith.constant 0 : i32
    %c0_i32_0 = arith.constant 0 : i32
    return %arg1, %c0_i32 : i32, i32
  }
  func.func @transform_1(%arg0: i32, %arg1: i32) -> (i32, i32) {
    %c0_i32 = arith.constant 0 : i32
    %c0_i32_0 = arith.constant 0 : i32
    return %c0_i32, %arg0 : i32, i32
  }
  func.func @transform_2(%arg0: i32, %arg1: i32) -> (i32, i32) {
    %c0_i32 = arith.constant 0 : i32
    %c0_i32_0 = arith.constant 0 : i32
    return %c0_i32, %arg0 : i32, i32
  }
  func.func @transform_3(%arg0: i32, %arg1: i32) -> (i32, i32) {
    %c0_i32 = arith.constant 0 : i32
    %c0_i32_0 = arith.constant 0 : i32
    return %c0_i32, %arg0 : i32, i32
  }
  func.func @transform_4(%arg0: i32, %arg1: i32) -> (i32, i32) {
    %c0_i32 = arith.constant 0 : i32
    %c0_i32_0 = arith.constant 0 : i32
    return %c0_i32, %arg0 : i32, i32
  }
}

module attributes {stable_mosaic.version = 11 : i64} {
  func.func @_fused_conv_bn_act_kernel(%arg0: i32, %arg1: i32, %arg2: memref<128x80xbf16, #tpu.memory_space<vmem>>, %arg3: memref<80x128xbf16, #tpu.memory_space<vmem>>, %arg4: memref<1x128xf32, #tpu.memory_space<vmem>>, %arg5: memref<1x128xf32, #tpu.memory_space<vmem>>, %arg6: memref<128x128xbf16, #tpu.memory_space<vmem>>, %arg7: memref<1x128x128xf32, #tpu.memory_space<vmem>>, %arg8: memref<1x128xf32, #tpu.memory_space<vmem>>, %arg9: memref<1x128xf32, #tpu.memory_space<vmem>>) attributes {dimension_semantics = [#tpu.dimension_semantics<parallel>, #tpu.dimension_semantics<arbitrary>], iteration_bounds = array<i64: 1, 1>, scalar_prefetch = 0 : i64, scratch_operands = 3 : i64, tpu.core_type = #tpu.core_type<tc>, window_params = [{transform_indices = @transform_0, window_bounds = array<i64: 128, 80>}, {transform_indices = @transform_1, window_bounds = array<i64: 80, 128>}, {transform_indices = @transform_2, window_bounds = array<i64: 1, 128>}, {transform_indices = @transform_3, window_bounds = array<i64: 1, 128>}, {transform_indices = @transform_4, window_bounds = array<i64: 128, 128>}]} {
    %c0_i32 = arith.constant 0 : i32
    %0 = arith.cmpi eq, %arg1, %c0_i32 : i32
    %1 = arith.extui %0 : i1 to i32
    %c0_i32_0 = arith.constant 0 : i32
    %2 = arith.cmpi ne, %1, %c0_i32_0 : i32
    scf.if %2 {
      %cst_18 = arith.constant 0.000000e+00 : f32
      %24 = vector.broadcast %cst_18 : f32 to vector<1x128xf32>
      %c0_19 = arith.constant 0 : index
      %c0_20 = arith.constant 0 : index
      %25 = vector.load %arg8[%c0_19, %c0_20] : memref<1x128xf32, #tpu.memory_space<vmem>>, vector<1x128xf32>
      tpu.vector_store %arg8[%c0_19, %c0_20], %24 {strides = array<i32>} : memref<1x128xf32, #tpu.memory_space<vmem>>, vector<1x128xf32>,
      %cst_21 = arith.constant 0.000000e+00 : f32
      %26 = vector.broadcast %cst_21 : f32 to vector<1x128xf32>
      %c0_22 = arith.constant 0 : index
      %c0_23 = arith.constant 0 : index
      %27 = vector.load %arg9[%c0_22, %c0_23] : memref<1x128xf32, #tpu.memory_space<vmem>>, vector<1x128xf32>
      tpu.vector_store %arg9[%c0_22, %c0_23], %26 {strides = array<i32>} : memref<1x128xf32, #tpu.memory_space<vmem>>, vector<1x128xf32>,
    } else {
    }
    %c0 = arith.constant 0 : index
    %c0_1 = arith.constant 0 : index
    %3 = vector.load %arg2[%c0, %c0_1] : memref<128x80xbf16, #tpu.memory_space<vmem>>, vector<128x80xbf16>
    %c0_2 = arith.constant 0 : index
    %c0_3 = arith.constant 0 : index
    %4 = vector.load %arg3[%c0_2, %c0_3] : memref<80x128xbf16, #tpu.memory_space<vmem>>, vector<80x128xbf16>
    %cst = arith.constant dense<0.000000e+00> : vector<128x128xf32>
    %5 = tpu.matmul %3, %4, %cst {dimension_numbers = #tpu.dot_dimension_numbers<[1], [0], [0], [1], [0, 0, 1, 1], [], []>} : vector<128x80xbf16>, vector<80x128xbf16>, vector<128x128xf32> -> vector<128x128xf32>
    %6 = arith.index_cast %arg1 : i32 to index
    %c0_4 = arith.constant 0 : index
    %c0_5 = arith.constant 0 : index
    %7 = vector.load %arg7[%6, %c0_4, %c0_5] : memref<1x128x128xf32, #tpu.memory_space<vmem>>, vector<1x128x128xf32>
    %8 = vector.shape_cast %7 : vector<1x128x128xf32> to vector<128x128xf32>
    %9 = vector.shape_cast %5 : vector<128x128xf32> to vector<1x128x128xf32>
    tpu.vector_store %arg7[%6, %c0_4, %c0_5], %9 {strides = array<i32>} : memref<1x128x128xf32, #tpu.memory_space<vmem>>, vector<1x128x128xf32>,
    %c0_6 = arith.constant 0 : index
    %c0_7 = arith.constant 0 : index
    %10 = vector.load %arg8[%c0_6, %c0_7] : memref<1x128xf32, #tpu.memory_space<vmem>>, vector<1x128xf32>
    %cst_8 = arith.constant dense<0.000000e+00> : vector<128xf32>
    %11 = vector.multi_reduction <add>, %5, %cst_8 [0] : vector<128x128xf32> to vector<128xf32>
    %12 = vector.shape_cast %11 : vector<128xf32> to vector<1x128xf32>
    %13 = arith.addf %10, %12 : vector<1x128xf32>
    %c0_9 = arith.constant 0 : index
    %c0_10 = arith.constant 0 : index
    %14 = vector.load %arg8[%c0_9, %c0_10] : memref<1x128xf32, #tpu.memory_space<vmem>>, vector<1x128xf32>
    tpu.vector_store %arg8[%c0_9, %c0_10], %13 {strides = array<i32>} : memref<1x128xf32, #tpu.memory_space<vmem>>, vector<1x128xf32>,
    %c0_11 = arith.constant 0 : index
    %c0_12 = arith.constant 0 : index
    %15 = vector.load %arg9[%c0_11, %c0_12] : memref<1x128xf32, #tpu.memory_space<vmem>>, vector<1x128xf32>
    %16 = arith.mulf %5, %5 : vector<128x128xf32>
    %cst_13 = arith.constant dense<0.000000e+00> : vector<128xf32>
    %17 = vector.multi_reduction <add>, %16, %cst_13 [0] : vector<128x128xf32> to vector<128xf32>
    %18 = vector.shape_cast %17 : vector<128xf32> to vector<1x128xf32>
    %19 = arith.addf %15, %18 : vector<1x128xf32>
    %c0_14 = arith.constant 0 : index
    %c0_15 = arith.constant 0 : index
    %20 = vector.load %arg9[%c0_14, %c0_15] : memref<1x128xf32, #tpu.memory_space<vmem>>, vector<1x128xf32>
    tpu.vector_store %arg9[%c0_14, %c0_15], %19 {strides = array<i32>} : memref<1x128xf32, #tpu.memory_space<vmem>>, vector<1x128xf32>,
    %c0_i32_16 = arith.constant 0 : i32
    %21 = arith.cmpi eq, %arg1, %c0_i32_16 : i32
    %22 = arith.extui %21 : i1 to i32
    %c0_i32_17 = arith.constant 0 : i32
    %23 = arith.cmpi ne, %22, %c0_i32_17 : i32
    scf.if %23 {
      %c0_18 = arith.constant 0 : index
      %c0_19 = arith.constant 0 : index
      %24 = vector.load %arg8[%c0_18, %c0_19] : memref<1x128xf32, #tpu.memory_space<vmem>>, vector<1x128xf32>
      %cst_20 = arith.constant 7.812500e-03 : f32
      %25 = vector.broadcast %cst_20 : f32 to vector<1x128xf32>
      %26 = arith.mulf %24, %25 : vector<1x128xf32>
      %c0_21 = arith.constant 0 : index
      %c0_22 = arith.constant 0 : index
      %27 = vector.load %arg9[%c0_21, %c0_22] : memref<1x128xf32, #tpu.memory_space<vmem>>, vector<1x128xf32>
      %cst_23 = arith.constant 7.812500e-03 : f32
      %28 = vector.broadcast %cst_23 : f32 to vector<1x128xf32>
      %29 = arith.mulf %27, %28 : vector<1x128xf32>
      %30 = arith.mulf %26, %26 : vector<1x128xf32>
      %31 = arith.subf %29, %30 : vector<1x128xf32>
      %cst_24 = arith.constant 0.000000e+00 : f32
      %32 = vector.broadcast %cst_24 : f32 to vector<1x128xf32>
      %33 = arith.maximumf %31, %32 : vector<1x128xf32>
      %c0_25 = arith.constant 0 : index
      %c0_26 = arith.constant 0 : index
      %34 = vector.load %arg4[%c0_25, %c0_26] : memref<1x128xf32, #tpu.memory_space<vmem>>, vector<1x128xf32>
      %cst_27 = arith.constant 9.99999974E-6 : f32
      %35 = vector.broadcast %cst_27 : f32 to vector<1x128xf32>
      %36 = arith.addf %33, %35 : vector<1x128xf32>
      %37 = math.rsqrt %36 : vector<1x128xf32>
      %38 = arith.mulf %34, %37 : vector<1x128xf32>
      %c0_28 = arith.constant 0 : index
      %c0_29 = arith.constant 0 : index
      %39 = vector.load %arg5[%c0_28, %c0_29] : memref<1x128xf32, #tpu.memory_space<vmem>>, vector<1x128xf32>
      %40 = arith.mulf %26, %38 : vector<1x128xf32>
      %41 = arith.subf %39, %40 : vector<1x128xf32>
      %c0_30 = arith.constant 0 : index
      %c0_31 = arith.constant 0 : index
      %c0_32 = arith.constant 0 : index
      %42 = vector.load %arg7[%c0_30, %c0_31, %c0_32] : memref<1x128x128xf32, #tpu.memory_space<vmem>>, vector<1x128x128xf32>
      %43 = vector.shape_cast %42 : vector<1x128x128xf32> to vector<128x128xf32>
      %44 = vector.broadcast %38 : vector<1x128xf32> to vector<128x128xf32>
      %45 = arith.mulf %43, %44 : vector<128x128xf32>
      %46 = vector.broadcast %41 : vector<1x128xf32> to vector<128x128xf32>
      %47 = arith.addf %45, %46 : vector<128x128xf32>
      %cst_33 = arith.constant 0.000000e+00 : f32
      %48 = vector.broadcast %cst_33 : f32 to vector<128x128xf32>
      %49 = arith.cmpf ogt, %47, %48 : vector<128x128xf32>
      %cst_34 = arith.constant 2.000000e-01 : f32
      %50 = vector.broadcast %cst_34 : f32 to vector<128x128xf32>
      %51 = arith.mulf %50, %47 : vector<128x128xf32>
      %52 = arith.select %49, %47, %51 : vector<128x128xi1>, vector<128x128xf32>
      %53 = arith.truncf %52 : vector<128x128xf32> to vector<128x128xbf16>
      %c0_35 = arith.constant 0 : index
      %c0_36 = arith.constant 0 : index
      %54 = vector.load %arg6[%c0_35, %c0_36] : memref<128x128xbf16, #tpu.memory_space<vmem>>, vector<128x128xbf16>
      tpu.vector_store %arg6[%c0_35, %c0_36], %53 {strides = array<i32>} : memref<128x128xbf16, #tpu.memory_space<vmem>>, vector<128x128xbf16>,
    } else {
    }
    return
  }
  func.func @transform_0(%arg0: i32, %arg1: i32) -> (i32, i32) {
    %c0_i32 = arith.constant 0 : i32
    %c0_i32_0 = arith.constant 0 : i32
    return %arg1, %c0_i32 : i32, i32
  }
  func.func @transform_1(%arg0: i32, %arg1: i32) -> (i32, i32) {
    %c0_i32 = arith.constant 0 : i32
    %c0_i32_0 = arith.constant 0 : i32
    return %c0_i32, %arg0 : i32, i32
  }
  func.func @transform_2(%arg0: i32, %arg1: i32) -> (i32, i32) {
    %c0_i32 = arith.constant 0 : i32
    %c0_i32_0 = arith.constant 0 : i32
    return %c0_i32, %arg0 : i32, i32
  }
  func.func @transform_3(%arg0: i32, %arg1: i32) -> (i32, i32) {
    %c0_i32 = arith.constant 0 : i32
    %c0_i32_0 = arith.constant 0 : i32
    return %c0_i32, %arg0 : i32, i32
  }
  func.func @transform_4(%arg0: i32, %arg1: i32) -> (i32, i32) {
    %c0_i32 = arith.constant 0 : i32
    %c0_i32_0 = arith.constant 0 : i32
    return %c0_i32, %arg0 : i32, i32
  }
}

module attributes {stable_mosaic.version = 11 : i64} {
  func.func @_fused_conv_bn_act_kernel(%arg0: i32, %arg1: i32, %arg2: memref<32x80xbf16, #tpu.memory_space<vmem>>, %arg3: memref<80x128xbf16, #tpu.memory_space<vmem>>, %arg4: memref<1x128xf32, #tpu.memory_space<vmem>>, %arg5: memref<1x128xf32, #tpu.memory_space<vmem>>, %arg6: memref<32x128xbf16, #tpu.memory_space<vmem>>, %arg7: memref<1x32x128xf32, #tpu.memory_space<vmem>>, %arg8: memref<1x128xf32, #tpu.memory_space<vmem>>, %arg9: memref<1x128xf32, #tpu.memory_space<vmem>>) attributes {dimension_semantics = [#tpu.dimension_semantics<parallel>, #tpu.dimension_semantics<arbitrary>], iteration_bounds = array<i64: 1, 1>, scalar_prefetch = 0 : i64, scratch_operands = 3 : i64, tpu.core_type = #tpu.core_type<tc>, window_params = [{transform_indices = @transform_0, window_bounds = array<i64: 32, 80>}, {transform_indices = @transform_1, window_bounds = array<i64: 80, 128>}, {transform_indices = @transform_2, window_bounds = array<i64: 1, 128>}, {transform_indices = @transform_3, window_bounds = array<i64: 1, 128>}, {transform_indices = @transform_4, window_bounds = array<i64: 32, 128>}]} {
    %c0_i32 = arith.constant 0 : i32
    %0 = arith.cmpi eq, %arg1, %c0_i32 : i32
    %1 = arith.extui %0 : i1 to i32
    %c0_i32_0 = arith.constant 0 : i32
    %2 = arith.cmpi ne, %1, %c0_i32_0 : i32
    scf.if %2 {
      %cst_18 = arith.constant 0.000000e+00 : f32
      %24 = vector.broadcast %cst_18 : f32 to vector<1x128xf32>
      %c0_19 = arith.constant 0 : index
      %c0_20 = arith.constant 0 : index
      %25 = vector.load %arg8[%c0_19, %c0_20] : memref<1x128xf32, #tpu.memory_space<vmem>>, vector<1x128xf32>
      tpu.vector_store %arg8[%c0_19, %c0_20], %24 {strides = array<i32>} : memref<1x128xf32, #tpu.memory_space<vmem>>, vector<1x128xf32>,
      %cst_21 = arith.constant 0.000000e+00 : f32
      %26 = vector.broadcast %cst_21 : f32 to vector<1x128xf32>
      %c0_22 = arith.constant 0 : index
      %c0_23 = arith.constant 0 : index
      %27 = vector.load %arg9[%c0_22, %c0_23] : memref<1x128xf32, #tpu.memory_space<vmem>>, vector<1x128xf32>
      tpu.vector_store %arg9[%c0_22, %c0_23], %26 {strides = array<i32>} : memref<1x128xf32, #tpu.memory_space<vmem>>, vector<1x128xf32>,
    } else {
    }
    %c0 = arith.constant 0 : index
    %c0_1 = arith.constant 0 : index
    %3 = vector.load %arg2[%c0, %c0_1] : memref<32x80xbf16, #tpu.memory_space<vmem>>, vector<32x80xbf16>
    %c0_2 = arith.constant 0 : index
    %c0_3 = arith.constant 0 : index
    %4 = vector.load %arg3[%c0_2, %c0_3] : memref<80x128xbf16, #tpu.memory_space<vmem>>, vector<80x128xbf16>
    %cst = arith.constant dense<0.000000e+00> : vector<32x128xf32>
    %5 = tpu.matmul %3, %4, %cst {dimension_numbers = #tpu.dot_dimension_numbers<[1], [0], [0], [1], [0, 0, 1, 1], [], []>} : vector<32x80xbf16>, vector<80x128xbf16>, vector<32x128xf32> -> vector<32x128xf32>
    %6 = arith.index_cast %arg1 : i32 to index
    %c0_4 = arith.constant 0 : index
    %c0_5 = arith.constant 0 : index
    %7 = vector.load %arg7[%6, %c0_4, %c0_5] : memref<1x32x128xf32, #tpu.memory_space<vmem>>, vector<1x32x128xf32>
    %8 = vector.shape_cast %7 : vector<1x32x128xf32> to vector<32x128xf32>
    %9 = vector.shape_cast %5 : vector<32x128xf32> to vector<1x32x128xf32>
    tpu.vector_store %arg7[%6, %c0_4, %c0_5], %9 {strides = array<i32>} : memref<1x32x128xf32, #tpu.memory_space<vmem>>, vector<1x32x128xf32>,
    %c0_6 = arith.constant 0 : index
    %c0_7 = arith.constant 0 : index
    %10 = vector.load %arg8[%c0_6, %c0_7] : memref<1x128xf32, #tpu.memory_space<vmem>>, vector<1x128xf32>
    %cst_8 = arith.constant dense<0.000000e+00> : vector<128xf32>
    %11 = vector.multi_reduction <add>, %5, %cst_8 [0] : vector<32x128xf32> to vector<128xf32>
    %12 = vector.shape_cast %11 : vector<128xf32> to vector<1x128xf32>
    %13 = arith.addf %10, %12 : vector<1x128xf32>
    %c0_9 = arith.constant 0 : index
    %c0_10 = arith.constant 0 : index
    %14 = vector.load %arg8[%c0_9, %c0_10] : memref<1x128xf32, #tpu.memory_space<vmem>>, vector<1x128xf32>
    tpu.vector_store %arg8[%c0_9, %c0_10], %13 {strides = array<i32>} : memref<1x128xf32, #tpu.memory_space<vmem>>, vector<1x128xf32>,
    %c0_11 = arith.constant 0 : index
    %c0_12 = arith.constant 0 : index
    %15 = vector.load %arg9[%c0_11, %c0_12] : memref<1x128xf32, #tpu.memory_space<vmem>>, vector<1x128xf32>
    %16 = arith.mulf %5, %5 : vector<32x128xf32>
    %cst_13 = arith.constant dense<0.000000e+00> : vector<128xf32>
    %17 = vector.multi_reduction <add>, %16, %cst_13 [0] : vector<32x128xf32> to vector<128xf32>
    %18 = vector.shape_cast %17 : vector<128xf32> to vector<1x128xf32>
    %19 = arith.addf %15, %18 : vector<1x128xf32>
    %c0_14 = arith.constant 0 : index
    %c0_15 = arith.constant 0 : index
    %20 = vector.load %arg9[%c0_14, %c0_15] : memref<1x128xf32, #tpu.memory_space<vmem>>, vector<1x128xf32>
    tpu.vector_store %arg9[%c0_14, %c0_15], %19 {strides = array<i32>} : memref<1x128xf32, #tpu.memory_space<vmem>>, vector<1x128xf32>,
    %c0_i32_16 = arith.constant 0 : i32
    %21 = arith.cmpi eq, %arg1, %c0_i32_16 : i32
    %22 = arith.extui %21 : i1 to i32
    %c0_i32_17 = arith.constant 0 : i32
    %23 = arith.cmpi ne, %22, %c0_i32_17 : i32
    scf.if %23 {
      %c0_18 = arith.constant 0 : index
      %c0_19 = arith.constant 0 : index
      %24 = vector.load %arg8[%c0_18, %c0_19] : memref<1x128xf32, #tpu.memory_space<vmem>>, vector<1x128xf32>
      %cst_20 = arith.constant 3.125000e-02 : f32
      %25 = vector.broadcast %cst_20 : f32 to vector<1x128xf32>
      %26 = arith.mulf %24, %25 : vector<1x128xf32>
      %c0_21 = arith.constant 0 : index
      %c0_22 = arith.constant 0 : index
      %27 = vector.load %arg9[%c0_21, %c0_22] : memref<1x128xf32, #tpu.memory_space<vmem>>, vector<1x128xf32>
      %cst_23 = arith.constant 3.125000e-02 : f32
      %28 = vector.broadcast %cst_23 : f32 to vector<1x128xf32>
      %29 = arith.mulf %27, %28 : vector<1x128xf32>
      %30 = arith.mulf %26, %26 : vector<1x128xf32>
      %31 = arith.subf %29, %30 : vector<1x128xf32>
      %cst_24 = arith.constant 0.000000e+00 : f32
      %32 = vector.broadcast %cst_24 : f32 to vector<1x128xf32>
      %33 = arith.maximumf %31, %32 : vector<1x128xf32>
      %c0_25 = arith.constant 0 : index
      %c0_26 = arith.constant 0 : index
      %34 = vector.load %arg4[%c0_25, %c0_26] : memref<1x128xf32, #tpu.memory_space<vmem>>, vector<1x128xf32>
      %cst_27 = arith.constant 9.99999974E-6 : f32
      %35 = vector.broadcast %cst_27 : f32 to vector<1x128xf32>
      %36 = arith.addf %33, %35 : vector<1x128xf32>
      %37 = math.rsqrt %36 : vector<1x128xf32>
      %38 = arith.mulf %34, %37 : vector<1x128xf32>
      %c0_28 = arith.constant 0 : index
      %c0_29 = arith.constant 0 : index
      %39 = vector.load %arg5[%c0_28, %c0_29] : memref<1x128xf32, #tpu.memory_space<vmem>>, vector<1x128xf32>
      %40 = arith.mulf %26, %38 : vector<1x128xf32>
      %41 = arith.subf %39, %40 : vector<1x128xf32>
      %c0_30 = arith.constant 0 : index
      %c0_31 = arith.constant 0 : index
      %c0_32 = arith.constant 0 : index
      %42 = vector.load %arg7[%c0_30, %c0_31, %c0_32] : memref<1x32x128xf32, #tpu.memory_space<vmem>>, vector<1x32x128xf32>
      %43 = vector.shape_cast %42 : vector<1x32x128xf32> to vector<32x128xf32>
      %44 = vector.broadcast %38 : vector<1x128xf32> to vector<32x128xf32>
      %45 = arith.mulf %43, %44 : vector<32x128xf32>
      %46 = vector.broadcast %41 : vector<1x128xf32> to vector<32x128xf32>
      %47 = arith.addf %45, %46 : vector<32x128xf32>
      %cst_33 = arith.constant 0.000000e+00 : f32
      %48 = vector.broadcast %cst_33 : f32 to vector<32x128xf32>
      %49 = arith.cmpf ogt, %47, %48 : vector<32x128xf32>
      %cst_34 = arith.constant 2.000000e-01 : f32
      %50 = vector.broadcast %cst_34 : f32 to vector<32x128xf32>
      %51 = arith.mulf %50, %47 : vector<32x128xf32>
      %52 = arith.select %49, %47, %51 : vector<32x128xi1>, vector<32x128xf32>
      %53 = arith.truncf %52 : vector<32x128xf32> to vector<32x128xbf16>
      %c0_35 = arith.constant 0 : index
      %c0_36 = arith.constant 0 : index
      %54 = vector.load %arg6[%c0_35, %c0_36] : memref<32x128xbf16, #tpu.memory_space<vmem>>, vector<32x128xbf16>
      tpu.vector_store %arg6[%c0_35, %c0_36], %53 {strides = array<i32>} : memref<32x128xbf16, #tpu.memory_space<vmem>>, vector<32x128xbf16>,
    } else {
    }
    return
  }
  func.func @transform_0(%arg0: i32, %arg1: i32) -> (i32, i32) {
    %c0_i32 = arith.constant 0 : i32
    %c0_i32_0 = arith.constant 0 : i32
    return %arg1, %c0_i32 : i32, i32
  }
  func.func @transform_1(%arg0: i32, %arg1: i32) -> (i32, i32) {
    %c0_i32 = arith.constant 0 : i32
    %c0_i32_0 = arith.constant 0 : i32
    return %c0_i32, %arg0 : i32, i32
  }
  func.func @transform_2(%arg0: i32, %arg1: i32) -> (i32, i32) {
    %c0_i32 = arith.constant 0 : i32
    %c0_i32_0 = arith.constant 0 : i32
    return %c0_i32, %arg0 : i32, i32
  }
  func.func @transform_3(%arg0: i32, %arg1: i32) -> (i32, i32) {
    %c0_i32 = arith.constant 0 : i32
    %c0_i32_0 = arith.constant 0 : i32
    return %c0_i32, %arg0 : i32, i32
  }
  func.func @transform_4(%arg0: i32, %arg1: i32) -> (i32, i32) {
    %c0_i32 = arith.constant 0 : i32
    %c0_i32_0 = arith.constant 0 : i32
    return %c0_i32, %arg0 : i32, i32
  }
}

module attributes {stable_mosaic.version = 11 : i64} {
  func.func @_fused_conv_bn_act_kernel(%arg0: i32, %arg1: i32, %arg2: memref<128x128xbf16, #tpu.memory_space<vmem>>, %arg3: memref<128x128xbf16, #tpu.memory_space<vmem>>, %arg4: memref<1x128xf32, #tpu.memory_space<vmem>>, %arg5: memref<1x128xf32, #tpu.memory_space<vmem>>, %arg6: memref<128x128xbf16, #tpu.memory_space<vmem>>, %arg7: memref<1x128x128xf32, #tpu.memory_space<vmem>>, %arg8: memref<1x128xf32, #tpu.memory_space<vmem>>, %arg9: memref<1x128xf32, #tpu.memory_space<vmem>>) attributes {dimension_semantics = [#tpu.dimension_semantics<parallel>, #tpu.dimension_semantics<arbitrary>], iteration_bounds = array<i64: 1, 1>, scalar_prefetch = 0 : i64, scratch_operands = 3 : i64, tpu.core_type = #tpu.core_type<tc>, window_params = [{transform_indices = @transform_0, window_bounds = array<i64: 128, 128>}, {transform_indices = @transform_1, window_bounds = array<i64: 128, 128>}, {transform_indices = @transform_2, window_bounds = array<i64: 1, 128>}, {transform_indices = @transform_3, window_bounds = array<i64: 1, 128>}, {transform_indices = @transform_4, window_bounds = array<i64: 128, 128>}]} {
    %c0_i32 = arith.constant 0 : i32
    %0 = arith.cmpi eq, %arg1, %c0_i32 : i32
    %1 = arith.extui %0 : i1 to i32
    %c0_i32_0 = arith.constant 0 : i32
    %2 = arith.cmpi ne, %1, %c0_i32_0 : i32
    scf.if %2 {
      %cst_18 = arith.constant 0.000000e+00 : f32
      %24 = vector.broadcast %cst_18 : f32 to vector<1x128xf32>
      %c0_19 = arith.constant 0 : index
      %c0_20 = arith.constant 0 : index
      %25 = vector.load %arg8[%c0_19, %c0_20] : memref<1x128xf32, #tpu.memory_space<vmem>>, vector<1x128xf32>
      tpu.vector_store %arg8[%c0_19, %c0_20], %24 {strides = array<i32>} : memref<1x128xf32, #tpu.memory_space<vmem>>, vector<1x128xf32>,
      %cst_21 = arith.constant 0.000000e+00 : f32
      %26 = vector.broadcast %cst_21 : f32 to vector<1x128xf32>
      %c0_22 = arith.constant 0 : index
      %c0_23 = arith.constant 0 : index
      %27 = vector.load %arg9[%c0_22, %c0_23] : memref<1x128xf32, #tpu.memory_space<vmem>>, vector<1x128xf32>
      tpu.vector_store %arg9[%c0_22, %c0_23], %26 {strides = array<i32>} : memref<1x128xf32, #tpu.memory_space<vmem>>, vector<1x128xf32>,
    } else {
    }
    %c0 = arith.constant 0 : index
    %c0_1 = arith.constant 0 : index
    %3 = vector.load %arg2[%c0, %c0_1] : memref<128x128xbf16, #tpu.memory_space<vmem>>, vector<128x128xbf16>
    %c0_2 = arith.constant 0 : index
    %c0_3 = arith.constant 0 : index
    %4 = vector.load %arg3[%c0_2, %c0_3] : memref<128x128xbf16, #tpu.memory_space<vmem>>, vector<128x128xbf16>
    %cst = arith.constant dense<0.000000e+00> : vector<128x128xf32>
    %5 = tpu.matmul %3, %4, %cst {dimension_numbers = #tpu.dot_dimension_numbers<[1], [0], [0], [1], [0, 0, 1, 1], [], []>} : vector<128x128xbf16>, vector<128x128xbf16>, vector<128x128xf32> -> vector<128x128xf32>
    %6 = arith.index_cast %arg1 : i32 to index
    %c0_4 = arith.constant 0 : index
    %c0_5 = arith.constant 0 : index
    %7 = vector.load %arg7[%6, %c0_4, %c0_5] : memref<1x128x128xf32, #tpu.memory_space<vmem>>, vector<1x128x128xf32>
    %8 = vector.shape_cast %7 : vector<1x128x128xf32> to vector<128x128xf32>
    %9 = vector.shape_cast %5 : vector<128x128xf32> to vector<1x128x128xf32>
    tpu.vector_store %arg7[%6, %c0_4, %c0_5], %9 {strides = array<i32>} : memref<1x128x128xf32, #tpu.memory_space<vmem>>, vector<1x128x128xf32>,
    %c0_6 = arith.constant 0 : index
    %c0_7 = arith.constant 0 : index
    %10 = vector.load %arg8[%c0_6, %c0_7] : memref<1x128xf32, #tpu.memory_space<vmem>>, vector<1x128xf32>
    %cst_8 = arith.constant dense<0.000000e+00> : vector<128xf32>
    %11 = vector.multi_reduction <add>, %5, %cst_8 [0] : vector<128x128xf32> to vector<128xf32>
    %12 = vector.shape_cast %11 : vector<128xf32> to vector<1x128xf32>
    %13 = arith.addf %10, %12 : vector<1x128xf32>
    %c0_9 = arith.constant 0 : index
    %c0_10 = arith.constant 0 : index
    %14 = vector.load %arg8[%c0_9, %c0_10] : memref<1x128xf32, #tpu.memory_space<vmem>>, vector<1x128xf32>
    tpu.vector_store %arg8[%c0_9, %c0_10], %13 {strides = array<i32>} : memref<1x128xf32, #tpu.memory_space<vmem>>, vector<1x128xf32>,
    %c0_11 = arith.constant 0 : index
    %c0_12 = arith.constant 0 : index
    %15 = vector.load %arg9[%c0_11, %c0_12] : memref<1x128xf32, #tpu.memory_space<vmem>>, vector<1x128xf32>
    %16 = arith.mulf %5, %5 : vector<128x128xf32>
    %cst_13 = arith.constant dense<0.000000e+00> : vector<128xf32>
    %17 = vector.multi_reduction <add>, %16, %cst_13 [0] : vector<128x128xf32> to vector<128xf32>
    %18 = vector.shape_cast %17 : vector<128xf32> to vector<1x128xf32>
    %19 = arith.addf %15, %18 : vector<1x128xf32>
    %c0_14 = arith.constant 0 : index
    %c0_15 = arith.constant 0 : index
    %20 = vector.load %arg9[%c0_14, %c0_15] : memref<1x128xf32, #tpu.memory_space<vmem>>, vector<1x128xf32>
    tpu.vector_store %arg9[%c0_14, %c0_15], %19 {strides = array<i32>} : memref<1x128xf32, #tpu.memory_space<vmem>>, vector<1x128xf32>,
    %c0_i32_16 = arith.constant 0 : i32
    %21 = arith.cmpi eq, %arg1, %c0_i32_16 : i32
    %22 = arith.extui %21 : i1 to i32
    %c0_i32_17 = arith.constant 0 : i32
    %23 = arith.cmpi ne, %22, %c0_i32_17 : i32
    scf.if %23 {
      %c0_18 = arith.constant 0 : index
      %c0_19 = arith.constant 0 : index
      %24 = vector.load %arg8[%c0_18, %c0_19] : memref<1x128xf32, #tpu.memory_space<vmem>>, vector<1x128xf32>
      %cst_20 = arith.constant 7.812500e-03 : f32
      %25 = vector.broadcast %cst_20 : f32 to vector<1x128xf32>
      %26 = arith.mulf %24, %25 : vector<1x128xf32>
      %c0_21 = arith.constant 0 : index
      %c0_22 = arith.constant 0 : index
      %27 = vector.load %arg9[%c0_21, %c0_22] : memref<1x128xf32, #tpu.memory_space<vmem>>, vector<1x128xf32>
      %cst_23 = arith.constant 7.812500e-03 : f32
      %28 = vector.broadcast %cst_23 : f32 to vector<1x128xf32>
      %29 = arith.mulf %27, %28 : vector<1x128xf32>
      %30 = arith.mulf %26, %26 : vector<1x128xf32>
      %31 = arith.subf %29, %30 : vector<1x128xf32>
      %cst_24 = arith.constant 0.000000e+00 : f32
      %32 = vector.broadcast %cst_24 : f32 to vector<1x128xf32>
      %33 = arith.maximumf %31, %32 : vector<1x128xf32>
      %c0_25 = arith.constant 0 : index
      %c0_26 = arith.constant 0 : index
      %34 = vector.load %arg4[%c0_25, %c0_26] : memref<1x128xf32, #tpu.memory_space<vmem>>, vector<1x128xf32>
      %cst_27 = arith.constant 9.99999974E-6 : f32
      %35 = vector.broadcast %cst_27 : f32 to vector<1x128xf32>
      %36 = arith.addf %33, %35 : vector<1x128xf32>
      %37 = math.rsqrt %36 : vector<1x128xf32>
      %38 = arith.mulf %34, %37 : vector<1x128xf32>
      %c0_28 = arith.constant 0 : index
      %c0_29 = arith.constant 0 : index
      %39 = vector.load %arg5[%c0_28, %c0_29] : memref<1x128xf32, #tpu.memory_space<vmem>>, vector<1x128xf32>
      %40 = arith.mulf %26, %38 : vector<1x128xf32>
      %41 = arith.subf %39, %40 : vector<1x128xf32>
      %c0_30 = arith.constant 0 : index
      %c0_31 = arith.constant 0 : index
      %c0_32 = arith.constant 0 : index
      %42 = vector.load %arg7[%c0_30, %c0_31, %c0_32] : memref<1x128x128xf32, #tpu.memory_space<vmem>>, vector<1x128x128xf32>
      %43 = vector.shape_cast %42 : vector<1x128x128xf32> to vector<128x128xf32>
      %44 = vector.broadcast %38 : vector<1x128xf32> to vector<128x128xf32>
      %45 = arith.mulf %43, %44 : vector<128x128xf32>
      %46 = vector.broadcast %41 : vector<1x128xf32> to vector<128x128xf32>
      %47 = arith.addf %45, %46 : vector<128x128xf32>
      %cst_33 = arith.constant 0.000000e+00 : f32
      %48 = vector.broadcast %cst_33 : f32 to vector<128x128xf32>
      %49 = arith.cmpf ogt, %47, %48 : vector<128x128xf32>
      %cst_34 = arith.constant 2.000000e-01 : f32
      %50 = vector.broadcast %cst_34 : f32 to vector<128x128xf32>
      %51 = arith.mulf %50, %47 : vector<128x128xf32>
      %52 = arith.select %49, %47, %51 : vector<128x128xi1>, vector<128x128xf32>
      %53 = arith.truncf %52 : vector<128x128xf32> to vector<128x128xbf16>
      %c0_35 = arith.constant 0 : index
      %c0_36 = arith.constant 0 : index
      %54 = vector.load %arg6[%c0_35, %c0_36] : memref<128x128xbf16, #tpu.memory_space<vmem>>, vector<128x128xbf16>
      tpu.vector_store %arg6[%c0_35, %c0_36], %53 {strides = array<i32>} : memref<128x128xbf16, #tpu.memory_space<vmem>>, vector<128x128xbf16>,
    } else {
    }
    return
  }
  func.func @transform_0(%arg0: i32, %arg1: i32) -> (i32, i32) {
    %c0_i32 = arith.constant 0 : i32
    %c0_i32_0 = arith.constant 0 : i32
    return %arg1, %c0_i32 : i32, i32
  }
  func.func @transform_1(%arg0: i32, %arg1: i32) -> (i32, i32) {
    %c0_i32 = arith.constant 0 : i32
    %c0_i32_0 = arith.constant 0 : i32
    return %c0_i32, %arg0 : i32, i32
  }
  func.func @transform_2(%arg0: i32, %arg1: i32) -> (i32, i32) {
    %c0_i32 = arith.constant 0 : i32
    %c0_i32_0 = arith.constant 0 : i32
    return %c0_i32, %arg0 : i32, i32
  }
  func.func @transform_3(%arg0: i32, %arg1: i32) -> (i32, i32) {
    %c0_i32 = arith.constant 0 : i32
    %c0_i32_0 = arith.constant 0 : i32
    return %c0_i32, %arg0 : i32, i32
  }
  func.func @transform_4(%arg0: i32, %arg1: i32) -> (i32, i32) {
    %c0_i32 = arith.constant 0 : i32
    %c0_i32_0 = arith.constant 0 : i32
    return %c0_i32, %arg0 : i32, i32
  }
}

module attributes {stable_mosaic.version = 11 : i64} {
  func.func @_fused_conv_bn_act_kernel(%arg0: i32, %arg1: i32, %arg2: memref<32x144xbf16, #tpu.memory_space<vmem>>, %arg3: memref<144x128xbf16, #tpu.memory_space<vmem>>, %arg4: memref<1x128xf32, #tpu.memory_space<vmem>>, %arg5: memref<1x128xf32, #tpu.memory_space<vmem>>, %arg6: memref<32x128xbf16, #tpu.memory_space<vmem>>, %arg7: memref<1x32x128xf32, #tpu.memory_space<vmem>>, %arg8: memref<1x128xf32, #tpu.memory_space<vmem>>, %arg9: memref<1x128xf32, #tpu.memory_space<vmem>>) attributes {dimension_semantics = [#tpu.dimension_semantics<parallel>, #tpu.dimension_semantics<arbitrary>], iteration_bounds = array<i64: 1, 1>, scalar_prefetch = 0 : i64, scratch_operands = 3 : i64, tpu.core_type = #tpu.core_type<tc>, window_params = [{transform_indices = @transform_0, window_bounds = array<i64: 32, 144>}, {transform_indices = @transform_1, window_bounds = array<i64: 144, 128>}, {transform_indices = @transform_2, window_bounds = array<i64: 1, 128>}, {transform_indices = @transform_3, window_bounds = array<i64: 1, 128>}, {transform_indices = @transform_4, window_bounds = array<i64: 32, 128>}]} {
    %c0_i32 = arith.constant 0 : i32
    %0 = arith.cmpi eq, %arg1, %c0_i32 : i32
    %1 = arith.extui %0 : i1 to i32
    %c0_i32_0 = arith.constant 0 : i32
    %2 = arith.cmpi ne, %1, %c0_i32_0 : i32
    scf.if %2 {
      %cst_18 = arith.constant 0.000000e+00 : f32
      %24 = vector.broadcast %cst_18 : f32 to vector<1x128xf32>
      %c0_19 = arith.constant 0 : index
      %c0_20 = arith.constant 0 : index
      %25 = vector.load %arg8[%c0_19, %c0_20] : memref<1x128xf32, #tpu.memory_space<vmem>>, vector<1x128xf32>
      tpu.vector_store %arg8[%c0_19, %c0_20], %24 {strides = array<i32>} : memref<1x128xf32, #tpu.memory_space<vmem>>, vector<1x128xf32>,
      %cst_21 = arith.constant 0.000000e+00 : f32
      %26 = vector.broadcast %cst_21 : f32 to vector<1x128xf32>
      %c0_22 = arith.constant 0 : index
      %c0_23 = arith.constant 0 : index
      %27 = vector.load %arg9[%c0_22, %c0_23] : memref<1x128xf32, #tpu.memory_space<vmem>>, vector<1x128xf32>
      tpu.vector_store %arg9[%c0_22, %c0_23], %26 {strides = array<i32>} : memref<1x128xf32, #tpu.memory_space<vmem>>, vector<1x128xf32>,
    } else {
    }
    %c0 = arith.constant 0 : index
    %c0_1 = arith.constant 0 : index
    %3 = vector.load %arg2[%c0, %c0_1] : memref<32x144xbf16, #tpu.memory_space<vmem>>, vector<32x144xbf16>
    %c0_2 = arith.constant 0 : index
    %c0_3 = arith.constant 0 : index
    %4 = vector.load %arg3[%c0_2, %c0_3] : memref<144x128xbf16, #tpu.memory_space<vmem>>, vector<144x128xbf16>
    %cst = arith.constant dense<0.000000e+00> : vector<32x128xf32>
    %5 = tpu.matmul %3, %4, %cst {dimension_numbers = #tpu.dot_dimension_numbers<[1], [0], [0], [1], [0, 0, 1, 1], [], []>} : vector<32x144xbf16>, vector<144x128xbf16>, vector<32x128xf32> -> vector<32x128xf32>
    %6 = arith.index_cast %arg1 : i32 to index
    %c0_4 = arith.constant 0 : index
    %c0_5 = arith.constant 0 : index
    %7 = vector.load %arg7[%6, %c0_4, %c0_5] : memref<1x32x128xf32, #tpu.memory_space<vmem>>, vector<1x32x128xf32>
    %8 = vector.shape_cast %7 : vector<1x32x128xf32> to vector<32x128xf32>
    %9 = vector.shape_cast %5 : vector<32x128xf32> to vector<1x32x128xf32>
    tpu.vector_store %arg7[%6, %c0_4, %c0_5], %9 {strides = array<i32>} : memref<1x32x128xf32, #tpu.memory_space<vmem>>, vector<1x32x128xf32>,
    %c0_6 = arith.constant 0 : index
    %c0_7 = arith.constant 0 : index
    %10 = vector.load %arg8[%c0_6, %c0_7] : memref<1x128xf32, #tpu.memory_space<vmem>>, vector<1x128xf32>
    %cst_8 = arith.constant dense<0.000000e+00> : vector<128xf32>
    %11 = vector.multi_reduction <add>, %5, %cst_8 [0] : vector<32x128xf32> to vector<128xf32>
    %12 = vector.shape_cast %11 : vector<128xf32> to vector<1x128xf32>
    %13 = arith.addf %10, %12 : vector<1x128xf32>
    %c0_9 = arith.constant 0 : index
    %c0_10 = arith.constant 0 : index
    %14 = vector.load %arg8[%c0_9, %c0_10] : memref<1x128xf32, #tpu.memory_space<vmem>>, vector<1x128xf32>
    tpu.vector_store %arg8[%c0_9, %c0_10], %13 {strides = array<i32>} : memref<1x128xf32, #tpu.memory_space<vmem>>, vector<1x128xf32>,
    %c0_11 = arith.constant 0 : index
    %c0_12 = arith.constant 0 : index
    %15 = vector.load %arg9[%c0_11, %c0_12] : memref<1x128xf32, #tpu.memory_space<vmem>>, vector<1x128xf32>
    %16 = arith.mulf %5, %5 : vector<32x128xf32>
    %cst_13 = arith.constant dense<0.000000e+00> : vector<128xf32>
    %17 = vector.multi_reduction <add>, %16, %cst_13 [0] : vector<32x128xf32> to vector<128xf32>
    %18 = vector.shape_cast %17 : vector<128xf32> to vector<1x128xf32>
    %19 = arith.addf %15, %18 : vector<1x128xf32>
    %c0_14 = arith.constant 0 : index
    %c0_15 = arith.constant 0 : index
    %20 = vector.load %arg9[%c0_14, %c0_15] : memref<1x128xf32, #tpu.memory_space<vmem>>, vector<1x128xf32>
    tpu.vector_store %arg9[%c0_14, %c0_15], %19 {strides = array<i32>} : memref<1x128xf32, #tpu.memory_space<vmem>>, vector<1x128xf32>,
    %c0_i32_16 = arith.constant 0 : i32
    %21 = arith.cmpi eq, %arg1, %c0_i32_16 : i32
    %22 = arith.extui %21 : i1 to i32
    %c0_i32_17 = arith.constant 0 : i32
    %23 = arith.cmpi ne, %22, %c0_i32_17 : i32
    scf.if %23 {
      %c0_18 = arith.constant 0 : index
      %c0_19 = arith.constant 0 : index
      %24 = vector.load %arg8[%c0_18, %c0_19] : memref<1x128xf32, #tpu.memory_space<vmem>>, vector<1x128xf32>
      %cst_20 = arith.constant 3.125000e-02 : f32
      %25 = vector.broadcast %cst_20 : f32 to vector<1x128xf32>
      %26 = arith.mulf %24, %25 : vector<1x128xf32>
      %c0_21 = arith.constant 0 : index
      %c0_22 = arith.constant 0 : index
      %27 = vector.load %arg9[%c0_21, %c0_22] : memref<1x128xf32, #tpu.memory_space<vmem>>, vector<1x128xf32>
      %cst_23 = arith.constant 3.125000e-02 : f32
      %28 = vector.broadcast %cst_23 : f32 to vector<1x128xf32>
      %29 = arith.mulf %27, %28 : vector<1x128xf32>
      %30 = arith.mulf %26, %26 : vector<1x128xf32>
      %31 = arith.subf %29, %30 : vector<1x128xf32>
      %cst_24 = arith.constant 0.000000e+00 : f32
      %32 = vector.broadcast %cst_24 : f32 to vector<1x128xf32>
      %33 = arith.maximumf %31, %32 : vector<1x128xf32>
      %c0_25 = arith.constant 0 : index
      %c0_26 = arith.constant 0 : index
      %34 = vector.load %arg4[%c0_25, %c0_26] : memref<1x128xf32, #tpu.memory_space<vmem>>, vector<1x128xf32>
      %cst_27 = arith.constant 9.99999974E-6 : f32
      %35 = vector.broadcast %cst_27 : f32 to vector<1x128xf32>
      %36 = arith.addf %33, %35 : vector<1x128xf32>
      %37 = math.rsqrt %36 : vector<1x128xf32>
      %38 = arith.mulf %34, %37 : vector<1x128xf32>
      %c0_28 = arith.constant 0 : index
      %c0_29 = arith.constant 0 : index
      %39 = vector.load %arg5[%c0_28, %c0_29] : memref<1x128xf32, #tpu.memory_space<vmem>>, vector<1x128xf32>
      %40 = arith.mulf %26, %38 : vector<1x128xf32>
      %41 = arith.subf %39, %40 : vector<1x128xf32>
      %c0_30 = arith.constant 0 : index
      %c0_31 = arith.constant 0 : index
      %c0_32 = arith.constant 0 : index
      %42 = vector.load %arg7[%c0_30, %c0_31, %c0_32] : memref<1x32x128xf32, #tpu.memory_space<vmem>>, vector<1x32x128xf32>
      %43 = vector.shape_cast %42 : vector<1x32x128xf32> to vector<32x128xf32>
      %44 = vector.broadcast %38 : vector<1x128xf32> to vector<32x128xf32>
      %45 = arith.mulf %43, %44 : vector<32x128xf32>
      %46 = vector.broadcast %41 : vector<1x128xf32> to vector<32x128xf32>
      %47 = arith.addf %45, %46 : vector<32x128xf32>
      %cst_33 = arith.constant 0.000000e+00 : f32
      %48 = vector.broadcast %cst_33 : f32 to vector<32x128xf32>
      %49 = arith.cmpf ogt, %47, %48 : vector<32x128xf32>
      %cst_34 = arith.constant 2.000000e-01 : f32
      %50 = vector.broadcast %cst_34 : f32 to vector<32x128xf32>
      %51 = arith.mulf %50, %47 : vector<32x128xf32>
      %52 = arith.select %49, %47, %51 : vector<32x128xi1>, vector<32x128xf32>
      %53 = arith.truncf %52 : vector<32x128xf32> to vector<32x128xbf16>
      %c0_35 = arith.constant 0 : index
      %c0_36 = arith.constant 0 : index
      %54 = vector.load %arg6[%c0_35, %c0_36] : memref<32x128xbf16, #tpu.memory_space<vmem>>, vector<32x128xbf16>
      tpu.vector_store %arg6[%c0_35, %c0_36], %53 {strides = array<i32>} : memref<32x128xbf16, #tpu.memory_space<vmem>>, vector<32x128xbf16>,
    } else {
    }
    return
  }
  func.func @transform_0(%arg0: i32, %arg1: i32) -> (i32, i32) {
    %c0_i32 = arith.constant 0 : i32
    %c0_i32_0 = arith.constant 0 : i32
    return %arg1, %c0_i32 : i32, i32
  }
  func.func @transform_1(%arg0: i32, %arg1: i32) -> (i32, i32) {
    %c0_i32 = arith.constant 0 : i32
    %c0_i32_0 = arith.constant 0 : i32
    return %c0_i32, %arg0 : i32, i32
  }
  func.func @transform_2(%arg0: i32, %arg1: i32) -> (i32, i32) {
    %c0_i32 = arith.constant 0 : i32
    %c0_i32_0 = arith.constant 0 : i32
    return %c0_i32, %arg0 : i32, i32
  }
  func.func @transform_3(%arg0: i32, %arg1: i32) -> (i32, i32) {
    %c0_i32 = arith.constant 0 : i32
    %c0_i32_0 = arith.constant 0 : i32
    return %c0_i32, %arg0 : i32, i32
  }
  func.func @transform_4(%arg0: i32, %arg1: i32) -> (i32, i32) {
    %c0_i32 = arith.constant 0 : i32
    %c0_i32_0 = arith.constant 0 : i32
    return %c0_i32, %arg0 : i32, i32
  }
}

module attributes {stable_mosaic.version = 11 : i64} {
  func.func @_fused_conv_bn_act_kernel(%arg0: i32, %arg1: i32, %arg2: memref<512x16xbf16, #tpu.memory_space<vmem>>, %arg3: memref<16x128xbf16, #tpu.memory_space<vmem>>, %arg4: memref<1x128xf32, #tpu.memory_space<vmem>>, %arg5: memref<1x128xf32, #tpu.memory_space<vmem>>, %arg6: memref<512x128xbf16, #tpu.memory_space<vmem>>, %arg7: memref<1x512x128xf32, #tpu.memory_space<vmem>>, %arg8: memref<1x128xf32, #tpu.memory_space<vmem>>, %arg9: memref<1x128xf32, #tpu.memory_space<vmem>>) attributes {dimension_semantics = [#tpu.dimension_semantics<parallel>, #tpu.dimension_semantics<arbitrary>], iteration_bounds = array<i64: 1, 1>, scalar_prefetch = 0 : i64, scratch_operands = 3 : i64, tpu.core_type = #tpu.core_type<tc>, window_params = [{transform_indices = @transform_0, window_bounds = array<i64: 512, 16>}, {transform_indices = @transform_1, window_bounds = array<i64: 16, 128>}, {transform_indices = @transform_2, window_bounds = array<i64: 1, 128>}, {transform_indices = @transform_3, window_bounds = array<i64: 1, 128>}, {transform_indices = @transform_4, window_bounds = array<i64: 512, 128>}]} {
    %c0_i32 = arith.constant 0 : i32
    %0 = arith.cmpi eq, %arg1, %c0_i32 : i32
    %1 = arith.extui %0 : i1 to i32
    %c0_i32_0 = arith.constant 0 : i32
    %2 = arith.cmpi ne, %1, %c0_i32_0 : i32
    scf.if %2 {
      %cst_18 = arith.constant 0.000000e+00 : f32
      %24 = vector.broadcast %cst_18 : f32 to vector<1x128xf32>
      %c0_19 = arith.constant 0 : index
      %c0_20 = arith.constant 0 : index
      %25 = vector.load %arg8[%c0_19, %c0_20] : memref<1x128xf32, #tpu.memory_space<vmem>>, vector<1x128xf32>
      tpu.vector_store %arg8[%c0_19, %c0_20], %24 {strides = array<i32>} : memref<1x128xf32, #tpu.memory_space<vmem>>, vector<1x128xf32>,
      %cst_21 = arith.constant 0.000000e+00 : f32
      %26 = vector.broadcast %cst_21 : f32 to vector<1x128xf32>
      %c0_22 = arith.constant 0 : index
      %c0_23 = arith.constant 0 : index
      %27 = vector.load %arg9[%c0_22, %c0_23] : memref<1x128xf32, #tpu.memory_space<vmem>>, vector<1x128xf32>
      tpu.vector_store %arg9[%c0_22, %c0_23], %26 {strides = array<i32>} : memref<1x128xf32, #tpu.memory_space<vmem>>, vector<1x128xf32>,
    } else {
    }
    %c0 = arith.constant 0 : index
    %c0_1 = arith.constant 0 : index
    %3 = vector.load %arg2[%c0, %c0_1] : memref<512x16xbf16, #tpu.memory_space<vmem>>, vector<512x16xbf16>
    %c0_2 = arith.constant 0 : index
    %c0_3 = arith.constant 0 : index
    %4 = vector.load %arg3[%c0_2, %c0_3] : memref<16x128xbf16, #tpu.memory_space<vmem>>, vector<16x128xbf16>
    %cst = arith.constant dense<0.000000e+00> : vector<512x128xf32>
    %5 = tpu.matmul %3, %4, %cst {dimension_numbers = #tpu.dot_dimension_numbers<[1], [0], [0], [1], [0, 0, 1, 1], [], []>} : vector<512x16xbf16>, vector<16x128xbf16>, vector<512x128xf32> -> vector<512x128xf32>
    %6 = arith.index_cast %arg1 : i32 to index
    %c0_4 = arith.constant 0 : index
    %c0_5 = arith.constant 0 : index
    %7 = vector.load %arg7[%6, %c0_4, %c0_5] : memref<1x512x128xf32, #tpu.memory_space<vmem>>, vector<1x512x128xf32>
    %8 = vector.shape_cast %7 : vector<1x512x128xf32> to vector<512x128xf32>
    %9 = vector.shape_cast %5 : vector<512x128xf32> to vector<1x512x128xf32>
    tpu.vector_store %arg7[%6, %c0_4, %c0_5], %9 {strides = array<i32>} : memref<1x512x128xf32, #tpu.memory_space<vmem>>, vector<1x512x128xf32>,
    %c0_6 = arith.constant 0 : index
    %c0_7 = arith.constant 0 : index
    %10 = vector.load %arg8[%c0_6, %c0_7] : memref<1x128xf32, #tpu.memory_space<vmem>>, vector<1x128xf32>
    %cst_8 = arith.constant dense<0.000000e+00> : vector<128xf32>
    %11 = vector.multi_reduction <add>, %5, %cst_8 [0] : vector<512x128xf32> to vector<128xf32>
    %12 = vector.shape_cast %11 : vector<128xf32> to vector<1x128xf32>
    %13 = arith.addf %10, %12 : vector<1x128xf32>
    %c0_9 = arith.constant 0 : index
    %c0_10 = arith.constant 0 : index
    %14 = vector.load %arg8[%c0_9, %c0_10] : memref<1x128xf32, #tpu.memory_space<vmem>>, vector<1x128xf32>
    tpu.vector_store %arg8[%c0_9, %c0_10], %13 {strides = array<i32>} : memref<1x128xf32, #tpu.memory_space<vmem>>, vector<1x128xf32>,
    %c0_11 = arith.constant 0 : index
    %c0_12 = arith.constant 0 : index
    %15 = vector.load %arg9[%c0_11, %c0_12] : memref<1x128xf32, #tpu.memory_space<vmem>>, vector<1x128xf32>
    %16 = arith.mulf %5, %5 : vector<512x128xf32>
    %cst_13 = arith.constant dense<0.000000e+00> : vector<128xf32>
    %17 = vector.multi_reduction <add>, %16, %cst_13 [0] : vector<512x128xf32> to vector<128xf32>
    %18 = vector.shape_cast %17 : vector<128xf32> to vector<1x128xf32>
    %19 = arith.addf %15, %18 : vector<1x128xf32>
    %c0_14 = arith.constant 0 : index
    %c0_15 = arith.constant 0 : index
    %20 = vector.load %arg9[%c0_14, %c0_15] : memref<1x128xf32, #tpu.memory_space<vmem>>, vector<1x128xf32>
    tpu.vector_store %arg9[%c0_14, %c0_15], %19 {strides = array<i32>} : memref<1x128xf32, #tpu.memory_space<vmem>>, vector<1x128xf32>,
    %c0_i32_16 = arith.constant 0 : i32
    %21 = arith.cmpi eq, %arg1, %c0_i32_16 : i32
    %22 = arith.extui %21 : i1 to i32
    %c0_i32_17 = arith.constant 0 : i32
    %23 = arith.cmpi ne, %22, %c0_i32_17 : i32
    scf.if %23 {
      %c0_18 = arith.constant 0 : index
      %c0_19 = arith.constant 0 : index
      %24 = vector.load %arg8[%c0_18, %c0_19] : memref<1x128xf32, #tpu.memory_space<vmem>>, vector<1x128xf32>
      %cst_20 = arith.constant 0.001953125 : f32
      %25 = vector.broadcast %cst_20 : f32 to vector<1x128xf32>
      %26 = arith.mulf %24, %25 : vector<1x128xf32>
      %c0_21 = arith.constant 0 : index
      %c0_22 = arith.constant 0 : index
      %27 = vector.load %arg9[%c0_21, %c0_22] : memref<1x128xf32, #tpu.memory_space<vmem>>, vector<1x128xf32>
      %cst_23 = arith.constant 0.001953125 : f32
      %28 = vector.broadcast %cst_23 : f32 to vector<1x128xf32>
      %29 = arith.mulf %27, %28 : vector<1x128xf32>
      %30 = arith.mulf %26, %26 : vector<1x128xf32>
      %31 = arith.subf %29, %30 : vector<1x128xf32>
      %cst_24 = arith.constant 0.000000e+00 : f32
      %32 = vector.broadcast %cst_24 : f32 to vector<1x128xf32>
      %33 = arith.maximumf %31, %32 : vector<1x128xf32>
      %c0_25 = arith.constant 0 : index
      %c0_26 = arith.constant 0 : index
      %34 = vector.load %arg4[%c0_25, %c0_26] : memref<1x128xf32, #tpu.memory_space<vmem>>, vector<1x128xf32>
      %cst_27 = arith.constant 9.99999974E-6 : f32
      %35 = vector.broadcast %cst_27 : f32 to vector<1x128xf32>
      %36 = arith.addf %33, %35 : vector<1x128xf32>
      %37 = math.rsqrt %36 : vector<1x128xf32>
      %38 = arith.mulf %34, %37 : vector<1x128xf32>
      %c0_28 = arith.constant 0 : index
      %c0_29 = arith.constant 0 : index
      %39 = vector.load %arg5[%c0_28, %c0_29] : memref<1x128xf32, #tpu.memory_space<vmem>>, vector<1x128xf32>
      %40 = arith.mulf %26, %38 : vector<1x128xf32>
      %41 = arith.subf %39, %40 : vector<1x128xf32>
      %c0_30 = arith.constant 0 : index
      %c0_31 = arith.constant 0 : index
      %c0_32 = arith.constant 0 : index
      %42 = vector.load %arg7[%c0_30, %c0_31, %c0_32] : memref<1x512x128xf32, #tpu.memory_space<vmem>>, vector<1x512x128xf32>
      %43 = vector.shape_cast %42 : vector<1x512x128xf32> to vector<512x128xf32>
      %44 = vector.broadcast %38 : vector<1x128xf32> to vector<512x128xf32>
      %45 = arith.mulf %43, %44 : vector<512x128xf32>
      %46 = vector.broadcast %41 : vector<1x128xf32> to vector<512x128xf32>
      %47 = arith.addf %45, %46 : vector<512x128xf32>
      %cst_33 = arith.constant 0.000000e+00 : f32
      %48 = vector.broadcast %cst_33 : f32 to vector<512x128xf32>
      %49 = arith.cmpf ogt, %47, %48 : vector<512x128xf32>
      %cst_34 = arith.constant 2.000000e-01 : f32
      %50 = vector.broadcast %cst_34 : f32 to vector<512x128xf32>
      %51 = arith.mulf %50, %47 : vector<512x128xf32>
      %52 = arith.select %49, %47, %51 : vector<512x128xi1>, vector<512x128xf32>
      %53 = arith.truncf %52 : vector<512x128xf32> to vector<512x128xbf16>
      %c0_35 = arith.constant 0 : index
      %c0_36 = arith.constant 0 : index
      %54 = vector.load %arg6[%c0_35, %c0_36] : memref<512x128xbf16, #tpu.memory_space<vmem>>, vector<512x128xbf16>
      tpu.vector_store %arg6[%c0_35, %c0_36], %53 {strides = array<i32>} : memref<512x128xbf16, #tpu.memory_space<vmem>>, vector<512x128xbf16>,
    } else {
    }
    return
  }
  func.func @transform_0(%arg0: i32, %arg1: i32) -> (i32, i32) {
    %c0_i32 = arith.constant 0 : i32
    %c0_i32_0 = arith.constant 0 : i32
    return %arg1, %c0_i32 : i32, i32
  }
  func.func @transform_1(%arg0: i32, %arg1: i32) -> (i32, i32) {
    %c0_i32 = arith.constant 0 : i32
    %c0_i32_0 = arith.constant 0 : i32
    return %c0_i32, %arg0 : i32, i32
  }
  func.func @transform_2(%arg0: i32, %arg1: i32) -> (i32, i32) {
    %c0_i32 = arith.constant 0 : i32
    %c0_i32_0 = arith.constant 0 : i32
    return %c0_i32, %arg0 : i32, i32
  }
  func.func @transform_3(%arg0: i32, %arg1: i32) -> (i32, i32) {
    %c0_i32 = arith.constant 0 : i32
    %c0_i32_0 = arith.constant 0 : i32
    return %c0_i32, %arg0 : i32, i32
  }
  func.func @transform_4(%arg0: i32, %arg1: i32) -> (i32, i32) {
    %c0_i32 = arith.constant 0 : i32
    %c0_i32_0 = arith.constant 0 : i32
    return %c0_i32, %arg0 : i32, i32
  }
}

</mosaic_0001>

<llo_original>
// kernel: skip_encoder_forward.7
$region0: #{skip_encoder_forward.7}
  #allocation0 [shape = 'u32[]', space=smem, size = 0x4, offset = 0x4, fixed_abs, tag = 'smem constant byte address 0x4 - core index']
  #allocation1 [shape = 'u32[144,128]{1,0:T(1,128)}', space=vmem, size = 0x12000, scoped, tag = 'internal scratch']
  #allocation2 [shape = 'f32[1,128,128]{2,1,0:T(8,128)}', space=vmem, size = 0x10000, scoped, tag = 'scratch operand']
  #allocation3 [shape = 'f32[1,128]{1,0:T(1,128)}', space=vmem, size = 0x200, scoped, tag = 'scratch operand']
  #allocation4 [shape = 'f32[1,128]{1,0:T(1,128)}', space=vmem, size = 0x200, scoped, tag = 'scratch operand']
  %s0 = inlined_call_operand.vmem [shape: bf16[128,48], index: 0, kind: input, shape index: {}]
  %s1 = inlined_call_operand.vmem [shape: bf16[48,128], index: 1, kind: input, shape index: {}]
  %s2 = inlined_call_operand.vmem [shape: f32[1,128], index: 2, kind: input, shape index: {}]
  %s3 = inlined_call_operand.vmem [shape: f32[1,128], index: 3, kind: input, shape index: {}]
  %s4 = inlined_call_operand.vmem [shape: bf16[128,128], index: 4, kind: output, shape index: {}]
  %s5 = sld [smem:[#allocation0]]
  $region34: #{skip_encoder_forward.7} parent=0
    _
  %s7 = ssub.s32 1, %s5
  %s8 = scalar_select 0, %s7, %s5
  // Predicated region
  $region2: #{skip_encoder_forward.7} parent=0 // pred_check
    _
  $region3: #{skip_encoder_forward.7} parent=0 // pred_check_branch
    %10 = sbr.rel (0) target = $region5
  $region4: #{skip_encoder_forward.7} parent=0 // pred_region
    _
  $region5: #{skip_encoder_forward.7} parent=0 // pred_fallthru
    _
  // Predicated region
  $region6: #{skip_encoder_forward.7} parent=0 // pred_check
    _
  $region7: #{skip_encoder_forward.7} parent=0 // pred_check_branch
    %12 = sbr.rel (0) target = $region9
  $region8: #{skip_encoder_forward.7} parent=0 // pred_region
    _
  $region9: #{skip_encoder_forward.7} parent=0 // pred_fallthru
    _
  // Predicated region
  $region10: #{skip_encoder_forward.7} parent=0 // pred_check
    _
  $region11: #{skip_encoder_forward.7} parent=0 // pred_check_branch
    %14 = sbr.rel (0) target = $region13
  $region12: #{skip_encoder_forward.7} parent=0 // pred_region
    _
  $region13: #{skip_encoder_forward.7} parent=0 // pred_fallthru
    _
  // Predicated region
  $region14: #{skip_encoder_forward.7} parent=0 // pred_check
    _
  $region15: #{skip_encoder_forward.7} parent=0 // pred_check_branch
    %16 = sbr.rel (0) target = $region17
  $region16: #{skip_encoder_forward.7} parent=0 // pred_region
    _
  $region17: #{skip_encoder_forward.7} parent=0 // pred_fallthru
    _
  %p18 = scmp.eq.s32.totalorder 0, 0
  // Predicated region
  $region18: #{skip_encoder_forward.7} parent=0 // pred_check
    %p19 = pneg %p18
  $region19: #{skip_encoder_forward.7} parent=0 // pred_check_branch
    %21 = sbr.rel (%p19) target = $region21
  $region20: #{skip_encoder_forward.7} parent=0 // pred_region
    %22 = vst [vmem:[#allocation3] sm:$0x1] 0.0
    %23 = vst [vmem:[#allocation4] sm:$0x1] 0.0
  $region21: #{skip_encoder_forward.7} parent=0 // pred_fallthru
    _
  %v24 = vld [vmem:[%s0] sm:$0xf]
  %v25 = vld [vmem:[%s0 + $0x4] sm:$0xf]
  %v26 = vld [vmem:[%s0 + $0x8] sm:$0xf]
  %v27 = vld [vmem:[%s0 + $0xc] sm:$0xf]
  %v28 = vld [vmem:[%s0 + $0x10] sm:$0xf]
  %v29 = vld [vmem:[%s0 + $0x14] sm:$0xf]
  %v30 = vld [vmem:[%s0 + $0x18] sm:$0xf]
  %v31 = vld [vmem:[%s0 + $0x1c] sm:$0xf]
  %v32 = vld [vmem:[%s0 + $0x20] sm:$0xf]
  %v33 = vld [vmem:[%s0 + $0x24] sm:$0xf]
  %v34 = vld [vmem:[%s0 + $0x28] sm:$0xf]
  %v35 = vld [vmem:[%s0 + $0x2c] sm:$0xf]
  %v36 = vld [vmem:[%s0 + $0x30] sm:$0xf]
  %v37 = vld [vmem:[%s0 + $0x34] sm:$0xf]
  %v38 = vld [vmem:[%s0 + $0x38] sm:$0xf]
  %v39 = vld [vmem:[%s0 + $0x3c] sm:$0xf]
  %v40 = vld [vmem:[%s1] sm:$0xf]
  %v41 = vld [vmem:[%s1 + $0x4] sm:$0xf]
  %v42 = vld [vmem:[%s1 + $0x8] sm:$0xf]
  %v43 = vld [vmem:[%s1 + $0xc] sm:$0xf]
  %v44 = vld [vmem:[%s1 + $0x10] sm:$0xf]
  %v45 = vld [vmem:[%s1 + $0x14] sm:$0xf]
  %v62 = vunpack.c.l.b16 %v24
  %v63 = vunpack.c.l.b16 %v25
  %v64 = vunpack.c.l.b16 %v26
  %v65 = vunpack.c.l.b16 %v27
  %v66 = vunpack.c.l.b16 %v28
  %v67 = vunpack.c.l.b16 %v29
  %v68 = vunpack.c.l.b16 %v30
  %v69 = vunpack.c.l.b16 %v31
  %v70 = vunpack.c.l.b16 %v32
  %v71 = vunpack.c.l.b16 %v33
  %v72 = vunpack.c.l.b16 %v34
  %v73 = vunpack.c.l.b16 %v35
  %v74 = vunpack.c.l.b16 %v36
  %v75 = vunpack.c.l.b16 %v37
  %v76 = vunpack.c.l.b16 %v38
  %v77 = vunpack.c.l.b16 %v39
  %v78 = vpack.c.b16 %v63, %v62
  %v79 = vpack.c.b16 %v65, %v64
  %v80 = vpack.c.b16 %v67, %v66
  %v81 = vpack.c.b16 %v69, %v68
  %v82 = vpack.c.b16 %v71, %v70
  %v83 = vpack.c.b16 %v73, %v72
  %v84 = vpack.c.b16 %v75, %v74
  %v85 = vpack.c.b16 %v77, %v76
  %v92 = vunpack.c.l.b16 %v40
  %v93 = vunpack.c.l.b16 %v41
  %v94 = vunpack.c.l.b16 %v42
  %v95 = vunpack.c.l.b16 %v43
  %v96 = vunpack.c.l.b16 %v44
  %v97 = vunpack.c.l.b16 %v45
  %v98 = vpack.c.b16 %v93, %v92
  %v99 = vpack.c.b16 %v95, %v94
  %v100 = vpack.c.b16 %v97, %v96
  %vm104 = vcmask 392192
  %v106 = vsel %vm104, %v78, 0
  %v109 = vsel %vm104, %v79, 0
  %v112 = vsel %vm104, %v80, 0
  %v115 = vsel %vm104, %v81, 0
  %v118 = vsel %vm104, %v82, 0
  %v121 = vsel %vm104, %v83, 0
  %v124 = vsel %vm104, %v84, 0
  %v127 = vsel %vm104, %v85, 0
  %129 = vmatprep.subr.bf16.mxu0 0
  %130 = vmatpush1.bf16.msra.mxu0 0
  %131 = vmatprep.subr.bf16.mxu0 0
  %132 = vmatpush1.bf16.msra.mxu0 0
  %133 = vmatprep.subr.bf16.mxu0 0
  %134 = vmatpush1.bf16.msra.mxu0 0
  %135 = vmatprep.subr.bf16.mxu0 0
  %136 = vmatpush1.bf16.msra.mxu0 0
  %137 = vmatprep.subr.bf16.mxu0 0
  %138 = vmatpush1.bf16.msra.mxu0 0
  %139 = vmatprep.subr.bf16.mxu0 0
  %140 = vmatpush1.bf16.msra.mxu0 %v100
  %141 = vmatprep.subr.bf16.mxu0 0
  %142 = vmatpush1.bf16.msra.mxu0 %v99
  %143 = vmatprep.subr.bf16.mxu0 0
  %144 = vmatpush1.bf16.msra.mxu0 %v98
  %145 = vmatprep.subr.bf16.mxu0 0
  %146 = vmatpush2.bf16.msra.mxu0 0
  %147 = vmatprep.subr.bf16.mxu0 0
  %148 = vmatpush2.bf16.msra.mxu0 0
  %149 = vmatprep.subr.bf16.mxu0 0
  %150 = vmatpush2.bf16.msra.mxu0 0
  %151 = vmatprep.subr.bf16.mxu0 0
  %152 = vmatpush2.bf16.msra.mxu0 0
  %153 = vmatprep.subr.bf16.mxu0 0
  %154 = vmatpush2.bf16.msra.mxu0 0
  %155 = vmatprep.subr.bf16.mxu0 0
  %156 = vmatpush2.bf16.msra.mxu0 0
  %157 = vmatprep.subr.bf16.mxu0 0
  %158 = vmatpush2.bf16.msra.mxu0 0
  %159 = vmatprep.subr.bf16.mxu0 0
  %160 = vmatpush2.bf16.msra.mxu0 0
  %161 = vmatprep.mubr.bf16.mxu0 0
  %162 = vmatmul.mubr.bf16.gmra.mxu0 %v106
  %v163 = vpop.f32.mrf.mxu0
  %v164 = vadd.f32 0.0, %v163
  %v165 = vpop.f32.mrf.mxu0
  %v166 = vpop.f32.mrf.mxu0
  %v167 = vadd.f32 0.0, %v166
  %v168 = vpop.f32.mrf.mxu0
  %169 = vmatprep.mubr.bf16.mxu0 0
  %170 = vmatmul.mubr.bf16.gmra.mxu0 %v109
  %v171 = vpop.f32.mrf.mxu0
  %v172 = vadd.f32 0.0, %v171
  %v173 = vpop.f32.mrf.mxu0
  %v174 = vpop.f32.mrf.mxu0
  %v175 = vadd.f32 0.0, %v174
  %v176 = vpop.f32.mrf.mxu0
  %177 = vmatprep.mubr.bf16.mxu0 0
  %178 = vmatmul.mubr.bf16.gmra.mxu0 %v112
  %v179 = vpop.f32.mrf.mxu0
  %v180 = vadd.f32 0.0, %v179
  %v181 = vpop.f32.mrf.mxu0
  %v182 = vpop.f32.mrf.mxu0
  %v183 = vadd.f32 0.0, %v182
  %v184 = vpop.f32.mrf.mxu0
  %185 = vmatprep.mubr.bf16.mxu0 0
  %186 = vmatmul.mubr.bf16.gmra.mxu0 %v115
  %v187 = vpop.f32.mrf.mxu0
  %v188 = vadd.f32 0.0, %v187
  %v189 = vpop.f32.mrf.mxu0
  %v190 = vpop.f32.mrf.mxu0
  %v191 = vadd.f32 0.0, %v190
  %v192 = vpop.f32.mrf.mxu0
  %193 = vmatprep.mubr.bf16.mxu0 0
  %194 = vmatmul.mubr.bf16.gmra.mxu0 %v118
  %v195 = vpop.f32.mrf.mxu0
  %v196 = vadd.f32 0.0, %v195
  %v197 = vpop.f32.mrf.mxu0
  %v198 = vpop.f32.mrf.mxu0
  %v199 = vadd.f32 0.0, %v198
  %v200 = vpop.f32.mrf.mxu0
  %201 = vmatprep.mubr.bf16.mxu0 0
  %202 = vmatmul.mubr.bf16.gmra.mxu0 %v121
  %v203 = vpop.f32.mrf.mxu0
  %v204 = vadd.f32 0.0, %v203
  %v205 = vpop.f32.mrf.mxu0
  %v206 = vpop.f32.mrf.mxu0
  %v207 = vadd.f32 0.0, %v206
  %v208 = vpop.f32.mrf.mxu0
  %209 = vmatprep.mubr.bf16.mxu0 0
  %210 = vmatmul.mubr.bf16.gmra.mxu0 %v124
  %v211 = vpop.f32.mrf.mxu0
  %v212 = vadd.f32 0.0, %v211
  %v213 = vpop.f32.mrf.mxu0
  %v214 = vpop.f32.mrf.mxu0
  %v215 = vadd.f32 0.0, %v214
  %v216 = vpop.f32.mrf.mxu0
  %217 = vmatprep.mubr.bf16.mxu0 0
  %218 = vmatmul.mubr.bf16.gmra.mxu0 %v127
  %v219 = vpop.f32.mrf.mxu0
  %v220 = vadd.f32 0.0, %v219
  %v221 = vpop.f32.mrf.mxu0
  %v222 = vpop.f32.mrf.mxu0
  %v223 = vadd.f32 0.0, %v222
  %v224 = vpop.f32.mrf.mxu0
  %225 = vdwg.mxu0
  %s226 = smul.u32 0, 128
  %s227 = scalar_lea.vmem [#allocation2], %s226
  %228 = vst [vmem:[%s227] sm:$0xff] %v164
  %229 = vst [vmem:[%s227 + $0x8] sm:$0xff] %v167
  %230 = vst [vmem:[%s227 + $0x10] sm:$0xff] %v172
  %231 = vst [vmem:[%s227 + $0x18] sm:$0xff] %v175
  %232 = vst [vmem:[%s227 + $0x20] sm:$0xff] %v180
  %233 = vst [vmem:[%s227 + $0x28] sm:$0xff] %v183
  %234 = vst [vmem:[%s227 + $0x30] sm:$0xff] %v188
  %235 = vst [vmem:[%s227 + $0x38] sm:$0xff] %v191
  %236 = vst [vmem:[%s227 + $0x40] sm:$0xff] %v196
  %237 = vst [vmem:[%s227 + $0x48] sm:$0xff] %v199
  %238 = vst [vmem:[%s227 + $0x50] sm:$0xff] %v204
  %239 = vst [vmem:[%s227 + $0x58] sm:$0xff] %v207
  %240 = vst [vmem:[%s227 + $0x60] sm:$0xff] %v212
  %241 = vst [vmem:[%s227 + $0x68] sm:$0xff] %v215
  %242 = vst [vmem:[%s227 + $0x70] sm:$0xff] %v220
  %243 = vst [vmem:[%s227 + $0x78] sm:$0xff] %v223
  %v244 = vld [vmem:[#allocation3] sm:$0x1]
  %v245 = vadd.f32 %v164, %v167
  %v246 = vadd.f32 %v245, %v172
  %v247 = vadd.f32 %v246, %v175
  %v248 = vadd.f32 %v247, %v180
  %v249 = vadd.f32 %v248, %v183
  %v250 = vadd.f32 %v249, %v188
  %v251 = vadd.f32 %v250, %v191
  %v252 = vadd.f32 %v251, %v196
  %v253 = vadd.f32 %v252, %v199
  %v254 = vadd.f32 %v253, %v204
  %v255 = vadd.f32 %v254, %v207
  %v256 = vadd.f32 %v255, %v212
  %v257 = vadd.f32 %v256, %v215
  %v258 = vadd.f32 %v257, %v220
  %v259 = vadd.f32 %v258, %v223
  %v260 = vrot.slane %v259, 4
  %v261 = vadd.f32 %v259, %v260
  %v262 = vrot.slane %v261, 2
  %v263 = vadd.f32 %v261, %v262
  %v264 = vrot.slane %v263, 1
  %v265 = vadd.f32 %v263, %v264
  %v266 = vadd.f32 %v244, %v265
  %267 = vst [vmem:[#allocation3] sm:$0x1] %v266
  %v268 = vld [vmem:[#allocation4] sm:$0x1]
  %v269 = vmul.f32 %v164, %v164
  %v270 = vmul.f32 %v167, %v167
  %v271 = vmul.f32 %v172, %v172
  %v272 = vmul.f32 %v175, %v175
  %v273 = vmul.f32 %v180, %v180
  %v274 = vmul.f32 %v183, %v183
  %v275 = vmul.f32 %v188, %v188
  %v276 = vmul.f32 %v191, %v191
  %v277 = vmul.f32 %v196, %v196
  %v278 = vmul.f32 %v199, %v199
  %v279 = vmul.f32 %v204, %v204
  %v280 = vmul.f32 %v207, %v207
  %v281 = vmul.f32 %v212, %v212
  %v282 = vmul.f32 %v215, %v215
  %v283 = vmul.f32 %v220, %v220
  %v284 = vmul.f32 %v223, %v223
  %v285 = vadd.f32 %v269, %v270
  %v286 = vadd.f32 %v285, %v271
  %v287 = vadd.f32 %v286, %v272
  %v288 = vadd.f32 %v287, %v273
  %v289 = vadd.f32 %v288, %v274
  %v290 = vadd.f32 %v289, %v275
  %v291 = vadd.f32 %v290, %v276
  %v292 = vadd.f32 %v291, %v277
  %v293 = vadd.f32 %v292, %v278
  %v294 = vadd.f32 %v293, %v279
  %v295 = vadd.f32 %v294, %v280
  %v296 = vadd.f32 %v295, %v281
  %v297 = vadd.f32 %v296, %v282
  %v298 = vadd.f32 %v297, %v283
  %v299 = vadd.f32 %v298, %v284
  %v300 = vrot.slane %v299, 4
  %v301 = vadd.f32 %v299, %v300
  %v302 = vrot.slane %v301, 2
  %v303 = vadd.f32 %v301, %v302
  %v304 = vrot.slane %v303, 1
  %v305 = vadd.f32 %v303, %v304
  %v306 = vadd.f32 %v268, %v305
  %307 = vst [vmem:[#allocation4] sm:$0x1] %v306
  // Predicated region
  $region22: #{skip_encoder_forward.7} parent=0 // pred_check
    %p308 = pneg %p18
  $region23: #{skip_encoder_forward.7} parent=0 // pred_check_branch
    %310 = sbr.rel (%p308) target = $region25
  $region24: #{skip_encoder_forward.7} parent=0 // pred_region
    %v311 = vld [vmem:[#allocation3] sm:$0x1]
    %v312 = vmul.f32 %v311, 0.0078125
    %v313 = vld [vmem:[#allocation4] sm:$0x1]
    %v314 = vmul.f32 %v313, 0.0078125
    %v315 = vmul.f32 %v312, %v312
    %v316 = vsub.f32 %v314, %v315
    %v317 = vmax.f32 %v316, 0.0
    %v318 = vld [vmem:[%s2] sm:$0x1]
    %v319 = vadd.f32 %v317, 1e-05
    %v320 = vrsqrt.pop %v319
    %v321 = vmul.f32 %v318, %v320
    %v322 = vld [vmem:[%s3] sm:$0x1]
    %v323 = vmul.f32 %v312, %v321
    %v324 = vsub.f32 %v322, %v323
    %v325 = vld [vmem:[#allocation2] sm:$0xff]
    %v326 = vld [vmem:[#allocation2 + $0x8] sm:$0xff]
    %v327 = vld [vmem:[#allocation2 + $0x10] sm:$0xff]
    %v328 = vld [vmem:[#allocation2 + $0x18] sm:$0xff]
    %v329 = vld [vmem:[#allocation2 + $0x20] sm:$0xff]
    %v330 = vld [vmem:[#allocation2 + $0x28] sm:$0xff]
    %v331 = vld [vmem:[#allocation2 + $0x30] sm:$0xff]
    %v332 = vld [vmem:[#allocation2 + $0x38] sm:$0xff]
    %v333 = vld [vmem:[#allocation2 + $0x40] sm:$0xff]
    %v334 = vld [vmem:[#allocation2 + $0x48] sm:$0xff]
    %v335 = vld [vmem:[#allocation2 + $0x50] sm:$0xff]
    %v336 = vld [vmem:[#allocation2 + $0x58] sm:$0xff]
    %v337 = vld [vmem:[#allocation2 + $0x60] sm:$0xff]
    %v338 = vld [vmem:[#allocation2 + $0x68] sm:$0xff]
    %v339 = vld [vmem:[#allocation2 + $0x70] sm:$0xff]
    %v340 = vld [vmem:[#allocation2 + $0x78] sm:$0xff]
    %v342 = vlaneseq
    %v343 = vshrl.u32 %v342, 7
    %v344 = vsub.s32 0, %v343
    %v345 = vrot.slane %v321, %v344
    %v347 = vmul.f32 %v325, %v345
    %v348 = vmul.f32 %v326, %v345
    %v349 = vmul.f32 %v327, %v345
    %v350 = vmul.f32 %v328, %v345
    %v351 = vmul.f32 %v329, %v345
    %v352 = vmul.f32 %v330, %v345
    %v353 = vmul.f32 %v331, %v345
    %v354 = vmul.f32 %v332, %v345
    %v355 = vmul.f32 %v333, %v345
    %v356 = vmul.f32 %v334, %v345
    %v357 = vmul.f32 %v335, %v345
    %v358 = vmul.f32 %v336, %v345
    %v359 = vmul.f32 %v337, %v345
    %v360 = vmul.f32 %v338, %v345
    %v361 = vmul.f32 %v339, %v345
    %v362 = vmul.f32 %v340, %v345
    %v364 = vlaneseq
    %v365 = vshrl.u32 %v364, 7
    %v366 = vsub.s32 0, %v365
    %v367 = vrot.slane %v324, %v366
    %v369 = vadd.f32 %v347, %v367
    %v370 = vadd.f32 %v348, %v367
    %v371 = vadd.f32 %v349, %v367
    %v372 = vadd.f32 %v350, %v367
    %v373 = vadd.f32 %v351, %v367
    %v374 = vadd.f32 %v352, %v367
    %v375 = vadd.f32 %v353, %v367
    %v376 = vadd.f32 %v354, %v367
    %v377 = vadd.f32 %v355, %v367
    %v378 = vadd.f32 %v356, %v367
    %v379 = vadd.f32 %v357, %v367
    %v380 = vadd.f32 %v358, %v367
    %v381 = vadd.f32 %v359, %v367
    %v382 = vadd.f32 %v360, %v367
    %v383 = vadd.f32 %v361, %v367
    %v384 = vadd.f32 %v362, %v367
    %vm385 = vcmp.gt.f32.partialorder %v369, 0.0
    %vm386 = vcmp.gt.f32.partialorder %v370, 0.0
    %vm387 = vcmp.gt.f32.partialorder %v371, 0.0
    %vm388 = vcmp.gt.f32.partialorder %v372, 0.0
    %vm389 = vcmp.gt.f32.partialorder %v373, 0.0
    %vm390 = vcmp.gt.f32.partialorder %v374, 0.0
    %vm391 = vcmp.gt.f32.partialorder %v375, 0.0
    %vm392 = vcmp.gt.f32.partialorder %v376, 0.0
    %vm393 = vcmp.gt.f32.partialorder %v377, 0.0
    %vm394 = vcmp.gt.f32.partialorder %v378, 0.0
    %vm395 = vcmp.gt.f32.partialorder %v379, 0.0
    %vm396 = vcmp.gt.f32.partialorder %v380, 0.0
    %vm397 = vcmp.gt.f32.partialorder %v381, 0.0
    %vm398 = vcmp.gt.f32.partialorder %v382, 0.0
    %vm399 = vcmp.gt.f32.partialorder %v383, 0.0
    %vm400 = vcmp.gt.f32.partialorder %v384, 0.0
    %v401 = vmul.f32 %v369, 0.2
    %v402 = vmul.f32 %v370, 0.2
    %v403 = vmul.f32 %v371, 0.2
    %v404 = vmul.f32 %v372, 0.2
    %v405 = vmul.f32 %v373, 0.2
    %v406 = vmul.f32 %v374, 0.2
    %v407 = vmul.f32 %v375, 0.2
    %v408 = vmul.f32 %v376, 0.2
    %v409 = vmul.f32 %v377, 0.2
    %v410 = vmul.f32 %v378, 0.2
    %v411 = vmul.f32 %v379, 0.2
    %v412 = vmul.f32 %v380, 0.2
    %v413 = vmul.f32 %v381, 0.2
    %v414 = vmul.f32 %v382, 0.2
    %v415 = vmul.f32 %v383, 0.2
    %v416 = vmul.f32 %v384, 0.2
    %v417 = vsel %vm385, %v369, %v401
    %v418 = vsel %vm386, %v370, %v402
    %v419 = vsel %vm387, %v371, %v403
    %v420 = vsel %vm388, %v372, %v404
    %v421 = vsel %vm389, %v373, %v405
    %v422 = vsel %vm390, %v374, %v406
    %v423 = vsel %vm391, %v375, %v407
    %v424 = vsel %vm392, %v376, %v408
    %v425 = vsel %vm393, %v377, %v409
    %v426 = vsel %vm394, %v378, %v410
    %v427 = vsel %vm395, %v379, %v411
    %v428 = vsel %vm396, %v380, %v412
    %v429 = vsel %vm397, %v381, %v413
    %v430 = vsel %vm398, %v382, %v414
    %v431 = vsel %vm399, %v383, %v415
    %v432 = vsel %vm400, %v384, %v416
    %v433 = vpack.c.bf16 %v418, %v417
    %v434 = vpack.c.bf16 %v420, %v419
    %v435 = vpack.c.bf16 %v422, %v421
    %v436 = vpack.c.bf16 %v424, %v423
    %v437 = vpack.c.bf16 %v426, %v425
    %v438 = vpack.c.bf16 %v428, %v427
    %v439 = vpack.c.bf16 %v430, %v429
    %v440 = vpack.c.bf16 %v432, %v431
    %v449 = vunpack.c.l.b16 %v433
    %v450 = vunpack.c.h.b16 %v433
    %v451 = vunpack.c.l.b16 %v434
    %v452 = vunpack.c.h.b16 %v434
    %v453 = vunpack.c.l.b16 %v435
    %v454 = vunpack.c.h.b16 %v435
    %v455 = vunpack.c.l.b16 %v436
    %v456 = vunpack.c.h.b16 %v436
    %v457 = vunpack.c.l.b16 %v437
    %v458 = vunpack.c.h.b16 %v437
    %v459 = vunpack.c.l.b16 %v438
    %v460 = vunpack.c.h.b16 %v438
    %v461 = vunpack.c.l.b16 %v439
    %v462 = vunpack.c.h.b16 %v439
    %v463 = vunpack.c.l.b16 %v440
    %v464 = vunpack.c.h.b16 %v440
    %v465 = vpack.c.b16 %v449, %v449
    %v466 = vpack.c.b16 %v450, %v450
    %v467 = vpack.c.b16 %v451, %v451
    %v468 = vpack.c.b16 %v452, %v452
    %v469 = vpack.c.b16 %v453, %v453
    %v470 = vpack.c.b16 %v454, %v454
    %v471 = vpack.c.b16 %v455, %v455
    %v472 = vpack.c.b16 %v456, %v456
    %v473 = vpack.c.b16 %v457, %v457
    %v474 = vpack.c.b16 %v458, %v458
    %v475 = vpack.c.b16 %v459, %v459
    %v476 = vpack.c.b16 %v460, %v460
    %v477 = vpack.c.b16 %v461, %v461
    %v478 = vpack.c.b16 %v462, %v462
    %v479 = vpack.c.b16 %v463, %v463
    %v480 = vpack.c.b16 %v464, %v464
    %497 = vst [vmem:[%s4] sm:$0xf] %v465
    %498 = vst [vmem:[%s4 + $0x4] sm:$0xf] %v466
    %499 = vst [vmem:[%s4 + $0x8] sm:$0xf] %v467
    %500 = vst [vmem:[%s4 + $0xc] sm:$0xf] %v468
    %501 = vst [vmem:[%s4 + $0x10] sm:$0xf] %v469
    %502 = vst [vmem:[%s4 + $0x14] sm:$0xf] %v470
    %503 = vst [vmem:[%s4 + $0x18] sm:$0xf] %v471
    %504 = vst [vmem:[%s4 + $0x1c] sm:$0xf] %v472
    %505 = vst [vmem:[%s4 + $0x20] sm:$0xf] %v473
    %506 = vst [vmem:[%s4 + $0x24] sm:$0xf] %v474
    %507 = vst [vmem:[%s4 + $0x28] sm:$0xf] %v475
    %508 = vst [vmem:[%s4 + $0x2c] sm:$0xf] %v476
    %509 = vst [vmem:[%s4 + $0x30] sm:$0xf] %v477
    %510 = vst [vmem:[%s4 + $0x34] sm:$0xf] %v478
    %511 = vst [vmem:[%s4 + $0x38] sm:$0xf] %v479
    %512 = vst [vmem:[%s4 + $0x3c] sm:$0xf] %v480
  $region25: #{skip_encoder_forward.7} parent=0 // pred_fallthru
    _
  // Predicated region
  $region26: #{skip_encoder_forward.7} parent=0 // pred_check
    _
  $region27: #{skip_encoder_forward.7} parent=0 // pred_check_branch
    %514 = sbr.rel (0) target = $region29
  $region28: #{skip_encoder_forward.7} parent=0 // pred_region
    _
  $region29: #{skip_encoder_forward.7} parent=0 // pred_fallthru
    _
  // Predicated region
  $region30: #{skip_encoder_forward.7} parent=0 // pred_check
    _
  $region31: #{skip_encoder_forward.7} parent=0 // pred_check_branch
    %516 = sbr.rel (0) target = $region33
  $region32: #{skip_encoder_forward.7} parent=0 // pred_region
    _
  $region33: #{skip_encoder_forward.7} parent=0 // pred_fallthru
    _

// kernel: skip_encoder_forward.8
$region0: #{skip_encoder_forward.8}
  #allocation0 [shape = 'u32[]', space=smem, size = 0x4, offset = 0x4, fixed_abs, tag = 'smem constant byte address 0x4 - core index']
  #allocation1 [shape = 'u32[144,128]{1,0:T(1,128)}', space=vmem, size = 0x12000, scoped, tag = 'internal scratch']
  #allocation2 [shape = 'f32[1,128,128]{2,1,0:T(8,128)}', space=vmem, size = 0x10000, scoped, tag = 'scratch operand']
  #allocation3 [shape = 'f32[1,128]{1,0:T(1,128)}', space=vmem, size = 0x200, scoped, tag = 'scratch operand']
  #allocation4 [shape = 'f32[1,128]{1,0:T(1,128)}', space=vmem, size = 0x200, scoped, tag = 'scratch operand']
  %s0 = inlined_call_operand.vmem [shape: bf16[128,80], index: 0, kind: input, shape index: {}]
  %s1 = inlined_call_operand.vmem [shape: bf16[80,128], index: 1, kind: input, shape index: {}]
  %s2 = inlined_call_operand.vmem [shape: f32[1,128], index: 2, kind: input, shape index: {}]
  %s3 = inlined_call_operand.vmem [shape: f32[1,128], index: 3, kind: input, shape index: {}]
  %s4 = inlined_call_operand.vmem [shape: bf16[128,128], index: 4, kind: output, shape index: {}]
  %s5 = sld [smem:[#allocation0]]
  $region34: #{skip_encoder_forward.8} parent=0
    _
  %s7 = ssub.s32 1, %s5
  %s8 = scalar_select 0, %s7, %s5
  // Predicated region
  $region2: #{skip_encoder_forward.8} parent=0 // pred_check
    _
  $region3: #{skip_encoder_forward.8} parent=0 // pred_check_branch
    %10 = sbr.rel (0) target = $region5
  $region4: #{skip_encoder_forward.8} parent=0 // pred_region
    _
  $region5: #{skip_encoder_forward.8} parent=0 // pred_fallthru
    _
  // Predicated region
  $region6: #{skip_encoder_forward.8} parent=0 // pred_check
    _
  $region7: #{skip_encoder_forward.8} parent=0 // pred_check_branch
    %12 = sbr.rel (0) target = $region9
  $region8: #{skip_encoder_forward.8} parent=0 // pred_region
    _
  $region9: #{skip_encoder_forward.8} parent=0 // pred_fallthru
    _
  // Predicated region
  $region10: #{skip_encoder_forward.8} parent=0 // pred_check
    _
  $region11: #{skip_encoder_forward.8} parent=0 // pred_check_branch
    %14 = sbr.rel (0) target = $region13
  $region12: #{skip_encoder_forward.8} parent=0 // pred_region
    _
  $region13: #{skip_encoder_forward.8} parent=0 // pred_fallthru
    _
  // Predicated region
  $region14: #{skip_encoder_forward.8} parent=0 // pred_check
    _
  $region15: #{skip_encoder_forward.8} parent=0 // pred_check_branch
    %16 = sbr.rel (0) target = $region17
  $region16: #{skip_encoder_forward.8} parent=0 // pred_region
    _
  $region17: #{skip_encoder_forward.8} parent=0 // pred_fallthru
    _
  %p18 = scmp.eq.s32.totalorder 0, 0
  // Predicated region
  $region18: #{skip_encoder_forward.8} parent=0 // pred_check
    %p19 = pneg %p18
  $region19: #{skip_encoder_forward.8} parent=0 // pred_check_branch
    %21 = sbr.rel (%p19) target = $region21
  $region20: #{skip_encoder_forward.8} parent=0 // pred_region
    %22 = vst [vmem:[#allocation3] sm:$0x1] 0.0
    %23 = vst [vmem:[#allocation4] sm:$0x1] 0.0
  $region21: #{skip_encoder_forward.8} parent=0 // pred_fallthru
    _
  %v24 = vld [vmem:[%s0] sm:$0xf]
  %v25 = vld [vmem:[%s0 + $0x4] sm:$0xf]
  %v26 = vld [vmem:[%s0 + $0x8] sm:$0xf]
  %v27 = vld [vmem:[%s0 + $0xc] sm:$0xf]
  %v28 = vld [vmem:[%s0 + $0x10] sm:$0xf]
  %v29 = vld [vmem:[%s0 + $0x14] sm:$0xf]
  %v30 = vld [vmem:[%s0 + $0x18] sm:$0xf]
  %v31 = vld [vmem:[%s0 + $0x1c] sm:$0xf]
  %v32 = vld [vmem:[%s0 + $0x20] sm:$0xf]
  %v33 = vld [vmem:[%s0 + $0x24] sm:$0xf]
  %v34 = vld [vmem:[%s0 + $0x28] sm:$0xf]
  %v35 = vld [vmem:[%s0 + $0x2c] sm:$0xf]
  %v36 = vld [vmem:[%s0 + $0x30] sm:$0xf]
  %v37 = vld [vmem:[%s0 + $0x34] sm:$0xf]
  %v38 = vld [vmem:[%s0 + $0x38] sm:$0xf]
  %v39 = vld [vmem:[%s0 + $0x3c] sm:$0xf]
  %v40 = vld [vmem:[%s1] sm:$0xf]
  %v41 = vld [vmem:[%s1 + $0x4] sm:$0xf]
  %v42 = vld [vmem:[%s1 + $0x8] sm:$0xf]
  %v43 = vld [vmem:[%s1 + $0xc] sm:$0xf]
  %v44 = vld [vmem:[%s1 + $0x10] sm:$0xf]
  %v45 = vld [vmem:[%s1 + $0x14] sm:$0xf]
  %v46 = vld [vmem:[%s1 + $0x18] sm:$0xf]
  %v47 = vld [vmem:[%s1 + $0x1c] sm:$0xf]
  %v48 = vld [vmem:[%s1 + $0x20] sm:$0xf]
  %v49 = vld [vmem:[%s1 + $0x24] sm:$0xf]
  %v66 = vunpack.c.l.b16 %v24
  %v67 = vunpack.c.l.b16 %v25
  %v68 = vunpack.c.l.b16 %v26
  %v69 = vunpack.c.l.b16 %v27
  %v70 = vunpack.c.l.b16 %v28
  %v71 = vunpack.c.l.b16 %v29
  %v72 = vunpack.c.l.b16 %v30
  %v73 = vunpack.c.l.b16 %v31
  %v74 = vunpack.c.l.b16 %v32
  %v75 = vunpack.c.l.b16 %v33
  %v76 = vunpack.c.l.b16 %v34
  %v77 = vunpack.c.l.b16 %v35
  %v78 = vunpack.c.l.b16 %v36
  %v79 = vunpack.c.l.b16 %v37
  %v80 = vunpack.c.l.b16 %v38
  %v81 = vunpack.c.l.b16 %v39
  %v82 = vpack.c.b16 %v67, %v66
  %v83 = vpack.c.b16 %v69, %v68
  %v84 = vpack.c.b16 %v71, %v70
  %v85 = vpack.c.b16 %v73, %v72
  %v86 = vpack.c.b16 %v75, %v74
  %v87 = vpack.c.b16 %v77, %v76
  %v88 = vpack.c.b16 %v79, %v78
  %v89 = vpack.c.b16 %v81, %v80
  %v100 = vunpack.c.l.b16 %v40
  %v101 = vunpack.c.l.b16 %v41
  %v102 = vunpack.c.l.b16 %v42
  %v103 = vunpack.c.l.b16 %v43
  %v104 = vunpack.c.l.b16 %v44
  %v105 = vunpack.c.l.b16 %v45
  %v106 = vunpack.c.l.b16 %v46
  %v107 = vunpack.c.l.b16 %v47
  %v108 = vunpack.c.l.b16 %v48
  %v109 = vunpack.c.l.b16 %v49
  %v110 = vpack.c.b16 %v101, %v100
  %v111 = vpack.c.b16 %v103, %v102
  %v112 = vpack.c.b16 %v105, %v104
  %v113 = vpack.c.b16 %v107, %v106
  %v114 = vpack.c.b16 %v109, %v108
  %vm120 = vcmask 654336
  %v122 = vsel %vm120, %v82, 0
  %v125 = vsel %vm120, %v83, 0
  %v128 = vsel %vm120, %v84, 0
  %v131 = vsel %vm120, %v85, 0
  %v134 = vsel %vm120, %v86, 0
  %v137 = vsel %vm120, %v87, 0
  %v140 = vsel %vm120, %v88, 0
  %v143 = vsel %vm120, %v89, 0
  %145 = vmatprep.subr.bf16.mxu0 0
  %146 = vmatpush1.bf16.msra.mxu0 0
  %147 = vmatprep.subr.bf16.mxu0 0
  %148 = vmatpush1.bf16.msra.mxu0 0
  %149 = vmatprep.subr.bf16.mxu0 0
  %150 = vmatpush1.bf16.msra.mxu0 0
  %151 = vmatprep.subr.bf16.mxu0 0
  %152 = vmatpush1.bf16.msra.mxu0 %v114
  %153 = vmatprep.subr.bf16.mxu0 0
  %154 = vmatpush1.bf16.msra.mxu0 %v113
  %155 = vmatprep.subr.bf16.mxu0 0
  %156 = vmatpush1.bf16.msra.mxu0 %v112
  %157 = vmatprep.subr.bf16.mxu0 0
  %158 = vmatpush1.bf16.msra.mxu0 %v111
  %159 = vmatprep.subr.bf16.mxu0 0
  %160 = vmatpush1.bf16.msra.mxu0 %v110
  %161 = vmatprep.subr.bf16.mxu0 0
  %162 = vmatpush2.bf16.msra.mxu0 0
  %163 = vmatprep.subr.bf16.mxu0 0
  %164 = vmatpush2.bf16.msra.mxu0 0
  %165 = vmatprep.subr.bf16.mxu0 0
  %166 = vmatpush2.bf16.msra.mxu0 0
  %167 = vmatprep.subr.bf16.mxu0 0
  %168 = vmatpush2.bf16.msra.mxu0 0
  %169 = vmatprep.subr.bf16.mxu0 0
  %170 = vmatpush2.bf16.msra.mxu0 0
  %171 = vmatprep.subr.bf16.mxu0 0
  %172 = vmatpush2.bf16.msra.mxu0 0
  %173 = vmatprep.subr.bf16.mxu0 0
  %174 = vmatpush2.bf16.msra.mxu0 0
  %175 = vmatprep.subr.bf16.mxu0 0
  %176 = vmatpush2.bf16.msra.mxu0 0
  %177 = vmatprep.mubr.bf16.mxu0 0
  %178 = vmatmul.mubr.bf16.gmra.mxu0 %v122
  %v179 = vpop.f32.mrf.mxu0
  %v180 = vadd.f32 0.0, %v179
  %v181 = vpop.f32.mrf.mxu0
  %v182 = vpop.f32.mrf.mxu0
  %v183 = vadd.f32 0.0, %v182
  %v184 = vpop.f32.mrf.mxu0
  %185 = vmatprep.mubr.bf16.mxu0 0
  %186 = vmatmul.mubr.bf16.gmra.mxu0 %v125
  %v187 = vpop.f32.mrf.mxu0
  %v188 = vadd.f32 0.0, %v187
  %v189 = vpop.f32.mrf.mxu0
  %v190 = vpop.f32.mrf.mxu0
  %v191 = vadd.f32 0.0, %v190
  %v192 = vpop.f32.mrf.mxu0
  %193 = vmatprep.mubr.bf16.mxu0 0
  %194 = vmatmul.mubr.bf16.gmra.mxu0 %v128
  %v195 = vpop.f32.mrf.mxu0
  %v196 = vadd.f32 0.0, %v195
  %v197 = vpop.f32.mrf.mxu0
  %v198 = vpop.f32.mrf.mxu0
  %v199 = vadd.f32 0.0, %v198
  %v200 = vpop.f32.mrf.mxu0
  %201 = vmatprep.mubr.bf16.mxu0 0
  %202 = vmatmul.mubr.bf16.gmra.mxu0 %v131
  %v203 = vpop.f32.mrf.mxu0
  %v204 = vadd.f32 0.0, %v203
  %v205 = vpop.f32.mrf.mxu0
  %v206 = vpop.f32.mrf.mxu0
  %v207 = vadd.f32 0.0, %v206
  %v208 = vpop.f32.mrf.mxu0
  %209 = vmatprep.mubr.bf16.mxu0 0
  %210 = vmatmul.mubr.bf16.gmra.mxu0 %v134
  %v211 = vpop.f32.mrf.mxu0
  %v212 = vadd.f32 0.0, %v211
  %v213 = vpop.f32.mrf.mxu0
  %v214 = vpop.f32.mrf.mxu0
  %v215 = vadd.f32 0.0, %v214
  %v216 = vpop.f32.mrf.mxu0
  %217 = vmatprep.mubr.bf16.mxu0 0
  %218 = vmatmul.mubr.bf16.gmra.mxu0 %v137
  %v219 = vpop.f32.mrf.mxu0
  %v220 = vadd.f32 0.0, %v219
  %v221 = vpop.f32.mrf.mxu0
  %v222 = vpop.f32.mrf.mxu0
  %v223 = vadd.f32 0.0, %v222
  %v224 = vpop.f32.mrf.mxu0
  %225 = vmatprep.mubr.bf16.mxu0 0
  %226 = vmatmul.mubr.bf16.gmra.mxu0 %v140
  %v227 = vpop.f32.mrf.mxu0
  %v228 = vadd.f32 0.0, %v227
  %v229 = vpop.f32.mrf.mxu0
  %v230 = vpop.f32.mrf.mxu0
  %v231 = vadd.f32 0.0, %v230
  %v232 = vpop.f32.mrf.mxu0
  %233 = vmatprep.mubr.bf16.mxu0 0
  %234 = vmatmul.mubr.bf16.gmra.mxu0 %v143
  %v235 = vpop.f32.mrf.mxu0
  %v236 = vadd.f32 0.0, %v235
  %v237 = vpop.f32.mrf.mxu0
  %v238 = vpop.f32.mrf.mxu0
  %v239 = vadd.f32 0.0, %v238
  %v240 = vpop.f32.mrf.mxu0
  %241 = vdwg.mxu0
  %s242 = smul.u32 0, 128
  %s243 = scalar_lea.vmem [#allocation2], %s242
  %244 = vst [vmem:[%s243] sm:$0xff] %v180
  %245 = vst [vmem:[%s243 + $0x8] sm:$0xff] %v183
  %246 = vst [vmem:[%s243 + $0x10] sm:$0xff] %v188
  %247 = vst [vmem:[%s243 + $0x18] sm:$0xff] %v191
  %248 = vst [vmem:[%s243 + $0x20] sm:$0xff] %v196
  %249 = vst [vmem:[%s243 + $0x28] sm:$0xff] %v199
  %250 = vst [vmem:[%s243 + $0x30] sm:$0xff] %v204
  %251 = vst [vmem:[%s243 + $0x38] sm:$0xff] %v207
  %252 = vst [vmem:[%s243 + $0x40] sm:$0xff] %v212
  %253 = vst [vmem:[%s243 + $0x48] sm:$0xff] %v215
  %254 = vst [vmem:[%s243 + $0x50] sm:$0xff] %v220
  %255 = vst [vmem:[%s243 + $0x58] sm:$0xff] %v223
  %256 = vst [vmem:[%s243 + $0x60] sm:$0xff] %v228
  %257 = vst [vmem:[%s243 + $0x68] sm:$0xff] %v231
  %258 = vst [vmem:[%s243 + $0x70] sm:$0xff] %v236
  %259 = vst [vmem:[%s243 + $0x78] sm:$0xff] %v239
  %v260 = vld [vmem:[#allocation3] sm:$0x1]
  %v261 = vadd.f32 %v180, %v183
  %v262 = vadd.f32 %v261, %v188
  %v263 = vadd.f32 %v262, %v191
  %v264 = vadd.f32 %v263, %v196
  %v265 = vadd.f32 %v264, %v199
  %v266 = vadd.f32 %v265, %v204
  %v267 = vadd.f32 %v266, %v207
  %v268 = vadd.f32 %v267, %v212
  %v269 = vadd.f32 %v268, %v215
  %v270 = vadd.f32 %v269, %v220
  %v271 = vadd.f32 %v270, %v223
  %v272 = vadd.f32 %v271, %v228
  %v273 = vadd.f32 %v272, %v231
  %v274 = vadd.f32 %v273, %v236
  %v275 = vadd.f32 %v274, %v239
  %v276 = vrot.slane %v275, 4
  %v277 = vadd.f32 %v275, %v276
  %v278 = vrot.slane %v277, 2
  %v279 = vadd.f32 %v277, %v278
  %v280 = vrot.slane %v279, 1
  %v281 = vadd.f32 %v279, %v280
  %v282 = vadd.f32 %v260, %v281
  %283 = vst [vmem:[#allocation3] sm:$0x1] %v282
  %v284 = vld [vmem:[#allocation4] sm:$0x1]
  %v285 = vmul.f32 %v180, %v180
  %v286 = vmul.f32 %v183, %v183
  %v287 = vmul.f32 %v188, %v188
  %v288 = vmul.f32 %v191, %v191
  %v289 = vmul.f32 %v196, %v196
  %v290 = vmul.f32 %v199, %v199
  %v291 = vmul.f32 %v204, %v204
  %v292 = vmul.f32 %v207, %v207
  %v293 = vmul.f32 %v212, %v212
  %v294 = vmul.f32 %v215, %v215
  %v295 = vmul.f32 %v220, %v220
  %v296 = vmul.f32 %v223, %v223
  %v297 = vmul.f32 %v228, %v228
  %v298 = vmul.f32 %v231, %v231
  %v299 = vmul.f32 %v236, %v236
  %v300 = vmul.f32 %v239, %v239
  %v301 = vadd.f32 %v285, %v286
  %v302 = vadd.f32 %v301, %v287
  %v303 = vadd.f32 %v302, %v288
  %v304 = vadd.f32 %v303, %v289
  %v305 = vadd.f32 %v304, %v290
  %v306 = vadd.f32 %v305, %v291
  %v307 = vadd.f32 %v306, %v292
  %v308 = vadd.f32 %v307, %v293
  %v309 = vadd.f32 %v308, %v294
  %v310 = vadd.f32 %v309, %v295
  %v311 = vadd.f32 %v310, %v296
  %v312 = vadd.f32 %v311, %v297
  %v313 = vadd.f32 %v312, %v298
  %v314 = vadd.f32 %v313, %v299
  %v315 = vadd.f32 %v314, %v300
  %v316 = vrot.slane %v315, 4
  %v317 = vadd.f32 %v315, %v316
  %v318 = vrot.slane %v317, 2
  %v319 = vadd.f32 %v317, %v318
  %v320 = vrot.slane %v319, 1
  %v321 = vadd.f32 %v319, %v320
  %v322 = vadd.f32 %v284, %v321
  %323 = vst [vmem:[#allocation4] sm:$0x1] %v322
  // Predicated region
  $region22: #{skip_encoder_forward.8} parent=0 // pred_check
    %p324 = pneg %p18
  $region23: #{skip_encoder_forward.8} parent=0 // pred_check_branch
    %326 = sbr.rel (%p324) target = $region25
  $region24: #{skip_encoder_forward.8} parent=0 // pred_region
    %v327 = vld [vmem:[#allocation3] sm:$0x1]
    %v328 = vmul.f32 %v327, 0.0078125
    %v329 = vld [vmem:[#allocation4] sm:$0x1]
    %v330 = vmul.f32 %v329, 0.0078125
    %v331 = vmul.f32 %v328, %v328
    %v332 = vsub.f32 %v330, %v331
    %v333 = vmax.f32 %v332, 0.0
    %v334 = vld [vmem:[%s2] sm:$0x1]
    %v335 = vadd.f32 %v333, 1e-05
    %v336 = vrsqrt.pop %v335
    %v337 = vmul.f32 %v334, %v336
    %v338 = vld [vmem:[%s3] sm:$0x1]
    %v339 = vmul.f32 %v328, %v337
    %v340 = vsub.f32 %v338, %v339
    %v341 = vld [vmem:[#allocation2] sm:$0xff]
    %v342 = vld [vmem:[#allocation2 + $0x8] sm:$0xff]
    %v343 = vld [vmem:[#allocation2 + $0x10] sm:$0xff]
    %v344 = vld [vmem:[#allocation2 + $0x18] sm:$0xff]
    %v345 = vld [vmem:[#allocation2 + $0x20] sm:$0xff]
    %v346 = vld [vmem:[#allocation2 + $0x28] sm:$0xff]
    %v347 = vld [vmem:[#allocation2 + $0x30] sm:$0xff]
    %v348 = vld [vmem:[#allocation2 + $0x38] sm:$0xff]
    %v349 = vld [vmem:[#allocation2 + $0x40] sm:$0xff]
    %v350 = vld [vmem:[#allocation2 + $0x48] sm:$0xff]
    %v351 = vld [vmem:[#allocation2 + $0x50] sm:$0xff]
    %v352 = vld [vmem:[#allocation2 + $0x58] sm:$0xff]
    %v353 = vld [vmem:[#allocation2 + $0x60] sm:$0xff]
    %v354 = vld [vmem:[#allocation2 + $0x68] sm:$0xff]
    %v355 = vld [vmem:[#allocation2 + $0x70] sm:$0xff]
    %v356 = vld [vmem:[#allocation2 + $0x78] sm:$0xff]
    %v358 = vlaneseq
    %v359 = vshrl.u32 %v358, 7
    %v360 = vsub.s32 0, %v359
    %v361 = vrot.slane %v337, %v360
    %v363 = vmul.f32 %v341, %v361
    %v364 = vmul.f32 %v342, %v361
    %v365 = vmul.f32 %v343, %v361
    %v366 = vmul.f32 %v344, %v361
    %v367 = vmul.f32 %v345, %v361
    %v368 = vmul.f32 %v346, %v361
    %v369 = vmul.f32 %v347, %v361
    %v370 = vmul.f32 %v348, %v361
    %v371 = vmul.f32 %v349, %v361
    %v372 = vmul.f32 %v350, %v361
    %v373 = vmul.f32 %v351, %v361
    %v374 = vmul.f32 %v352, %v361
    %v375 = vmul.f32 %v353, %v361
    %v376 = vmul.f32 %v354, %v361
    %v377 = vmul.f32 %v355, %v361
    %v378 = vmul.f32 %v356, %v361
    %v380 = vlaneseq
    %v381 = vshrl.u32 %v380, 7
    %v382 = vsub.s32 0, %v381
    %v383 = vrot.slane %v340, %v382
    %v385 = vadd.f32 %v363, %v383
    %v386 = vadd.f32 %v364, %v383
    %v387 = vadd.f32 %v365, %v383
    %v388 = vadd.f32 %v366, %v383
    %v389 = vadd.f32 %v367, %v383
    %v390 = vadd.f32 %v368, %v383
    %v391 = vadd.f32 %v369, %v383
    %v392 = vadd.f32 %v370, %v383
    %v393 = vadd.f32 %v371, %v383
    %v394 = vadd.f32 %v372, %v383
    %v395 = vadd.f32 %v373, %v383
    %v396 = vadd.f32 %v374, %v383
    %v397 = vadd.f32 %v375, %v383
    %v398 = vadd.f32 %v376, %v383
    %v399 = vadd.f32 %v377, %v383
    %v400 = vadd.f32 %v378, %v383
    %vm401 = vcmp.gt.f32.partialorder %v385, 0.0
    %vm402 = vcmp.gt.f32.partialorder %v386, 0.0
    %vm403 = vcmp.gt.f32.partialorder %v387, 0.0
    %vm404 = vcmp.gt.f32.partialorder %v388, 0.0
    %vm405 = vcmp.gt.f32.partialorder %v389, 0.0
    %vm406 = vcmp.gt.f32.partialorder %v390, 0.0
    %vm407 = vcmp.gt.f32.partialorder %v391, 0.0
    %vm408 = vcmp.gt.f32.partialorder %v392, 0.0
    %vm409 = vcmp.gt.f32.partialorder %v393, 0.0
    %vm410 = vcmp.gt.f32.partialorder %v394, 0.0
    %vm411 = vcmp.gt.f32.partialorder %v395, 0.0
    %vm412 = vcmp.gt.f32.partialorder %v396, 0.0
    %vm413 = vcmp.gt.f32.partialorder %v397, 0.0
    %vm414 = vcmp.gt.f32.partialorder %v398, 0.0
    %vm415 = vcmp.gt.f32.partialorder %v399, 0.0
    %vm416 = vcmp.gt.f32.partialorder %v400, 0.0
    %v417 = vmul.f32 %v385, 0.2
    %v418 = vmul.f32 %v386, 0.2
    %v419 = vmul.f32 %v387, 0.2
    %v420 = vmul.f32 %v388, 0.2
    %v421 = vmul.f32 %v389, 0.2
    %v422 = vmul.f32 %v390, 0.2
    %v423 = vmul.f32 %v391, 0.2
    %v424 = vmul.f32 %v392, 0.2
    %v425 = vmul.f32 %v393, 0.2
    %v426 = vmul.f32 %v394, 0.2
    %v427 = vmul.f32 %v395, 0.2
    %v428 = vmul.f32 %v396, 0.2
    %v429 = vmul.f32 %v397, 0.2
    %v430 = vmul.f32 %v398, 0.2
    %v431 = vmul.f32 %v399, 0.2
    %v432 = vmul.f32 %v400, 0.2
    %v433 = vsel %vm401, %v385, %v417
    %v434 = vsel %vm402, %v386, %v418
    %v435 = vsel %vm403, %v387, %v419
    %v436 = vsel %vm404, %v388, %v420
    %v437 = vsel %vm405, %v389, %v421
    %v438 = vsel %vm406, %v390, %v422
    %v439 = vsel %vm407, %v391, %v423
    %v440 = vsel %vm408, %v392, %v424
    %v441 = vsel %vm409, %v393, %v425
    %v442 = vsel %vm410, %v394, %v426
    %v443 = vsel %vm411, %v395, %v427
    %v444 = vsel %vm412, %v396, %v428
    %v445 = vsel %vm413, %v397, %v429
    %v446 = vsel %vm414, %v398, %v430
    %v447 = vsel %vm415, %v399, %v431
    %v448 = vsel %vm416, %v400, %v432
    %v449 = vpack.c.bf16 %v434, %v433
    %v450 = vpack.c.bf16 %v436, %v435
    %v451 = vpack.c.bf16 %v438, %v437
    %v452 = vpack.c.bf16 %v440, %v439
    %v453 = vpack.c.bf16 %v442, %v441
    %v454 = vpack.c.bf16 %v444, %v443
    %v455 = vpack.c.bf16 %v446, %v445
    %v456 = vpack.c.bf16 %v448, %v447
    %v465 = vunpack.c.l.b16 %v449
    %v466 = vunpack.c.h.b16 %v449
    %v467 = vunpack.c.l.b16 %v450
    %v468 = vunpack.c.h.b16 %v450
    %v469 = vunpack.c.l.b16 %v451
    %v470 = vunpack.c.h.b16 %v451
    %v471 = vunpack.c.l.b16 %v452
    %v472 = vunpack.c.h.b16 %v452
    %v473 = vunpack.c.l.b16 %v453
    %v474 = vunpack.c.h.b16 %v453
    %v475 = vunpack.c.l.b16 %v454
    %v476 = vunpack.c.h.b16 %v454
    %v477 = vunpack.c.l.b16 %v455
    %v478 = vunpack.c.h.b16 %v455
    %v479 = vunpack.c.l.b16 %v456
    %v480 = vunpack.c.h.b16 %v456
    %v481 = vpack.c.b16 %v465, %v465
    %v482 = vpack.c.b16 %v466, %v466
    %v483 = vpack.c.b16 %v467, %v467
    %v484 = vpack.c.b16 %v468, %v468
    %v485 = vpack.c.b16 %v469, %v469
    %v486 = vpack.c.b16 %v470, %v470
    %v487 = vpack.c.b16 %v471, %v471
    %v488 = vpack.c.b16 %v472, %v472
    %v489 = vpack.c.b16 %v473, %v473
    %v490 = vpack.c.b16 %v474, %v474
    %v491 = vpack.c.b16 %v475, %v475
    %v492 = vpack.c.b16 %v476, %v476
    %v493 = vpack.c.b16 %v477, %v477
    %v494 = vpack.c.b16 %v478, %v478
    %v495 = vpack.c.b16 %v479, %v479
    %v496 = vpack.c.b16 %v480, %v480
    %513 = vst [vmem:[%s4] sm:$0xf] %v481
    %514 = vst [vmem:[%s4 + $0x4] sm:$0xf] %v482
    %515 = vst [vmem:[%s4 + $0x8] sm:$0xf] %v483
    %516 = vst [vmem:[%s4 + $0xc] sm:$0xf] %v484
    %517 = vst [vmem:[%s4 + $0x10] sm:$0xf] %v485
    %518 = vst [vmem:[%s4 + $0x14] sm:$0xf] %v486
    %519 = vst [vmem:[%s4 + $0x18] sm:$0xf] %v487
    %520 = vst [vmem:[%s4 + $0x1c] sm:$0xf] %v488
    %521 = vst [vmem:[%s4 + $0x20] sm:$0xf] %v489
    %522 = vst [vmem:[%s4 + $0x24] sm:$0xf] %v490
    %523 = vst [vmem:[%s4 + $0x28] sm:$0xf] %v491
    %524 = vst [vmem:[%s4 + $0x2c] sm:$0xf] %v492
    %525 = vst [vmem:[%s4 + $0x30] sm:$0xf] %v493
    %526 = vst [vmem:[%s4 + $0x34] sm:$0xf] %v494
    %527 = vst [vmem:[%s4 + $0x38] sm:$0xf] %v495
    %528 = vst [vmem:[%s4 + $0x3c] sm:$0xf] %v496
  $region25: #{skip_encoder_forward.8} parent=0 // pred_fallthru
    _
  // Predicated region
  $region26: #{skip_encoder_forward.8} parent=0 // pred_check
    _
  $region27: #{skip_encoder_forward.8} parent=0 // pred_check_branch
    %530 = sbr.rel (0) target = $region29
  $region28: #{skip_encoder_forward.8} parent=0 // pred_region
    _
  $region29: #{skip_encoder_forward.8} parent=0 // pred_fallthru
    _
  // Predicated region
  $region30: #{skip_encoder_forward.8} parent=0 // pred_check
    _
  $region31: #{skip_encoder_forward.8} parent=0 // pred_check_branch
    %532 = sbr.rel (0) target = $region33
  $region32: #{skip_encoder_forward.8} parent=0 // pred_region
    _
  $region33: #{skip_encoder_forward.8} parent=0 // pred_fallthru
    _

// kernel: skip_encoder_forward.10
$region0: #{skip_encoder_forward.10}
  #allocation0 [shape = 'u32[]', space=smem, size = 0x4, offset = 0x4, fixed_abs, tag = 'smem constant byte address 0x4 - core index']
  #allocation1 [shape = 'u32[144,128]{1,0:T(1,128)}', space=vmem, size = 0x12000, scoped, tag = 'internal scratch']
  #allocation2 [shape = 'f32[1,32,128]{2,1,0:T(8,128)}', space=vmem, size = 0x4000, scoped, tag = 'scratch operand']
  #allocation3 [shape = 'f32[1,128]{1,0:T(1,128)}', space=vmem, size = 0x200, scoped, tag = 'scratch operand']
  #allocation4 [shape = 'f32[1,128]{1,0:T(1,128)}', space=vmem, size = 0x200, scoped, tag = 'scratch operand']
  %s0 = inlined_call_operand.vmem [shape: bf16[32,80], index: 0, kind: input, shape index: {}]
  %s1 = inlined_call_operand.vmem [shape: bf16[80,128], index: 1, kind: input, shape index: {}]
  %s2 = inlined_call_operand.vmem [shape: f32[1,128], index: 2, kind: input, shape index: {}]
  %s3 = inlined_call_operand.vmem [shape: f32[1,128], index: 3, kind: input, shape index: {}]
  %s4 = inlined_call_operand.vmem [shape: bf16[32,128], index: 4, kind: output, shape index: {}]
  %s5 = sld [smem:[#allocation0]]
  $region34: #{skip_encoder_forward.10} parent=0
    _
  %s7 = ssub.s32 1, %s5
  %s8 = scalar_select 0, %s7, %s5
  // Predicated region
  $region2: #{skip_encoder_forward.10} parent=0 // pred_check
    _
  $region3: #{skip_encoder_forward.10} parent=0 // pred_check_branch
    %10 = sbr.rel (0) target = $region5
  $region4: #{skip_encoder_forward.10} parent=0 // pred_region
    _
  $region5: #{skip_encoder_forward.10} parent=0 // pred_fallthru
    _
  // Predicated region
  $region6: #{skip_encoder_forward.10} parent=0 // pred_check
    _
  $region7: #{skip_encoder_forward.10} parent=0 // pred_check_branch
    %12 = sbr.rel (0) target = $region9
  $region8: #{skip_encoder_forward.10} parent=0 // pred_region
    _
  $region9: #{skip_encoder_forward.10} parent=0 // pred_fallthru
    _
  // Predicated region
  $region10: #{skip_encoder_forward.10} parent=0 // pred_check
    _
  $region11: #{skip_encoder_forward.10} parent=0 // pred_check_branch
    %14 = sbr.rel (0) target = $region13
  $region12: #{skip_encoder_forward.10} parent=0 // pred_region
    _
  $region13: #{skip_encoder_forward.10} parent=0 // pred_fallthru
    _
  // Predicated region
  $region14: #{skip_encoder_forward.10} parent=0 // pred_check
    _
  $region15: #{skip_encoder_forward.10} parent=0 // pred_check_branch
    %16 = sbr.rel (0) target = $region17
  $region16: #{skip_encoder_forward.10} parent=0 // pred_region
    _
  $region17: #{skip_encoder_forward.10} parent=0 // pred_fallthru
    _
  %p18 = scmp.eq.s32.totalorder 0, 0
  // Predicated region
  $region18: #{skip_encoder_forward.10} parent=0 // pred_check
    %p19 = pneg %p18
  $region19: #{skip_encoder_forward.10} parent=0 // pred_check_branch
    %21 = sbr.rel (%p19) target = $region21
  $region20: #{skip_encoder_forward.10} parent=0 // pred_region
    %22 = vst [vmem:[#allocation3] sm:$0x1] 0.0
    %23 = vst [vmem:[#allocation4] sm:$0x1] 0.0
  $region21: #{skip_encoder_forward.10} parent=0 // pred_fallthru
    _
  %v24 = vld [vmem:[%s0] sm:$0xf]
  %v25 = vld [vmem:[%s0 + $0x4] sm:$0xf]
  %v26 = vld [vmem:[%s0 + $0x8] sm:$0xf]
  %v27 = vld [vmem:[%s0 + $0xc] sm:$0xf]
  %v28 = vld [vmem:[%s1] sm:$0xf]
  %v29 = vld [vmem:[%s1 + $0x4] sm:$0xf]
  %v30 = vld [vmem:[%s1 + $0x8] sm:$0xf]
  %v31 = vld [vmem:[%s1 + $0xc] sm:$0xf]
  %v32 = vld [vmem:[%s1 + $0x10] sm:$0xf]
  %v33 = vld [vmem:[%s1 + $0x14] sm:$0xf]
  %v34 = vld [vmem:[%s1 + $0x18] sm:$0xf]
  %v35 = vld [vmem:[%s1 + $0x1c] sm:$0xf]
  %v36 = vld [vmem:[%s1 + $0x20] sm:$0xf]
  %v37 = vld [vmem:[%s1 + $0x24] sm:$0xf]
  %v42 = vunpack.c.l.b16 %v24
  %v43 = vunpack.c.l.b16 %v25
  %v44 = vunpack.c.l.b16 %v26
  %v45 = vunpack.c.l.b16 %v27
  %v46 = vpack.c.b16 %v43, %v42
  %v47 = vpack.c.b16 %v45, %v44
  %v58 = vunpack.c.l.b16 %v28
  %v59 = vunpack.c.l.b16 %v29
  %v60 = vunpack.c.l.b16 %v30
  %v61 = vunpack.c.l.b16 %v31
  %v62 = vunpack.c.l.b16 %v32
  %v63 = vunpack.c.l.b16 %v33
  %v64 = vunpack.c.l.b16 %v34
  %v65 = vunpack.c.l.b16 %v35
  %v66 = vunpack.c.l.b16 %v36
  %v67 = vunpack.c.l.b16 %v37
  %v68 = vpack.c.b16 %v59, %v58
  %v69 = vpack.c.b16 %v61, %v60
  %v70 = vpack.c.b16 %v63, %v62
  %v71 = vpack.c.b16 %v65, %v64
  %v72 = vpack.c.b16 %v67, %v66
  %vm78 = vcmask 654336
  %v80 = vsel %vm78, %v46, 0
  %v83 = vsel %vm78, %v47, 0
  %85 = vmatprep.subr.bf16.mxu0 0
  %86 = vmatpush1.bf16.msra.mxu0 0
  %87 = vmatprep.subr.bf16.mxu0 0
  %88 = vmatpush1.bf16.msra.mxu0 0
  %89 = vmatprep.subr.bf16.mxu0 0
  %90 = vmatpush1.bf16.msra.mxu0 0
  %91 = vmatprep.subr.bf16.mxu0 0
  %92 = vmatpush1.bf16.msra.mxu0 %v72
  %93 = vmatprep.subr.bf16.mxu0 0
  %94 = vmatpush1.bf16.msra.mxu0 %v71
  %95 = vmatprep.subr.bf16.mxu0 0
  %96 = vmatpush1.bf16.msra.mxu0 %v70
  %97 = vmatprep.subr.bf16.mxu0 0
  %98 = vmatpush1.bf16.msra.mxu0 %v69
  %99 = vmatprep.subr.bf16.mxu0 0
  %100 = vmatpush1.bf16.msra.mxu0 %v68
  %101 = vmatprep.subr.bf16.mxu0 0
  %102 = vmatpush2.bf16.msra.mxu0 0
  %103 = vmatprep.subr.bf16.mxu0 0
  %104 = vmatpush2.bf16.msra.mxu0 0
  %105 = vmatprep.subr.bf16.mxu0 0
  %106 = vmatpush2.bf16.msra.mxu0 0
  %107 = vmatprep.subr.bf16.mxu0 0
  %108 = vmatpush2.bf16.msra.mxu0 0
  %109 = vmatprep.subr.bf16.mxu0 0
  %110 = vmatpush2.bf16.msra.mxu0 0
  %111 = vmatprep.subr.bf16.mxu0 0
  %112 = vmatpush2.bf16.msra.mxu0 0
  %113 = vmatprep.subr.bf16.mxu0 0
  %114 = vmatpush2.bf16.msra.mxu0 0
  %115 = vmatprep.subr.bf16.mxu0 0
  %116 = vmatpush2.bf16.msra.mxu0 0
  %117 = vmatprep.mubr.bf16.mxu0 0
  %118 = vmatmul.mubr.bf16.gmra.mxu0 %v80
  %v119 = vpop.f32.mrf.mxu0
  %v120 = vadd.f32 0.0, %v119
  %v121 = vpop.f32.mrf.mxu0
  %v122 = vpop.f32.mrf.mxu0
  %v123 = vadd.f32 0.0, %v122
  %v124 = vpop.f32.mrf.mxu0
  %125 = vmatprep.mubr.bf16.mxu0 0
  %126 = vmatmul.mubr.bf16.gmra.mxu0 %v83
  %v127 = vpop.f32.mrf.mxu0
  %v128 = vadd.f32 0.0, %v127
  %v129 = vpop.f32.mrf.mxu0
  %v130 = vpop.f32.mrf.mxu0
  %v131 = vadd.f32 0.0, %v130
  %v132 = vpop.f32.mrf.mxu0
  %133 = vdwg.mxu0
  %s134 = smul.u32 0, 32
  %s135 = scalar_lea.vmem [#allocation2], %s134
  %136 = vst [vmem:[%s135] sm:$0xff] %v120
  %137 = vst [vmem:[%s135 + $0x8] sm:$0xff] %v123
  %138 = vst [vmem:[%s135 + $0x10] sm:$0xff] %v128
  %139 = vst [vmem:[%s135 + $0x18] sm:$0xff] %v131
  %v140 = vld [vmem:[#allocation3] sm:$0x1]
  %v141 = vadd.f32 %v120, %v123
  %v142 = vadd.f32 %v141, %v128
  %v143 = vadd.f32 %v142, %v131
  %v144 = vrot.slane %v143, 4
  %v145 = vadd.f32 %v143, %v144
  %v146 = vrot.slane %v145, 2
  %v147 = vadd.f32 %v145, %v146
  %v148 = vrot.slane %v147, 1
  %v149 = vadd.f32 %v147, %v148
  %v150 = vadd.f32 %v140, %v149
  %151 = vst [vmem:[#allocation3] sm:$0x1] %v150
  %v152 = vld [vmem:[#allocation4] sm:$0x1]
  %v153 = vmul.f32 %v120, %v120
  %v154 = vmul.f32 %v123, %v123
  %v155 = vmul.f32 %v128, %v128
  %v156 = vmul.f32 %v131, %v131
  %v157 = vadd.f32 %v153, %v154
  %v158 = vadd.f32 %v157, %v155
  %v159 = vadd.f32 %v158, %v156
  %v160 = vrot.slane %v159, 4
  %v161 = vadd.f32 %v159, %v160
  %v162 = vrot.slane %v161, 2
  %v163 = vadd.f32 %v161, %v162
  %v164 = vrot.slane %v163, 1
  %v165 = vadd.f32 %v163, %v164
  %v166 = vadd.f32 %v152, %v165
  %167 = vst [vmem:[#allocation4] sm:$0x1] %v166
  // Predicated region
  $region22: #{skip_encoder_forward.10} parent=0 // pred_check
    %p168 = pneg %p18
  $region23: #{skip_encoder_forward.10} parent=0 // pred_check_branch
    %170 = sbr.rel (%p168) target = $region25
  $region24: #{skip_encoder_forward.10} parent=0 // pred_region
    %v171 = vld [vmem:[#allocation3] sm:$0x1]
    %v172 = vmul.f32 %v171, 0.03125
    %v173 = vld [vmem:[#allocation4] sm:$0x1]
    %v174 = vmul.f32 %v173, 0.03125
    %v175 = vmul.f32 %v172, %v172
    %v176 = vsub.f32 %v174, %v175
    %v177 = vmax.f32 %v176, 0.0
    %v178 = vld [vmem:[%s2] sm:$0x1]
    %v179 = vadd.f32 %v177, 1e-05
    %v180 = vrsqrt.pop %v179
    %v181 = vmul.f32 %v178, %v180
    %v182 = vld [vmem:[%s3] sm:$0x1]
    %v183 = vmul.f32 %v172, %v181
    %v184 = vsub.f32 %v182, %v183
    %v185 = vld [vmem:[#allocation2] sm:$0xff]
    %v186 = vld [vmem:[#allocation2 + $0x8] sm:$0xff]
    %v187 = vld [vmem:[#allocation2 + $0x10] sm:$0xff]
    %v188 = vld [vmem:[#allocation2 + $0x18] sm:$0xff]
    %v190 = vlaneseq
    %v191 = vshrl.u32 %v190, 7
    %v192 = vsub.s32 0, %v191
    %v193 = vrot.slane %v181, %v192
    %v195 = vmul.f32 %v185, %v193
    %v196 = vmul.f32 %v186, %v193
    %v197 = vmul.f32 %v187, %v193
    %v198 = vmul.f32 %v188, %v193
    %v200 = vlaneseq
    %v201 = vshrl.u32 %v200, 7
    %v202 = vsub.s32 0, %v201
    %v203 = vrot.slane %v184, %v202
    %v205 = vadd.f32 %v195, %v203
    %v206 = vadd.f32 %v196, %v203
    %v207 = vadd.f32 %v197, %v203
    %v208 = vadd.f32 %v198, %v203
    %vm209 = vcmp.gt.f32.partialorder %v205, 0.0
    %vm210 = vcmp.gt.f32.partialorder %v206, 0.0
    %vm211 = vcmp.gt.f32.partialorder %v207, 0.0
    %vm212 = vcmp.gt.f32.partialorder %v208, 0.0
    %v213 = vmul.f32 %v205, 0.2
    %v214 = vmul.f32 %v206, 0.2
    %v215 = vmul.f32 %v207, 0.2
    %v216 = vmul.f32 %v208, 0.2
    %v217 = vsel %vm209, %v205, %v213
    %v218 = vsel %vm210, %v206, %v214
    %v219 = vsel %vm211, %v207, %v215
    %v220 = vsel %vm212, %v208, %v216
    %v221 = vpack.c.bf16 %v218, %v217
    %v222 = vpack.c.bf16 %v220, %v219
    %v225 = vunpack.c.l.b16 %v221
    %v226 = vunpack.c.h.b16 %v221
    %v227 = vunpack.c.l.b16 %v222
    %v228 = vunpack.c.h.b16 %v222
    %v229 = vpack.c.b16 %v225, %v225
    %v230 = vpack.c.b16 %v226, %v226
    %v231 = vpack.c.b16 %v227, %v227
    %v232 = vpack.c.b16 %v228, %v228
    %237 = vst [vmem:[%s4] sm:$0xf] %v229
    %238 = vst [vmem:[%s4 + $0x4] sm:$0xf] %v230
    %239 = vst [vmem:[%s4 + $0x8] sm:$0xf] %v231
    %240 = vst [vmem:[%s4 + $0xc] sm:$0xf] %v232
  $region25: #{skip_encoder_forward.10} parent=0 // pred_fallthru
    _
  // Predicated region
  $region26: #{skip_encoder_forward.10} parent=0 // pred_check
    _
  $region27: #{skip_encoder_forward.10} parent=0 // pred_check_branch
    %242 = sbr.rel (0) target = $region29
  $region28: #{skip_encoder_forward.10} parent=0 // pred_region
    _
  $region29: #{skip_encoder_forward.10} parent=0 // pred_fallthru
    _
  // Predicated region
  $region30: #{skip_encoder_forward.10} parent=0 // pred_check
    _
  $region31: #{skip_encoder_forward.10} parent=0 // pred_check_branch
    %244 = sbr.rel (0) target = $region33
  $region32: #{skip_encoder_forward.10} parent=0 // pred_region
    _
  $region33: #{skip_encoder_forward.10} parent=0 // pred_fallthru
    _

// kernel: skip_encoder_forward.11
$region0: #{skip_encoder_forward.11}
  #allocation0 [shape = 'u32[]', space=smem, size = 0x4, offset = 0x4, fixed_abs, tag = 'smem constant byte address 0x4 - core index']
  #allocation1 [shape = 'u32[144,128]{1,0:T(1,128)}', space=vmem, size = 0x12000, scoped, tag = 'internal scratch']
  #allocation2 [shape = 'f32[1,32,128]{2,1,0:T(8,128)}', space=vmem, size = 0x4000, scoped, tag = 'scratch operand']
  #allocation3 [shape = 'f32[1,128]{1,0:T(1,128)}', space=vmem, size = 0x200, scoped, tag = 'scratch operand']
  #allocation4 [shape = 'f32[1,128]{1,0:T(1,128)}', space=vmem, size = 0x200, scoped, tag = 'scratch operand']
  %s0 = inlined_call_operand.vmem [shape: bf16[32,144], index: 0, kind: input, shape index: {}]
  %s1 = inlined_call_operand.vmem [shape: bf16[144,128], index: 1, kind: input, shape index: {}]
  %s2 = inlined_call_operand.vmem [shape: f32[1,128], index: 2, kind: input, shape index: {}]
  %s3 = inlined_call_operand.vmem [shape: f32[1,128], index: 3, kind: input, shape index: {}]
  %s4 = inlined_call_operand.vmem [shape: bf16[32,128], index: 4, kind: output, shape index: {}]
  %s5 = sld [smem:[#allocation0]]
  $region34: #{skip_encoder_forward.11} parent=0
    _
  %s7 = ssub.s32 1, %s5
  %s8 = scalar_select 0, %s7, %s5
  // Predicated region
  $region2: #{skip_encoder_forward.11} parent=0 // pred_check
    _
  $region3: #{skip_encoder_forward.11} parent=0 // pred_check_branch
    %10 = sbr.rel (0) target = $region5
  $region4: #{skip_encoder_forward.11} parent=0 // pred_region
    _
  $region5: #{skip_encoder_forward.11} parent=0 // pred_fallthru
    _
  // Predicated region
  $region6: #{skip_encoder_forward.11} parent=0 // pred_check
    _
  $region7: #{skip_encoder_forward.11} parent=0 // pred_check_branch
    %12 = sbr.rel (0) target = $region9
  $region8: #{skip_encoder_forward.11} parent=0 // pred_region
    _
  $region9: #{skip_encoder_forward.11} parent=0 // pred_fallthru
    _
  // Predicated region
  $region10: #{skip_encoder_forward.11} parent=0 // pred_check
    _
  $region11: #{skip_encoder_forward.11} parent=0 // pred_check_branch
    %14 = sbr.rel (0) target = $region13
  $region12: #{skip_encoder_forward.11} parent=0 // pred_region
    _
  $region13: #{skip_encoder_forward.11} parent=0 // pred_fallthru
    _
  // Predicated region
  $region14: #{skip_encoder_forward.11} parent=0 // pred_check
    _
  $region15: #{skip_encoder_forward.11} parent=0 // pred_check_branch
    %16 = sbr.rel (0) target = $region17
  $region16: #{skip_encoder_forward.11} parent=0 // pred_region
    _
  $region17: #{skip_encoder_forward.11} parent=0 // pred_fallthru
    _
  %p18 = scmp.eq.s32.totalorder 0, 0
  // Predicated region
  $region18: #{skip_encoder_forward.11} parent=0 // pred_check
    %p19 = pneg %p18
  $region19: #{skip_encoder_forward.11} parent=0 // pred_check_branch
    %21 = sbr.rel (%p19) target = $region21
  $region20: #{skip_encoder_forward.11} parent=0 // pred_region
    %22 = vst [vmem:[#allocation3] sm:$0x1] 0.0
    %23 = vst [vmem:[#allocation4] sm:$0x1] 0.0
  $region21: #{skip_encoder_forward.11} parent=0 // pred_fallthru
    _
  %v24 = vld [vmem:[%s0] sm:$0xff]
  %v25 = vld [vmem:[%s0 + $0x8] sm:$0xff]
  %v26 = vld [vmem:[%s0 + $0x10] sm:$0xff]
  %v27 = vld [vmem:[%s0 + $0x18] sm:$0xff]
  %v28 = vld [vmem:[%s1] sm:$0xf]
  %v29 = vld [vmem:[%s1 + $0x4] sm:$0xf]
  %v30 = vld [vmem:[%s1 + $0x8] sm:$0xf]
  %v31 = vld [vmem:[%s1 + $0xc] sm:$0xf]
  %v32 = vld [vmem:[%s1 + $0x10] sm:$0xf]
  %v33 = vld [vmem:[%s1 + $0x14] sm:$0xf]
  %v34 = vld [vmem:[%s1 + $0x18] sm:$0xf]
  %v35 = vld [vmem:[%s1 + $0x1c] sm:$0xf]
  %v36 = vld [vmem:[%s1 + $0x20] sm:$0xf]
  %v37 = vld [vmem:[%s1 + $0x24] sm:$0xf]
  %v38 = vld [vmem:[%s1 + $0x28] sm:$0xf]
  %v39 = vld [vmem:[%s1 + $0x2c] sm:$0xf]
  %v40 = vld [vmem:[%s1 + $0x30] sm:$0xf]
  %v41 = vld [vmem:[%s1 + $0x34] sm:$0xf]
  %v42 = vld [vmem:[%s1 + $0x38] sm:$0xf]
  %v43 = vld [vmem:[%s1 + $0x3c] sm:$0xf]
  %v44 = vld [vmem:[%s1 + $0x40] sm:$0xf]
  %v45 = vld [vmem:[%s1 + $0x44] sm:$0xf]
  %v50 = vunpack.c.l.b16 %v24
  %v51 = vunpack.c.h.b16 %v24
  %v52 = vunpack.c.l.b16 %v25
  %v53 = vunpack.c.h.b16 %v25
  %v54 = vunpack.c.l.b16 %v26
  %v55 = vunpack.c.h.b16 %v26
  %v56 = vunpack.c.l.b16 %v27
  %v57 = vunpack.c.h.b16 %v27
  %v58 = vpack.c.b16 %v52, %v50
  %v59 = vpack.c.b16 %v53, %v51
  %v60 = vpack.c.b16 %v56, %v54
  %v61 = vpack.c.b16 %v57, %v55
  %v82 = vunpack.c.l.b16 %v28
  %v83 = vunpack.c.l.b16 %v29
  %v84 = vunpack.c.l.b16 %v30
  %v85 = vunpack.c.l.b16 %v31
  %v86 = vunpack.c.l.b16 %v32
  %v87 = vunpack.c.l.b16 %v33
  %v88 = vunpack.c.l.b16 %v34
  %v89 = vunpack.c.l.b16 %v35
  %v90 = vunpack.c.l.b16 %v36
  %v91 = vunpack.c.l.b16 %v37
  %v92 = vunpack.c.l.b16 %v38
  %v93 = vunpack.c.l.b16 %v39
  %v94 = vunpack.c.l.b16 %v40
  %v95 = vunpack.c.l.b16 %v41
  %v96 = vunpack.c.l.b16 %v42
  %v97 = vunpack.c.l.b16 %v43
  %v98 = vunpack.c.l.b16 %v44
  %v99 = vunpack.c.l.b16 %v45
  %v100 = vpack.c.b16 %v83, %v82
  %v101 = vpack.c.b16 %v85, %v84
  %v102 = vpack.c.b16 %v87, %v86
  %v103 = vpack.c.b16 %v89, %v88
  %v104 = vpack.c.b16 %v91, %v90
  %v105 = vpack.c.b16 %v93, %v92
  %v106 = vpack.c.b16 %v95, %v94
  %v107 = vpack.c.b16 %v97, %v96
  %v108 = vpack.c.b16 %v99, %v98
  %vm118 = vcmask 130048
  %v120 = vsel %vm118, %v59, 0
  %v123 = vsel %vm118, %v61, 0
  %125 = vmatprep.subr.bf16.mxu0 0
  %126 = vmatpush1.bf16.msra.mxu0 %v107
  %127 = vmatprep.subr.bf16.mxu0 0
  %128 = vmatpush1.bf16.msra.mxu0 %v106
  %129 = vmatprep.subr.bf16.mxu0 0
  %130 = vmatpush1.bf16.msra.mxu0 %v105
  %131 = vmatprep.subr.bf16.mxu0 0
  %132 = vmatpush1.bf16.msra.mxu0 %v104
  %133 = vmatprep.subr.bf16.mxu0 0
  %134 = vmatpush1.bf16.msra.mxu0 %v103
  %135 = vmatprep.subr.bf16.mxu0 0
  %136 = vmatpush1.bf16.msra.mxu0 %v102
  %137 = vmatprep.subr.bf16.mxu0 0
  %138 = vmatpush1.bf16.msra.mxu0 %v101
  %139 = vmatprep.subr.bf16.mxu0 0
  %140 = vmatpush1.bf16.msra.mxu0 %v100
  %141 = vmatprep.subr.bf16.mxu0 0
  %142 = vmatpush2.bf16.msra.mxu0 0
  %143 = vmatprep.subr.bf16.mxu0 0
  %144 = vmatpush2.bf16.msra.mxu0 0
  %145 = vmatprep.subr.bf16.mxu0 0
  %146 = vmatpush2.bf16.msra.mxu0 0
  %147 = vmatprep.subr.bf16.mxu0 0
  %148 = vmatpush2.bf16.msra.mxu0 0
  %149 = vmatprep.subr.bf16.mxu0 0
  %150 = vmatpush2.bf16.msra.mxu0 0
  %151 = vmatprep.subr.bf16.mxu0 0
  %152 = vmatpush2.bf16.msra.mxu0 0
  %153 = vmatprep.subr.bf16.mxu0 0
  %154 = vmatpush2.bf16.msra.mxu0 0
  %155 = vmatprep.subr.bf16.mxu0 0
  %156 = vmatpush2.bf16.msra.mxu0 %v108
  %157 = vmatprep.mubr.bf16.mxu0 %v120
  %158 = vmatmul.mubr.bf16.gmra.mxu0 %v58
  %v159 = vpop.f32.mrf.mxu0
  %v160 = vadd.f32 0.0, %v159
  %v161 = vpop.f32.mrf.mxu0
  %v162 = vpop.f32.mrf.mxu0
  %v163 = vadd.f32 0.0, %v162
  %v164 = vpop.f32.mrf.mxu0
  %165 = vmatprep.mubr.bf16.mxu0 %v123
  %166 = vmatmul.mubr.bf16.gmra.mxu0 %v60
  %v167 = vpop.f32.mrf.mxu0
  %v168 = vadd.f32 0.0, %v167
  %v169 = vpop.f32.mrf.mxu0
  %v170 = vpop.f32.mrf.mxu0
  %v171 = vadd.f32 0.0, %v170
  %v172 = vpop.f32.mrf.mxu0
  %173 = vdwg.mxu0
  %s174 = smul.u32 0, 32
  %s175 = scalar_lea.vmem [#allocation2], %s174
  %176 = vst [vmem:[%s175] sm:$0xff] %v160
  %177 = vst [vmem:[%s175 + $0x8] sm:$0xff] %v163
  %178 = vst [vmem:[%s175 + $0x10] sm:$0xff] %v168
  %179 = vst [vmem:[%s175 + $0x18] sm:$0xff] %v171
  %v180 = vld [vmem:[#allocation3] sm:$0x1]
  %v181 = vadd.f32 %v160, %v163
  %v182 = vadd.f32 %v181, %v168
  %v183 = vadd.f32 %v182, %v171
  %v184 = vrot.slane %v183, 4
  %v185 = vadd.f32 %v183, %v184
  %v186 = vrot.slane %v185, 2
  %v187 = vadd.f32 %v185, %v186
  %v188 = vrot.slane %v187, 1
  %v189 = vadd.f32 %v187, %v188
  %v190 = vadd.f32 %v180, %v189
  %191 = vst [vmem:[#allocation3] sm:$0x1] %v190
  %v192 = vld [vmem:[#allocation4] sm:$0x1]
  %v193 = vmul.f32 %v160, %v160
  %v194 = vmul.f32 %v163, %v163
  %v195 = vmul.f32 %v168, %v168
  %v196 = vmul.f32 %v171, %v171
  %v197 = vadd.f32 %v193, %v194
  %v198 = vadd.f32 %v197, %v195
  %v199 = vadd.f32 %v198, %v196
  %v200 = vrot.slane %v199, 4
  %v201 = vadd.f32 %v199, %v200
  %v202 = vrot.slane %v201, 2
  %v203 = vadd.f32 %v201, %v202
  %v204 = vrot.slane %v203, 1
  %v205 = vadd.f32 %v203, %v204
  %v206 = vadd.f32 %v192, %v205
  %207 = vst [vmem:[#allocation4] sm:$0x1] %v206
  // Predicated region
  $region22: #{skip_encoder_forward.11} parent=0 // pred_check
    %p208 = pneg %p18
  $region23: #{skip_encoder_forward.11} parent=0 // pred_check_branch
    %210 = sbr.rel (%p208) target = $region25
  $region24: #{skip_encoder_forward.11} parent=0 // pred_region
    %v211 = vld [vmem:[#allocation3] sm:$0x1]
    %v212 = vmul.f32 %v211, 0.03125
    %v213 = vld [vmem:[#allocation4] sm:$0x1]
    %v214 = vmul.f32 %v213, 0.03125
    %v215 = vmul.f32 %v212, %v212
    %v216 = vsub.f32 %v214, %v215
    %v217 = vmax.f32 %v216, 0.0
    %v218 = vld [vmem:[%s2] sm:$0x1]
    %v219 = vadd.f32 %v217, 1e-05
    %v220 = vrsqrt.pop %v219
    %v221 = vmul.f32 %v218, %v220
    %v222 = vld [vmem:[%s3] sm:$0x1]
    %v223 = vmul.f32 %v212, %v221
    %v224 = vsub.f32 %v222, %v223
    %v225 = vld [vmem:[#allocation2] sm:$0xff]
    %v226 = vld [vmem:[#allocation2 + $0x8] sm:$0xff]
    %v227 = vld [vmem:[#allocation2 + $0x10] sm:$0xff]
    %v228 = vld [vmem:[#allocation2 + $0x18] sm:$0xff]
    %v230 = vlaneseq
    %v231 = vshrl.u32 %v230, 7
    %v232 = vsub.s32 0, %v231
    %v233 = vrot.slane %v221, %v232
    %v235 = vmul.f32 %v225, %v233
    %v236 = vmul.f32 %v226, %v233
    %v237 = vmul.f32 %v227, %v233
    %v238 = vmul.f32 %v228, %v233
    %v240 = vlaneseq
    %v241 = vshrl.u32 %v240, 7
    %v242 = vsub.s32 0, %v241
    %v243 = vrot.slane %v224, %v242
    %v245 = vadd.f32 %v235, %v243
    %v246 = vadd.f32 %v236, %v243
    %v247 = vadd.f32 %v237, %v243
    %v248 = vadd.f32 %v238, %v243
    %vm249 = vcmp.gt.f32.partialorder %v245, 0.0
    %vm250 = vcmp.gt.f32.partialorder %v246, 0.0
    %vm251 = vcmp.gt.f32.partialorder %v247, 0.0
    %vm252 = vcmp.gt.f32.partialorder %v248, 0.0
    %v253 = vmul.f32 %v245, 0.2
    %v254 = vmul.f32 %v246, 0.2
    %v255 = vmul.f32 %v247, 0.2
    %v256 = vmul.f32 %v248, 0.2
    %v257 = vsel %vm249, %v245, %v253
    %v258 = vsel %vm250, %v246, %v254
    %v259 = vsel %vm251, %v247, %v255
    %v260 = vsel %vm252, %v248, %v256
    %v261 = vpack.c.bf16 %v258, %v257
    %v262 = vpack.c.bf16 %v260, %v259
    %v265 = vunpack.c.l.b16 %v261
    %v266 = vunpack.c.h.b16 %v261
    %v267 = vunpack.c.l.b16 %v262
    %v268 = vunpack.c.h.b16 %v262
    %v269 = vpack.c.b16 %v265, %v265
    %v270 = vpack.c.b16 %v266, %v266
    %v271 = vpack.c.b16 %v267, %v267
    %v272 = vpack.c.b16 %v268, %v268
    %277 = vst [vmem:[%s4] sm:$0xf] %v269
    %278 = vst [vmem:[%s4 + $0x4] sm:$0xf] %v270
    %279 = vst [vmem:[%s4 + $0x8] sm:$0xf] %v271
    %280 = vst [vmem:[%s4 + $0xc] sm:$0xf] %v272
  $region25: #{skip_encoder_forward.11} parent=0 // pred_fallthru
    _
  // Predicated region
  $region26: #{skip_encoder_forward.11} parent=0 // pred_check
    _
  $region27: #{skip_encoder_forward.11} parent=0 // pred_check_branch
    %282 = sbr.rel (0) target = $region29
  $region28: #{skip_encoder_forward.11} parent=0 // pred_region
    _
  $region29: #{skip_encoder_forward.11} parent=0 // pred_fallthru
    _
  // Predicated region
  $region30: #{skip_encoder_forward.11} parent=0 // pred_check
    _
  $region31: #{skip_encoder_forward.11} parent=0 // pred_check_branch
    %284 = sbr.rel (0) target = $region33
  $region32: #{skip_encoder_forward.11} parent=0 // pred_region
    _
  $region33: #{skip_encoder_forward.11} parent=0 // pred_fallthru
    _

// kernel: skip_encoder_forward.9
$region0: #{skip_encoder_forward.9}
  #allocation0 [shape = 'u32[]', space=smem, size = 0x4, offset = 0x4, fixed_abs, tag = 'smem constant byte address 0x4 - core index']
  #allocation1 [shape = 'u32[144,128]{1,0:T(1,128)}', space=vmem, size = 0x12000, scoped, tag = 'internal scratch']
  #allocation2 [shape = 'f32[1,128,128]{2,1,0:T(8,128)}', space=vmem, size = 0x10000, scoped, tag = 'scratch operand']
  #allocation3 [shape = 'f32[1,128]{1,0:T(1,128)}', space=vmem, size = 0x200, scoped, tag = 'scratch operand']
  #allocation4 [shape = 'f32[1,128]{1,0:T(1,128)}', space=vmem, size = 0x200, scoped, tag = 'scratch operand']
  %s0 = inlined_call_operand.vmem [shape: bf16[128,128], index: 0, kind: input, shape index: {}]
  %s1 = inlined_call_operand.vmem [shape: bf16[128,128], index: 1, kind: input, shape index: {}]
  %s2 = inlined_call_operand.vmem [shape: f32[1,128], index: 2, kind: input, shape index: {}]
  %s3 = inlined_call_operand.vmem [shape: f32[1,128], index: 3, kind: input, shape index: {}]
  %s4 = inlined_call_operand.vmem [shape: bf16[128,128], index: 4, kind: output, shape index: {}]
  %s5 = sld [smem:[#allocation0]]
  $region34: #{skip_encoder_forward.9} parent=0
    _
  %s7 = ssub.s32 1, %s5
  %s8 = scalar_select 0, %s7, %s5
  // Predicated region
  $region2: #{skip_encoder_forward.9} parent=0 // pred_check
    _
  $region3: #{skip_encoder_forward.9} parent=0 // pred_check_branch
    %10 = sbr.rel (0) target = $region5
  $region4: #{skip_encoder_forward.9} parent=0 // pred_region
    _
  $region5: #{skip_encoder_forward.9} parent=0 // pred_fallthru
    _
  // Predicated region
  $region6: #{skip_encoder_forward.9} parent=0 // pred_check
    _
  $region7: #{skip_encoder_forward.9} parent=0 // pred_check_branch
    %12 = sbr.rel (0) target = $region9
  $region8: #{skip_encoder_forward.9} parent=0 // pred_region
    _
  $region9: #{skip_encoder_forward.9} parent=0 // pred_fallthru
    _
  // Predicated region
  $region10: #{skip_encoder_forward.9} parent=0 // pred_check
    _
  $region11: #{skip_encoder_forward.9} parent=0 // pred_check_branch
    %14 = sbr.rel (0) target = $region13
  $region12: #{skip_encoder_forward.9} parent=0 // pred_region
    _
  $region13: #{skip_encoder_forward.9} parent=0 // pred_fallthru
    _
  // Predicated region
  $region14: #{skip_encoder_forward.9} parent=0 // pred_check
    _
  $region15: #{skip_encoder_forward.9} parent=0 // pred_check_branch
    %16 = sbr.rel (0) target = $region17
  $region16: #{skip_encoder_forward.9} parent=0 // pred_region
    _
  $region17: #{skip_encoder_forward.9} parent=0 // pred_fallthru
    _
  %p18 = scmp.eq.s32.totalorder 0, 0
  // Predicated region
  $region18: #{skip_encoder_forward.9} parent=0 // pred_check
    %p19 = pneg %p18
  $region19: #{skip_encoder_forward.9} parent=0 // pred_check_branch
    %21 = sbr.rel (%p19) target = $region21
  $region20: #{skip_encoder_forward.9} parent=0 // pred_region
    %22 = vst [vmem:[#allocation3] sm:$0x1] 0.0
    %23 = vst [vmem:[#allocation4] sm:$0x1] 0.0
  $region21: #{skip_encoder_forward.9} parent=0 // pred_fallthru
    _
  %v24 = vld [vmem:[%s0] sm:$0xf]
  %v25 = vld [vmem:[%s0 + $0x4] sm:$0xf]
  %v26 = vld [vmem:[%s0 + $0x8] sm:$0xf]
  %v27 = vld [vmem:[%s0 + $0xc] sm:$0xf]
  %v28 = vld [vmem:[%s0 + $0x10] sm:$0xf]
  %v29 = vld [vmem:[%s0 + $0x14] sm:$0xf]
  %v30 = vld [vmem:[%s0 + $0x18] sm:$0xf]
  %v31 = vld [vmem:[%s0 + $0x1c] sm:$0xf]
  %v32 = vld [vmem:[%s0 + $0x20] sm:$0xf]
  %v33 = vld [vmem:[%s0 + $0x24] sm:$0xf]
  %v34 = vld [vmem:[%s0 + $0x28] sm:$0xf]
  %v35 = vld [vmem:[%s0 + $0x2c] sm:$0xf]
  %v36 = vld [vmem:[%s0 + $0x30] sm:$0xf]
  %v37 = vld [vmem:[%s0 + $0x34] sm:$0xf]
  %v38 = vld [vmem:[%s0 + $0x38] sm:$0xf]
  %v39 = vld [vmem:[%s0 + $0x3c] sm:$0xf]
  %v40 = vld [vmem:[%s1] sm:$0xf]
  %v41 = vld [vmem:[%s1 + $0x4] sm:$0xf]
  %v42 = vld [vmem:[%s1 + $0x8] sm:$0xf]
  %v43 = vld [vmem:[%s1 + $0xc] sm:$0xf]
  %v44 = vld [vmem:[%s1 + $0x10] sm:$0xf]
  %v45 = vld [vmem:[%s1 + $0x14] sm:$0xf]
  %v46 = vld [vmem:[%s1 + $0x18] sm:$0xf]
  %v47 = vld [vmem:[%s1 + $0x1c] sm:$0xf]
  %v48 = vld [vmem:[%s1 + $0x20] sm:$0xf]
  %v49 = vld [vmem:[%s1 + $0x24] sm:$0xf]
  %v50 = vld [vmem:[%s1 + $0x28] sm:$0xf]
  %v51 = vld [vmem:[%s1 + $0x2c] sm:$0xf]
  %v52 = vld [vmem:[%s1 + $0x30] sm:$0xf]
  %v53 = vld [vmem:[%s1 + $0x34] sm:$0xf]
  %v54 = vld [vmem:[%s1 + $0x38] sm:$0xf]
  %v55 = vld [vmem:[%s1 + $0x3c] sm:$0xf]
  %v72 = vunpack.c.l.b16 %v24
  %v73 = vunpack.c.l.b16 %v25
  %v74 = vunpack.c.l.b16 %v26
  %v75 = vunpack.c.l.b16 %v27
  %v76 = vunpack.c.l.b16 %v28
  %v77 = vunpack.c.l.b16 %v29
  %v78 = vunpack.c.l.b16 %v30
  %v79 = vunpack.c.l.b16 %v31
  %v80 = vunpack.c.l.b16 %v32
  %v81 = vunpack.c.l.b16 %v33
  %v82 = vunpack.c.l.b16 %v34
  %v83 = vunpack.c.l.b16 %v35
  %v84 = vunpack.c.l.b16 %v36
  %v85 = vunpack.c.l.b16 %v37
  %v86 = vunpack.c.l.b16 %v38
  %v87 = vunpack.c.l.b16 %v39
  %v88 = vpack.c.b16 %v73, %v72
  %v89 = vpack.c.b16 %v75, %v74
  %v90 = vpack.c.b16 %v77, %v76
  %v91 = vpack.c.b16 %v79, %v78
  %v92 = vpack.c.b16 %v81, %v80
  %v93 = vpack.c.b16 %v83, %v82
  %v94 = vpack.c.b16 %v85, %v84
  %v95 = vpack.c.b16 %v87, %v86
  %v120 = vunpack.c.l.b16 %v40
  %v121 = vunpack.c.l.b16 %v41
  %v122 = vunpack.c.l.b16 %v42
  %v123 = vunpack.c.l.b16 %v43
  %v124 = vunpack.c.l.b16 %v44
  %v125 = vunpack.c.l.b16 %v45
  %v126 = vunpack.c.l.b16 %v46
  %v127 = vunpack.c.l.b16 %v47
  %v128 = vunpack.c.l.b16 %v48
  %v129 = vunpack.c.l.b16 %v49
  %v130 = vunpack.c.l.b16 %v50
  %v131 = vunpack.c.l.b16 %v51
  %v132 = vunpack.c.l.b16 %v52
  %v133 = vunpack.c.l.b16 %v53
  %v134 = vunpack.c.l.b16 %v54
  %v135 = vunpack.c.l.b16 %v55
  %v136 = vpack.c.b16 %v121, %v120
  %v137 = vpack.c.b16 %v123, %v122
  %v138 = vpack.c.b16 %v125, %v124
  %v139 = vpack.c.b16 %v127, %v126
  %v140 = vpack.c.b16 %v129, %v128
  %v141 = vpack.c.b16 %v131, %v130
  %v142 = vpack.c.b16 %v133, %v132
  %v143 = vpack.c.b16 %v135, %v134
  %152 = vmatprep.subr.bf16.mxu0 0
  %153 = vmatpush1.bf16.msra.mxu0 %v143
  %154 = vmatprep.subr.bf16.mxu0 0
  %155 = vmatpush1.bf16.msra.mxu0 %v142
  %156 = vmatprep.subr.bf16.mxu0 0
  %157 = vmatpush1.bf16.msra.mxu0 %v141
  %158 = vmatprep.subr.bf16.mxu0 0
  %159 = vmatpush1.bf16.msra.mxu0 %v140
  %160 = vmatprep.subr.bf16.mxu0 0
  %161 = vmatpush1.bf16.msra.mxu0 %v139
  %162 = vmatprep.subr.bf16.mxu0 0
  %163 = vmatpush1.bf16.msra.mxu0 %v138
  %164 = vmatprep.subr.bf16.mxu0 0
  %165 = vmatpush1.bf16.msra.mxu0 %v137
  %166 = vmatprep.subr.bf16.mxu0 0
  %167 = vmatpush1.bf16.msra.mxu0 %v136
  %168 = vmatprep.subr.bf16.mxu0 0
  %169 = vmatpush2.bf16.msra.mxu0 0
  %170 = vmatprep.subr.bf16.mxu0 0
  %171 = vmatpush2.bf16.msra.mxu0 0
  %172 = vmatprep.subr.bf16.mxu0 0
  %173 = vmatpush2.bf16.msra.mxu0 0
  %174 = vmatprep.subr.bf16.mxu0 0
  %175 = vmatpush2.bf16.msra.mxu0 0
  %176 = vmatprep.subr.bf16.mxu0 0
  %177 = vmatpush2.bf16.msra.mxu0 0
  %178 = vmatprep.subr.bf16.mxu0 0
  %179 = vmatpush2.bf16.msra.mxu0 0
  %180 = vmatprep.subr.bf16.mxu0 0
  %181 = vmatpush2.bf16.msra.mxu0 0
  %182 = vmatprep.subr.bf16.mxu0 0
  %183 = vmatpush2.bf16.msra.mxu0 0
  %184 = vmatprep.mubr.bf16.mxu0 0
  %185 = vmatmul.mubr.bf16.gmra.mxu0 %v88
  %v186 = vpop.f32.mrf.mxu0
  %v187 = vadd.f32 0.0, %v186
  %v188 = vpop.f32.mrf.mxu0
  %v189 = vpop.f32.mrf.mxu0
  %v190 = vadd.f32 0.0, %v189
  %v191 = vpop.f32.mrf.mxu0
  %192 = vmatprep.mubr.bf16.mxu0 0
  %193 = vmatmul.mubr.bf16.gmra.mxu0 %v89
  %v194 = vpop.f32.mrf.mxu0
  %v195 = vadd.f32 0.0, %v194
  %v196 = vpop.f32.mrf.mxu0
  %v197 = vpop.f32.mrf.mxu0
  %v198 = vadd.f32 0.0, %v197
  %v199 = vpop.f32.mrf.mxu0
  %200 = vmatprep.mubr.bf16.mxu0 0
  %201 = vmatmul.mubr.bf16.gmra.mxu0 %v90
  %v202 = vpop.f32.mrf.mxu0
  %v203 = vadd.f32 0.0, %v202
  %v204 = vpop.f32.mrf.mxu0
  %v205 = vpop.f32.mrf.mxu0
  %v206 = vadd.f32 0.0, %v205
  %v207 = vpop.f32.mrf.mxu0
  %208 = vmatprep.mubr.bf16.mxu0 0
  %209 = vmatmul.mubr.bf16.gmra.mxu0 %v91
  %v210 = vpop.f32.mrf.mxu0
  %v211 = vadd.f32 0.0, %v210
  %v212 = vpop.f32.mrf.mxu0
  %v213 = vpop.f32.mrf.mxu0
  %v214 = vadd.f32 0.0, %v213
  %v215 = vpop.f32.mrf.mxu0
  %216 = vmatprep.mubr.bf16.mxu0 0
  %217 = vmatmul.mubr.bf16.gmra.mxu0 %v92
  %v218 = vpop.f32.mrf.mxu0
  %v219 = vadd.f32 0.0, %v218
  %v220 = vpop.f32.mrf.mxu0
  %v221 = vpop.f32.mrf.mxu0
  %v222 = vadd.f32 0.0, %v221
  %v223 = vpop.f32.mrf.mxu0
  %224 = vmatprep.mubr.bf16.mxu0 0
  %225 = vmatmul.mubr.bf16.gmra.mxu0 %v93
  %v226 = vpop.f32.mrf.mxu0
  %v227 = vadd.f32 0.0, %v226
  %v228 = vpop.f32.mrf.mxu0
  %v229 = vpop.f32.mrf.mxu0
  %v230 = vadd.f32 0.0, %v229
  %v231 = vpop.f32.mrf.mxu0
  %232 = vmatprep.mubr.bf16.mxu0 0
  %233 = vmatmul.mubr.bf16.gmra.mxu0 %v94
  %v234 = vpop.f32.mrf.mxu0
  %v235 = vadd.f32 0.0, %v234
  %v236 = vpop.f32.mrf.mxu0
  %v237 = vpop.f32.mrf.mxu0
  %v238 = vadd.f32 0.0, %v237
  %v239 = vpop.f32.mrf.mxu0
  %240 = vmatprep.mubr.bf16.mxu0 0
  %241 = vmatmul.mubr.bf16.gmra.mxu0 %v95
  %v242 = vpop.f32.mrf.mxu0
  %v243 = vadd.f32 0.0, %v242
  %v244 = vpop.f32.mrf.mxu0
  %v245 = vpop.f32.mrf.mxu0
  %v246 = vadd.f32 0.0, %v245
  %v247 = vpop.f32.mrf.mxu0
  %248 = vdwg.mxu0
  %s249 = smul.u32 0, 128
  %s250 = scalar_lea.vmem [#allocation2], %s249
  %251 = vst [vmem:[%s250] sm:$0xff] %v187
  %252 = vst [vmem:[%s250 + $0x8] sm:$0xff] %v190
  %253 = vst [vmem:[%s250 + $0x10] sm:$0xff] %v195
  %254 = vst [vmem:[%s250 + $0x18] sm:$0xff] %v198
  %255 = vst [vmem:[%s250 + $0x20] sm:$0xff] %v203
  %256 = vst [vmem:[%s250 + $0x28] sm:$0xff] %v206
  %257 = vst [vmem:[%s250 + $0x30] sm:$0xff] %v211
  %258 = vst [vmem:[%s250 + $0x38] sm:$0xff] %v214
  %259 = vst [vmem:[%s250 + $0x40] sm:$0xff] %v219
  %260 = vst [vmem:[%s250 + $0x48] sm:$0xff] %v222
  %261 = vst [vmem:[%s250 + $0x50] sm:$0xff] %v227
  %262 = vst [vmem:[%s250 + $0x58] sm:$0xff] %v230
  %263 = vst [vmem:[%s250 + $0x60] sm:$0xff] %v235
  %264 = vst [vmem:[%s250 + $0x68] sm:$0xff] %v238
  %265 = vst [vmem:[%s250 + $0x70] sm:$0xff] %v243
  %266 = vst [vmem:[%s250 + $0x78] sm:$0xff] %v246
  %v267 = vld [vmem:[#allocation3] sm:$0x1]
  %v268 = vadd.f32 %v187, %v190
  %v269 = vadd.f32 %v268, %v195
  %v270 = vadd.f32 %v269, %v198
  %v271 = vadd.f32 %v270, %v203
  %v272 = vadd.f32 %v271, %v206
  %v273 = vadd.f32 %v272, %v211
  %v274 = vadd.f32 %v273, %v214
  %v275 = vadd.f32 %v274, %v219
  %v276 = vadd.f32 %v275, %v222
  %v277 = vadd.f32 %v276, %v227
  %v278 = vadd.f32 %v277, %v230
  %v279 = vadd.f32 %v278, %v235
  %v280 = vadd.f32 %v279, %v238
  %v281 = vadd.f32 %v280, %v243
  %v282 = vadd.f32 %v281, %v246
  %v283 = vrot.slane %v282, 4
  %v284 = vadd.f32 %v282, %v283
  %v285 = vrot.slane %v284, 2
  %v286 = vadd.f32 %v284, %v285
  %v287 = vrot.slane %v286, 1
  %v288 = vadd.f32 %v286, %v287
  %v289 = vadd.f32 %v267, %v288
  %290 = vst [vmem:[#allocation3] sm:$0x1] %v289
  %v291 = vld [vmem:[#allocation4] sm:$0x1]
  %v292 = vmul.f32 %v187, %v187
  %v293 = vmul.f32 %v190, %v190
  %v294 = vmul.f32 %v195, %v195
  %v295 = vmul.f32 %v198, %v198
  %v296 = vmul.f32 %v203, %v203
  %v297 = vmul.f32 %v206, %v206
  %v298 = vmul.f32 %v211, %v211
  %v299 = vmul.f32 %v214, %v214
  %v300 = vmul.f32 %v219, %v219
  %v301 = vmul.f32 %v222, %v222
  %v302 = vmul.f32 %v227, %v227
  %v303 = vmul.f32 %v230, %v230
  %v304 = vmul.f32 %v235, %v235
  %v305 = vmul.f32 %v238, %v238
  %v306 = vmul.f32 %v243, %v243
  %v307 = vmul.f32 %v246, %v246
  %v308 = vadd.f32 %v292, %v293
  %v309 = vadd.f32 %v308, %v294
  %v310 = vadd.f32 %v309, %v295
  %v311 = vadd.f32 %v310, %v296
  %v312 = vadd.f32 %v311, %v297
  %v313 = vadd.f32 %v312, %v298
  %v314 = vadd.f32 %v313, %v299
  %v315 = vadd.f32 %v314, %v300
  %v316 = vadd.f32 %v315, %v301
  %v317 = vadd.f32 %v316, %v302
  %v318 = vadd.f32 %v317, %v303
  %v319 = vadd.f32 %v318, %v304
  %v320 = vadd.f32 %v319, %v305
  %v321 = vadd.f32 %v320, %v306
  %v322 = vadd.f32 %v321, %v307
  %v323 = vrot.slane %v322, 4
  %v324 = vadd.f32 %v322, %v323
  %v325 = vrot.slane %v324, 2
  %v326 = vadd.f32 %v324, %v325
  %v327 = vrot.slane %v326, 1
  %v328 = vadd.f32 %v326, %v327
  %v329 = vadd.f32 %v291, %v328
  %330 = vst [vmem:[#allocation4] sm:$0x1] %v329
  // Predicated region
  $region22: #{skip_encoder_forward.9} parent=0 // pred_check
    %p331 = pneg %p18
  $region23: #{skip_encoder_forward.9} parent=0 // pred_check_branch
    %333 = sbr.rel (%p331) target = $region25
  $region24: #{skip_encoder_forward.9} parent=0 // pred_region
    %v334 = vld [vmem:[#allocation3] sm:$0x1]
    %v335 = vmul.f32 %v334, 0.0078125
    %v336 = vld [vmem:[#allocation4] sm:$0x1]
    %v337 = vmul.f32 %v336, 0.0078125
    %v338 = vmul.f32 %v335, %v335
    %v339 = vsub.f32 %v337, %v338
    %v340 = vmax.f32 %v339, 0.0
    %v341 = vld [vmem:[%s2] sm:$0x1]
    %v342 = vadd.f32 %v340, 1e-05
    %v343 = vrsqrt.pop %v342
    %v344 = vmul.f32 %v341, %v343
    %v345 = vld [vmem:[%s3] sm:$0x1]
    %v346 = vmul.f32 %v335, %v344
    %v347 = vsub.f32 %v345, %v346
    %v348 = vld [vmem:[#allocation2] sm:$0xff]
    %v349 = vld [vmem:[#allocation2 + $0x8] sm:$0xff]
    %v350 = vld [vmem:[#allocation2 + $0x10] sm:$0xff]
    %v351 = vld [vmem:[#allocation2 + $0x18] sm:$0xff]
    %v352 = vld [vmem:[#allocation2 + $0x20] sm:$0xff]
    %v353 = vld [vmem:[#allocation2 + $0x28] sm:$0xff]
    %v354 = vld [vmem:[#allocation2 + $0x30] sm:$0xff]
    %v355 = vld [vmem:[#allocation2 + $0x38] sm:$0xff]
    %v356 = vld [vmem:[#allocation2 + $0x40] sm:$0xff]
    %v357 = vld [vmem:[#allocation2 + $0x48] sm:$0xff]
    %v358 = vld [vmem:[#allocation2 + $0x50] sm:$0xff]
    %v359 = vld [vmem:[#allocation2 + $0x58] sm:$0xff]
    %v360 = vld [vmem:[#allocation2 + $0x60] sm:$0xff]
    %v361 = vld [vmem:[#allocation2 + $0x68] sm:$0xff]
    %v362 = vld [vmem:[#allocation2 + $0x70] sm:$0xff]
    %v363 = vld [vmem:[#allocation2 + $0x78] sm:$0xff]
    %v365 = vlaneseq
    %v366 = vshrl.u32 %v365, 7
    %v367 = vsub.s32 0, %v366
    %v368 = vrot.slane %v344, %v367
    %v370 = vmul.f32 %v348, %v368
    %v371 = vmul.f32 %v349, %v368
    %v372 = vmul.f32 %v350, %v368
    %v373 = vmul.f32 %v351, %v368
    %v374 = vmul.f32 %v352, %v368
    %v375 = vmul.f32 %v353, %v368
    %v376 = vmul.f32 %v354, %v368
    %v377 = vmul.f32 %v355, %v368
    %v378 = vmul.f32 %v356, %v368
    %v379 = vmul.f32 %v357, %v368
    %v380 = vmul.f32 %v358, %v368
    %v381 = vmul.f32 %v359, %v368
    %v382 = vmul.f32 %v360, %v368
    %v383 = vmul.f32 %v361, %v368
    %v384 = vmul.f32 %v362, %v368
    %v385 = vmul.f32 %v363, %v368
    %v387 = vlaneseq
    %v388 = vshrl.u32 %v387, 7
    %v389 = vsub.s32 0, %v388
    %v390 = vrot.slane %v347, %v389
    %v392 = vadd.f32 %v370, %v390
    %v393 = vadd.f32 %v371, %v390
    %v394 = vadd.f32 %v372, %v390
    %v395 = vadd.f32 %v373, %v390
    %v396 = vadd.f32 %v374, %v390
    %v397 = vadd.f32 %v375, %v390
    %v398 = vadd.f32 %v376, %v390
    %v399 = vadd.f32 %v377, %v390
    %v400 = vadd.f32 %v378, %v390
    %v401 = vadd.f32 %v379, %v390
    %v402 = vadd.f32 %v380, %v390
    %v403 = vadd.f32 %v381, %v390
    %v404 = vadd.f32 %v382, %v390
    %v405 = vadd.f32 %v383, %v390
    %v406 = vadd.f32 %v384, %v390
    %v407 = vadd.f32 %v385, %v390
    %vm408 = vcmp.gt.f32.partialorder %v392, 0.0
    %vm409 = vcmp.gt.f32.partialorder %v393, 0.0
    %vm410 = vcmp.gt.f32.partialorder %v394, 0.0
    %vm411 = vcmp.gt.f32.partialorder %v395, 0.0
    %vm412 = vcmp.gt.f32.partialorder %v396, 0.0
    %vm413 = vcmp.gt.f32.partialorder %v397, 0.0
    %vm414 = vcmp.gt.f32.partialorder %v398, 0.0
    %vm415 = vcmp.gt.f32.partialorder %v399, 0.0
    %vm416 = vcmp.gt.f32.partialorder %v400, 0.0
    %vm417 = vcmp.gt.f32.partialorder %v401, 0.0
    %vm418 = vcmp.gt.f32.partialorder %v402, 0.0
    %vm419 = vcmp.gt.f32.partialorder %v403, 0.0
    %vm420 = vcmp.gt.f32.partialorder %v404, 0.0
    %vm421 = vcmp.gt.f32.partialorder %v405, 0.0
    %vm422 = vcmp.gt.f32.partialorder %v406, 0.0
    %vm423 = vcmp.gt.f32.partialorder %v407, 0.0
    %v424 = vmul.f32 %v392, 0.2
    %v425 = vmul.f32 %v393, 0.2
    %v426 = vmul.f32 %v394, 0.2
    %v427 = vmul.f32 %v395, 0.2
    %v428 = vmul.f32 %v396, 0.2
    %v429 = vmul.f32 %v397, 0.2
    %v430 = vmul.f32 %v398, 0.2
    %v431 = vmul.f32 %v399, 0.2
    %v432 = vmul.f32 %v400, 0.2
    %v433 = vmul.f32 %v401, 0.2
    %v434 = vmul.f32 %v402, 0.2
    %v435 = vmul.f32 %v403, 0.2
    %v436 = vmul.f32 %v404, 0.2
    %v437 = vmul.f32 %v405, 0.2
    %v438 = vmul.f32 %v406, 0.2
    %v439 = vmul.f32 %v407, 0.2
    %v440 = vsel %vm408, %v392, %v424
    %v441 = vsel %vm409, %v393, %v425
    %v442 = vsel %vm410, %v394, %v426
    %v443 = vsel %vm411, %v395, %v427
    %v444 = vsel %vm412, %v396, %v428
    %v445 = vsel %vm413, %v397, %v429
    %v446 = vsel %vm414, %v398, %v430
    %v447 = vsel %vm415, %v399, %v431
    %v448 = vsel %vm416, %v400, %v432
    %v449 = vsel %vm417, %v401, %v433
    %v450 = vsel %vm418, %v402, %v434
    %v451 = vsel %vm419, %v403, %v435
    %v452 = vsel %vm420, %v404, %v436
    %v453 = vsel %vm421, %v405, %v437
    %v454 = vsel %vm422, %v406, %v438
    %v455 = vsel %vm423, %v407, %v439
    %v456 = vpack.c.bf16 %v441, %v440
    %v457 = vpack.c.bf16 %v443, %v442
    %v458 = vpack.c.bf16 %v445, %v444
    %v459 = vpack.c.bf16 %v447, %v446
    %v460 = vpack.c.bf16 %v449, %v448
    %v461 = vpack.c.bf16 %v451, %v450
    %v462 = vpack.c.bf16 %v453, %v452
    %v463 = vpack.c.bf16 %v455, %v454
    %v472 = vunpack.c.l.b16 %v456
    %v473 = vunpack.c.h.b16 %v456
    %v474 = vunpack.c.l.b16 %v457
    %v475 = vunpack.c.h.b16 %v457
    %v476 = vunpack.c.l.b16 %v458
    %v477 = vunpack.c.h.b16 %v458
    %v478 = vunpack.c.l.b16 %v459
    %v479 = vunpack.c.h.b16 %v459
    %v480 = vunpack.c.l.b16 %v460
    %v481 = vunpack.c.h.b16 %v460
    %v482 = vunpack.c.l.b16 %v461
    %v483 = vunpack.c.h.b16 %v461
    %v484 = vunpack.c.l.b16 %v462
    %v485 = vunpack.c.h.b16 %v462
    %v486 = vunpack.c.l.b16 %v463
    %v487 = vunpack.c.h.b16 %v463
    %v488 = vpack.c.b16 %v472, %v472
    %v489 = vpack.c.b16 %v473, %v473
    %v490 = vpack.c.b16 %v474, %v474
    %v491 = vpack.c.b16 %v475, %v475
    %v492 = vpack.c.b16 %v476, %v476
    %v493 = vpack.c.b16 %v477, %v477
    %v494 = vpack.c.b16 %v478, %v478
    %v495 = vpack.c.b16 %v479, %v479
    %v496 = vpack.c.b16 %v480, %v480
    %v497 = vpack.c.b16 %v481, %v481
    %v498 = vpack.c.b16 %v482, %v482
    %v499 = vpack.c.b16 %v483, %v483
    %v500 = vpack.c.b16 %v484, %v484
    %v501 = vpack.c.b16 %v485, %v485
    %v502 = vpack.c.b16 %v486, %v486
    %v503 = vpack.c.b16 %v487, %v487
    %520 = vst [vmem:[%s4] sm:$0xf] %v488
    %521 = vst [vmem:[%s4 + $0x4] sm:$0xf] %v489
    %522 = vst [vmem:[%s4 + $0x8] sm:$0xf] %v490
    %523 = vst [vmem:[%s4 + $0xc] sm:$0xf] %v491
    %524 = vst [vmem:[%s4 + $0x10] sm:$0xf] %v492
    %525 = vst [vmem:[%s4 + $0x14] sm:$0xf] %v493
    %526 = vst [vmem:[%s4 + $0x18] sm:$0xf] %v494
    %527 = vst [vmem:[%s4 + $0x1c] sm:$0xf] %v495
    %528 = vst [vmem:[%s4 + $0x20] sm:$0xf] %v496
    %529 = vst [vmem:[%s4 + $0x24] sm:$0xf] %v497
    %530 = vst [vmem:[%s4 + $0x28] sm:$0xf] %v498
    %531 = vst [vmem:[%s4 + $0x2c] sm:$0xf] %v499
    %532 = vst [vmem:[%s4 + $0x30] sm:$0xf] %v500
    %533 = vst [vmem:[%s4 + $0x34] sm:$0xf] %v501
    %534 = vst [vmem:[%s4 + $0x38] sm:$0xf] %v502
    %535 = vst [vmem:[%s4 + $0x3c] sm:$0xf] %v503
  $region25: #{skip_encoder_forward.9} parent=0 // pred_fallthru
    _
  // Predicated region
  $region26: #{skip_encoder_forward.9} parent=0 // pred_check
    _
  $region27: #{skip_encoder_forward.9} parent=0 // pred_check_branch
    %537 = sbr.rel (0) target = $region29
  $region28: #{skip_encoder_forward.9} parent=0 // pred_region
    _
  $region29: #{skip_encoder_forward.9} parent=0 // pred_fallthru
    _
  // Predicated region
  $region30: #{skip_encoder_forward.9} parent=0 // pred_check
    _
  $region31: #{skip_encoder_forward.9} parent=0 // pred_check_branch
    %539 = sbr.rel (0) target = $region33
  $region32: #{skip_encoder_forward.9} parent=0 // pred_region
    _
  $region33: #{skip_encoder_forward.9} parent=0 // pred_fallthru
    _

// kernel: skip_encoder_forward.6
$region0: #{skip_encoder_forward.6}
  #allocation0 [shape = 'u32[]', space=smem, size = 0x4, offset = 0x4, fixed_abs, tag = 'smem constant byte address 0x4 - core index']
  #allocation1 [shape = 'u32[144,128]{1,0:T(1,128)}', space=vmem, size = 0x12000, scoped, tag = 'internal scratch']
  #allocation2 [shape = 'f32[1,512,128]{2,1,0:T(8,128)}', space=vmem, size = 0x40000, scoped, tag = 'scratch operand']
  #allocation3 [shape = 'f32[1,128]{1,0:T(1,128)}', space=vmem, size = 0x200, scoped, tag = 'scratch operand']
  #allocation4 [shape = 'f32[1,128]{1,0:T(1,128)}', space=vmem, size = 0x200, scoped, tag = 'scratch operand']
  %s0 = inlined_call_operand.vmem [shape: bf16[512,16], index: 0, kind: input, shape index: {}]
  %s1 = inlined_call_operand.vmem [shape: bf16[16,128], index: 1, kind: input, shape index: {}]
  %s2 = inlined_call_operand.vmem [shape: f32[1,128], index: 2, kind: input, shape index: {}]
  %s3 = inlined_call_operand.vmem [shape: f32[1,128], index: 3, kind: input, shape index: {}]
  %s4 = inlined_call_operand.vmem [shape: bf16[512,128], index: 4, kind: output, shape index: {}]
  %s5 = sld [smem:[#allocation0]]
  $region34: #{skip_encoder_forward.6} parent=0
    _
  %s7 = ssub.s32 1, %s5
  %s8 = scalar_select 0, %s7, %s5
  // Predicated region
  $region2: #{skip_encoder_forward.6} parent=0 // pred_check
    _
  $region3: #{skip_encoder_forward.6} parent=0 // pred_check_branch
    %10 = sbr.rel (0) target = $region5
  $region4: #{skip_encoder_forward.6} parent=0 // pred_region
    _
  $region5: #{skip_encoder_forward.6} parent=0 // pred_fallthru
    _
  // Predicated region
  $region6: #{skip_encoder_forward.6} parent=0 // pred_check
    _
  $region7: #{skip_encoder_forward.6} parent=0 // pred_check_branch
    %12 = sbr.rel (0) target = $region9
  $region8: #{skip_encoder_forward.6} parent=0 // pred_region
    _
  $region9: #{skip_encoder_forward.6} parent=0 // pred_fallthru
    _
  // Predicated region
  $region10: #{skip_encoder_forward.6} parent=0 // pred_check
    _
  $region11: #{skip_encoder_forward.6} parent=0 // pred_check_branch
    %14 = sbr.rel (0) target = $region13
  $region12: #{skip_encoder_forward.6} parent=0 // pred_region
    _
  $region13: #{skip_encoder_forward.6} parent=0 // pred_fallthru
    _
  // Predicated region
  $region14: #{skip_encoder_forward.6} parent=0 // pred_check
    _
  $region15: #{skip_encoder_forward.6} parent=0 // pred_check_branch
    %16 = sbr.rel (0) target = $region17
  $region16: #{skip_encoder_forward.6} parent=0 // pred_region
    _
  $region17: #{skip_encoder_forward.6} parent=0 // pred_fallthru
    _
  %p18 = scmp.eq.s32.totalorder 0, 0
  // Predicated region
  $region18: #{skip_encoder_forward.6} parent=0 // pred_check
    %p19 = pneg %p18
  $region19: #{skip_encoder_forward.6} parent=0 // pred_check_branch
    %21 = sbr.rel (%p19) target = $region21
  $region20: #{skip_encoder_forward.6} parent=0 // pred_region
    %22 = vst [vmem:[#allocation3] sm:$0x1] 0.0
    %23 = vst [vmem:[#allocation4] sm:$0x1] 0.0
  $region21: #{skip_encoder_forward.6} parent=0 // pred_fallthru
    _
  %v24 = vld [vmem:[%s0] sm:$0xf]
  %v25 = vld [vmem:[%s0 + $0x4] sm:$0xf]
  %v26 = vld [vmem:[%s0 + $0x8] sm:$0xf]
  %v27 = vld [vmem:[%s0 + $0xc] sm:$0xf]
  %v28 = vld [vmem:[%s0 + $0x10] sm:$0xf]
  %v29 = vld [vmem:[%s0 + $0x14] sm:$0xf]
  %v30 = vld [vmem:[%s0 + $0x18] sm:$0xf]
  %v31 = vld [vmem:[%s0 + $0x1c] sm:$0xf]
  %v32 = vld [vmem:[%s0 + $0x20] sm:$0xf]
  %v33 = vld [vmem:[%s0 + $0x24] sm:$0xf]
  %v34 = vld [vmem:[%s0 + $0x28] sm:$0xf]
  %v35 = vld [vmem:[%s0 + $0x2c] sm:$0xf]
  %v36 = vld [vmem:[%s0 + $0x30] sm:$0xf]
  %v37 = vld [vmem:[%s0 + $0x34] sm:$0xf]
  %v38 = vld [vmem:[%s0 + $0x38] sm:$0xf]
  %v39 = vld [vmem:[%s0 + $0x3c] sm:$0xf]
  %v40 = vld [vmem:[%s0 + $0x40] sm:$0xf]
  %v41 = vld [vmem:[%s0 + $0x44] sm:$0xf]
  %v42 = vld [vmem:[%s0 + $0x48] sm:$0xf]
  %v43 = vld [vmem:[%s0 + $0x4c] sm:$0xf]
  %v44 = vld [vmem:[%s0 + $0x50] sm:$0xf]
  %v45 = vld [vmem:[%s0 + $0x54] sm:$0xf]
  %v46 = vld [vmem:[%s0 + $0x58] sm:$0xf]
  %v47 = vld [vmem:[%s0 + $0x5c] sm:$0xf]
  %v48 = vld [vmem:[%s0 + $0x60] sm:$0xf]
  %v49 = vld [vmem:[%s0 + $0x64] sm:$0xf]
  %v50 = vld [vmem:[%s0 + $0x68] sm:$0xf]
  %v51 = vld [vmem:[%s0 + $0x6c] sm:$0xf]
  %v52 = vld [vmem:[%s0 + $0x70] sm:$0xf]
  %v53 = vld [vmem:[%s0 + $0x74] sm:$0xf]
  %v54 = vld [vmem:[%s0 + $0x78] sm:$0xf]
  %v55 = vld [vmem:[%s0 + $0x7c] sm:$0xf]
  %v56 = vld [vmem:[%s0 + $0x80] sm:$0xf]
  %v57 = vld [vmem:[%s0 + $0x84] sm:$0xf]
  %v58 = vld [vmem:[%s0 + $0x88] sm:$0xf]
  %v59 = vld [vmem:[%s0 + $0x8c] sm:$0xf]
  %v60 = vld [vmem:[%s0 + $0x90] sm:$0xf]
  %v61 = vld [vmem:[%s0 + $0x94] sm:$0xf]
  %v62 = vld [vmem:[%s0 + $0x98] sm:$0xf]
  %v63 = vld [vmem:[%s0 + $0x9c] sm:$0xf]
  %v64 = vld [vmem:[%s0 + $0xa0] sm:$0xf]
  %v65 = vld [vmem:[%s0 + $0xa4] sm:$0xf]
  %v66 = vld [vmem:[%s0 + $0xa8] sm:$0xf]
  %v67 = vld [vmem:[%s0 + $0xac] sm:$0xf]
  %v68 = vld [vmem:[%s0 + $0xb0] sm:$0xf]
  %v69 = vld [vmem:[%s0 + $0xb4] sm:$0xf]
  %v70 = vld [vmem:[%s0 + $0xb8] sm:$0xf]
  %v71 = vld [vmem:[%s0 + $0xbc] sm:$0xf]
  %v72 = vld [vmem:[%s0 + $0xc0] sm:$0xf]
  %v73 = vld [vmem:[%s0 + $0xc4] sm:$0xf]
  %v74 = vld [vmem:[%s0 + $0xc8] sm:$0xf]
  %v75 = vld [vmem:[%s0 + $0xcc] sm:$0xf]
  %v76 = vld [vmem:[%s0 + $0xd0] sm:$0xf]
  %v77 = vld [vmem:[%s0 + $0xd4] sm:$0xf]
  %v78 = vld [vmem:[%s0 + $0xd8] sm:$0xf]
  %v79 = vld [vmem:[%s0 + $0xdc] sm:$0xf]
  %v80 = vld [vmem:[%s0 + $0xe0] sm:$0xf]
  %v81 = vld [vmem:[%s0 + $0xe4] sm:$0xf]
  %v82 = vld [vmem:[%s0 + $0xe8] sm:$0xf]
  %v83 = vld [vmem:[%s0 + $0xec] sm:$0xf]
  %v84 = vld [vmem:[%s0 + $0xf0] sm:$0xf]
  %v85 = vld [vmem:[%s0 + $0xf4] sm:$0xf]
  %v86 = vld [vmem:[%s0 + $0xf8] sm:$0xf]
  %v87 = vld [vmem:[%s0 + $0xfc] sm:$0xf]
  %v88 = vld [vmem:[%s1] sm:$0xf]
  %v89 = vld [vmem:[%s1 + $0x4] sm:$0xf]
  %v154 = vunpack.c.l.b16 %v24
  %v155 = vunpack.c.l.b16 %v25
  %v156 = vunpack.c.l.b16 %v26
  %v157 = vunpack.c.l.b16 %v27
  %v158 = vunpack.c.l.b16 %v28
  %v159 = vunpack.c.l.b16 %v29
  %v160 = vunpack.c.l.b16 %v30
  %v161 = vunpack.c.l.b16 %v31
  %v162 = vunpack.c.l.b16 %v32
  %v163 = vunpack.c.l.b16 %v33
  %v164 = vunpack.c.l.b16 %v34
  %v165 = vunpack.c.l.b16 %v35
  %v166 = vunpack.c.l.b16 %v36
  %v167 = vunpack.c.l.b16 %v37
  %v168 = vunpack.c.l.b16 %v38
  %v169 = vunpack.c.l.b16 %v39
  %v170 = vunpack.c.l.b16 %v40
  %v171 = vunpack.c.l.b16 %v41
  %v172 = vunpack.c.l.b16 %v42
  %v173 = vunpack.c.l.b16 %v43
  %v174 = vunpack.c.l.b16 %v44
  %v175 = vunpack.c.l.b16 %v45
  %v176 = vunpack.c.l.b16 %v46
  %v177 = vunpack.c.l.b16 %v47
  %v178 = vunpack.c.l.b16 %v48
  %v179 = vunpack.c.l.b16 %v49
  %v180 = vunpack.c.l.b16 %v50
  %v181 = vunpack.c.l.b16 %v51
  %v182 = vunpack.c.l.b16 %v52
  %v183 = vunpack.c.l.b16 %v53
  %v184 = vunpack.c.l.b16 %v54
  %v185 = vunpack.c.l.b16 %v55
  %v186 = vunpack.c.l.b16 %v56
  %v187 = vunpack.c.l.b16 %v57
  %v188 = vunpack.c.l.b16 %v58
  %v189 = vunpack.c.l.b16 %v59
  %v190 = vunpack.c.l.b16 %v60
  %v191 = vunpack.c.l.b16 %v61
  %v192 = vunpack.c.l.b16 %v62
  %v193 = vunpack.c.l.b16 %v63
  %v194 = vunpack.c.l.b16 %v64
  %v195 = vunpack.c.l.b16 %v65
  %v196 = vunpack.c.l.b16 %v66
  %v197 = vunpack.c.l.b16 %v67
  %v198 = vunpack.c.l.b16 %v68
  %v199 = vunpack.c.l.b16 %v69
  %v200 = vunpack.c.l.b16 %v70
  %v201 = vunpack.c.l.b16 %v71
  %v202 = vunpack.c.l.b16 %v72
  %v203 = vunpack.c.l.b16 %v73
  %v204 = vunpack.c.l.b16 %v74
  %v205 = vunpack.c.l.b16 %v75
  %v206 = vunpack.c.l.b16 %v76
  %v207 = vunpack.c.l.b16 %v77
  %v208 = vunpack.c.l.b16 %v78
  %v209 = vunpack.c.l.b16 %v79
  %v210 = vunpack.c.l.b16 %v80
  %v211 = vunpack.c.l.b16 %v81
  %v212 = vunpack.c.l.b16 %v82
  %v213 = vunpack.c.l.b16 %v83
  %v214 = vunpack.c.l.b16 %v84
  %v215 = vunpack.c.l.b16 %v85
  %v216 = vunpack.c.l.b16 %v86
  %v217 = vunpack.c.l.b16 %v87
  %v218 = vpack.c.b16 %v155, %v154
  %v219 = vpack.c.b16 %v157, %v156
  %v220 = vpack.c.b16 %v159, %v158
  %v221 = vpack.c.b16 %v161, %v160
  %v222 = vpack.c.b16 %v163, %v162
  %v223 = vpack.c.b16 %v165, %v164
  %v224 = vpack.c.b16 %v167, %v166
  %v225 = vpack.c.b16 %v169, %v168
  %v226 = vpack.c.b16 %v171, %v170
  %v227 = vpack.c.b16 %v173, %v172
  %v228 = vpack.c.b16 %v175, %v174
  %v229 = vpack.c.b16 %v177, %v176
  %v230 = vpack.c.b16 %v179, %v178
  %v231 = vpack.c.b16 %v181, %v180
  %v232 = vpack.c.b16 %v183, %v182
  %v233 = vpack.c.b16 %v185, %v184
  %v234 = vpack.c.b16 %v187, %v186
  %v235 = vpack.c.b16 %v189, %v188
  %v236 = vpack.c.b16 %v191, %v190
  %v237 = vpack.c.b16 %v193, %v192
  %v238 = vpack.c.b16 %v195, %v194
  %v239 = vpack.c.b16 %v197, %v196
  %v240 = vpack.c.b16 %v199, %v198
  %v241 = vpack.c.b16 %v201, %v200
  %v242 = vpack.c.b16 %v203, %v202
  %v243 = vpack.c.b16 %v205, %v204
  %v244 = vpack.c.b16 %v207, %v206
  %v245 = vpack.c.b16 %v209, %v208
  %v246 = vpack.c.b16 %v211, %v210
  %v247 = vpack.c.b16 %v213, %v212
  %v248 = vpack.c.b16 %v215, %v214
  %v249 = vpack.c.b16 %v217, %v216
  %v252 = vunpack.c.l.b16 %v88
  %v253 = vunpack.c.l.b16 %v89
  %v254 = vpack.c.b16 %v253, %v252
  %vm256 = vcmask 130048
  %v258 = vsel %vm256, %v218, 0
  %v261 = vsel %vm256, %v219, 0
  %v264 = vsel %vm256, %v220, 0
  %v267 = vsel %vm256, %v221, 0
  %v270 = vsel %vm256, %v222, 0
  %v273 = vsel %vm256, %v223, 0
  %v276 = vsel %vm256, %v224, 0
  %v279 = vsel %vm256, %v225, 0
  %v282 = vsel %vm256, %v226, 0
  %v285 = vsel %vm256, %v227, 0
  %v288 = vsel %vm256, %v228, 0
  %v291 = vsel %vm256, %v229, 0
  %v294 = vsel %vm256, %v230, 0
  %v297 = vsel %vm256, %v231, 0
  %v300 = vsel %vm256, %v232, 0
  %v303 = vsel %vm256, %v233, 0
  %v306 = vsel %vm256, %v234, 0
  %v309 = vsel %vm256, %v235, 0
  %v312 = vsel %vm256, %v236, 0
  %v315 = vsel %vm256, %v237, 0
  %v318 = vsel %vm256, %v238, 0
  %v321 = vsel %vm256, %v239, 0
  %v324 = vsel %vm256, %v240, 0
  %v327 = vsel %vm256, %v241, 0
  %v330 = vsel %vm256, %v242, 0
  %v333 = vsel %vm256, %v243, 0
  %v336 = vsel %vm256, %v244, 0
  %v339 = vsel %vm256, %v245, 0
  %v342 = vsel %vm256, %v246, 0
  %v345 = vsel %vm256, %v247, 0
  %v348 = vsel %vm256, %v248, 0
  %v351 = vsel %vm256, %v249, 0
  %353 = vmatprep.subr.bf16.mxu0 0
  %354 = vmatpush1.bf16.msra.mxu0 0
  %355 = vmatprep.subr.bf16.mxu0 0
  %356 = vmatpush1.bf16.msra.mxu0 0
  %357 = vmatprep.subr.bf16.mxu0 0
  %358 = vmatpush1.bf16.msra.mxu0 0
  %359 = vmatprep.subr.bf16.mxu0 0
  %360 = vmatpush1.bf16.msra.mxu0 0
  %361 = vmatprep.subr.bf16.mxu0 0
  %362 = vmatpush1.bf16.msra.mxu0 0
  %363 = vmatprep.subr.bf16.mxu0 0
  %364 = vmatpush1.bf16.msra.mxu0 0
  %365 = vmatprep.subr.bf16.mxu0 0
  %366 = vmatpush1.bf16.msra.mxu0 0
  %367 = vmatprep.subr.bf16.mxu0 0
  %368 = vmatpush1.bf16.msra.mxu0 %v254
  %369 = vmatprep.subr.bf16.mxu0 0
  %370 = vmatpush2.bf16.msra.mxu0 0
  %371 = vmatprep.subr.bf16.mxu0 0
  %372 = vmatpush2.bf16.msra.mxu0 0
  %373 = vmatprep.subr.bf16.mxu0 0
  %374 = vmatpush2.bf16.msra.mxu0 0
  %375 = vmatprep.subr.bf16.mxu0 0
  %376 = vmatpush2.bf16.msra.mxu0 0
  %377 = vmatprep.subr.bf16.mxu0 0
  %378 = vmatpush2.bf16.msra.mxu0 0
  %379 = vmatprep.subr.bf16.mxu0 0
  %380 = vmatpush2.bf16.msra.mxu0 0
  %381 = vmatprep.subr.bf16.mxu0 0
  %382 = vmatpush2.bf16.msra.mxu0 0
  %383 = vmatprep.subr.bf16.mxu0 0
  %384 = vmatpush2.bf16.msra.mxu0 0
  %385 = vmatprep.mubr.bf16.mxu0 0
  %386 = vmatmul.mubr.bf16.gmra.mxu0 %v258
  %v387 = vpop.f32.mrf.mxu0
  %v388 = vadd.f32 0.0, %v387
  %v389 = vpop.f32.mrf.mxu0
  %v390 = vpop.f32.mrf.mxu0
  %v391 = vadd.f32 0.0, %v390
  %v392 = vpop.f32.mrf.mxu0
  %393 = vmatprep.mubr.bf16.mxu0 0
  %394 = vmatmul.mubr.bf16.gmra.mxu0 %v261
  %v395 = vpop.f32.mrf.mxu0
  %v396 = vadd.f32 0.0, %v395
  %v397 = vpop.f32.mrf.mxu0
  %v398 = vpop.f32.mrf.mxu0
  %v399 = vadd.f32 0.0, %v398
  %v400 = vpop.f32.mrf.mxu0
  %401 = vmatprep.mubr.bf16.mxu0 0
  %402 = vmatmul.mubr.bf16.gmra.mxu0 %v264
  %v403 = vpop.f32.mrf.mxu0
  %v404 = vadd.f32 0.0, %v403
  %v405 = vpop.f32.mrf.mxu0
  %v406 = vpop.f32.mrf.mxu0
  %v407 = vadd.f32 0.0, %v406
  %v408 = vpop.f32.mrf.mxu0
  %409 = vmatprep.mubr.bf16.mxu0 0
  %410 = vmatmul.mubr.bf16.gmra.mxu0 %v267
  %v411 = vpop.f32.mrf.mxu0
  %v412 = vadd.f32 0.0, %v411
  %v413 = vpop.f32.mrf.mxu0
  %v414 = vpop.f32.mrf.mxu0
  %v415 = vadd.f32 0.0, %v414
  %v416 = vpop.f32.mrf.mxu0
  %417 = vmatprep.mubr.bf16.mxu0 0
  %418 = vmatmul.mubr.bf16.gmra.mxu0 %v270
  %v419 = vpop.f32.mrf.mxu0
  %v420 = vadd.f32 0.0, %v419
  %v421 = vpop.f32.mrf.mxu0
  %v422 = vpop.f32.mrf.mxu0
  %v423 = vadd.f32 0.0, %v422
  %v424 = vpop.f32.mrf.mxu0
  %425 = vmatprep.mubr.bf16.mxu0 0
  %426 = vmatmul.mubr.bf16.gmra.mxu0 %v273
  %v427 = vpop.f32.mrf.mxu0
  %v428 = vadd.f32 0.0, %v427
  %v429 = vpop.f32.mrf.mxu0
  %v430 = vpop.f32.mrf.mxu0
  %v431 = vadd.f32 0.0, %v430
  %v432 = vpop.f32.mrf.mxu0
  %433 = vmatprep.mubr.bf16.mxu0 0
  %434 = vmatmul.mubr.bf16.gmra.mxu0 %v276
  %v435 = vpop.f32.mrf.mxu0
  %v436 = vadd.f32 0.0, %v435
  %v437 = vpop.f32.mrf.mxu0
  %v438 = vpop.f32.mrf.mxu0
  %v439 = vadd.f32 0.0, %v438
  %v440 = vpop.f32.mrf.mxu0
  %441 = vmatprep.mubr.bf16.mxu0 0
  %442 = vmatmul.mubr.bf16.gmra.mxu0 %v279
  %v443 = vpop.f32.mrf.mxu0
  %v444 = vadd.f32 0.0, %v443
  %v445 = vpop.f32.mrf.mxu0
  %v446 = vpop.f32.mrf.mxu0
  %v447 = vadd.f32 0.0, %v446
  %v448 = vpop.f32.mrf.mxu0
  %449 = vmatprep.mubr.bf16.mxu0 0
  %450 = vmatmul.mubr.bf16.gmra.mxu0 %v282
  %v451 = vpop.f32.mrf.mxu0
  %v452 = vadd.f32 0.0, %v451
  %v453 = vpop.f32.mrf.mxu0
  %v454 = vpop.f32.mrf.mxu0
  %v455 = vadd.f32 0.0, %v454
  %v456 = vpop.f32.mrf.mxu0
  %457 = vmatprep.mubr.bf16.mxu0 0
  %458 = vmatmul.mubr.bf16.gmra.mxu0 %v285
  %v459 = vpop.f32.mrf.mxu0
  %v460 = vadd.f32 0.0, %v459
  %v461 = vpop.f32.mrf.mxu0
  %v462 = vpop.f32.mrf.mxu0
  %v463 = vadd.f32 0.0, %v462
  %v464 = vpop.f32.mrf.mxu0
  %465 = vmatprep.mubr.bf16.mxu0 0
  %466 = vmatmul.mubr.bf16.gmra.mxu0 %v288
  %v467 = vpop.f32.mrf.mxu0
  %v468 = vadd.f32 0.0, %v467
  %v469 = vpop.f32.mrf.mxu0
  %v470 = vpop.f32.mrf.mxu0
  %v471 = vadd.f32 0.0, %v470
  %v472 = vpop.f32.mrf.mxu0
  %473 = vmatprep.mubr.bf16.mxu0 0
  %474 = vmatmul.mubr.bf16.gmra.mxu0 %v291
  %v475 = vpop.f32.mrf.mxu0
  %v476 = vadd.f32 0.0, %v475
  %v477 = vpop.f32.mrf.mxu0
  %v478 = vpop.f32.mrf.mxu0
  %v479 = vadd.f32 0.0, %v478
  %v480 = vpop.f32.mrf.mxu0
  %481 = vmatprep.mubr.bf16.mxu0 0
  %482 = vmatmul.mubr.bf16.gmra.mxu0 %v294
  %v483 = vpop.f32.mrf.mxu0
  %v484 = vadd.f32 0.0, %v483
  %v485 = vpop.f32.mrf.mxu0
  %v486 = vpop.f32.mrf.mxu0
  %v487 = vadd.f32 0.0, %v486
  %v488 = vpop.f32.mrf.mxu0
  %489 = vmatprep.mubr.bf16.mxu0 0
  %490 = vmatmul.mubr.bf16.gmra.mxu0 %v297
  %v491 = vpop.f32.mrf.mxu0
  %v492 = vadd.f32 0.0, %v491
  %v493 = vpop.f32.mrf.mxu0
  %v494 = vpop.f32.mrf.mxu0
  %v495 = vadd.f32 0.0, %v494
  %v496 = vpop.f32.mrf.mxu0
  %497 = vmatprep.mubr.bf16.mxu0 0
  %498 = vmatmul.mubr.bf16.gmra.mxu0 %v300
  %v499 = vpop.f32.mrf.mxu0
  %v500 = vadd.f32 0.0, %v499
  %v501 = vpop.f32.mrf.mxu0
  %v502 = vpop.f32.mrf.mxu0
  %v503 = vadd.f32 0.0, %v502
  %v504 = vpop.f32.mrf.mxu0
  %505 = vmatprep.mubr.bf16.mxu0 0
  %506 = vmatmul.mubr.bf16.gmra.mxu0 %v303
  %v507 = vpop.f32.mrf.mxu0
  %v508 = vadd.f32 0.0, %v507
  %v509 = vpop.f32.mrf.mxu0
  %v510 = vpop.f32.mrf.mxu0
  %v511 = vadd.f32 0.0, %v510
  %v512 = vpop.f32.mrf.mxu0
  %513 = vmatprep.mubr.bf16.mxu0 0
  %514 = vmatmul.mubr.bf16.gmra.mxu0 %v306
  %v515 = vpop.f32.mrf.mxu0
  %v516 = vadd.f32 0.0, %v515
  %v517 = vpop.f32.mrf.mxu0
  %v518 = vpop.f32.mrf.mxu0
  %v519 = vadd.f32 0.0, %v518
  %v520 = vpop.f32.mrf.mxu0
  %521 = vmatprep.mubr.bf16.mxu0 0
  %522 = vmatmul.mubr.bf16.gmra.mxu0 %v309
  %v523 = vpop.f32.mrf.mxu0
  %v524 = vadd.f32 0.0, %v523
  %v525 = vpop.f32.mrf.mxu0
  %v526 = vpop.f32.mrf.mxu0
  %v527 = vadd.f32 0.0, %v526
  %v528 = vpop.f32.mrf.mxu0
  %529 = vmatprep.mubr.bf16.mxu0 0
  %530 = vmatmul.mubr.bf16.gmra.mxu0 %v312
  %v531 = vpop.f32.mrf.mxu0
  %v532 = vadd.f32 0.0, %v531
  %v533 = vpop.f32.mrf.mxu0
  %v534 = vpop.f32.mrf.mxu0
  %v535 = vadd.f32 0.0, %v534
  %v536 = vpop.f32.mrf.mxu0
  %537 = vmatprep.mubr.bf16.mxu0 0
  %538 = vmatmul.mubr.bf16.gmra.mxu0 %v315
  %v539 = vpop.f32.mrf.mxu0
  %v540 = vadd.f32 0.0, %v539
  %v541 = vpop.f32.mrf.mxu0
  %v542 = vpop.f32.mrf.mxu0
  %v543 = vadd.f32 0.0, %v542
  %v544 = vpop.f32.mrf.mxu0
  %545 = vmatprep.mubr.bf16.mxu0 0
  %546 = vmatmul.mubr.bf16.gmra.mxu0 %v318
  %v547 = vpop.f32.mrf.mxu0
  %v548 = vadd.f32 0.0, %v547
  %v549 = vpop.f32.mrf.mxu0
  %v550 = vpop.f32.mrf.mxu0
  %v551 = vadd.f32 0.0, %v550
  %v552 = vpop.f32.mrf.mxu0
  %553 = vmatprep.mubr.bf16.mxu0 0
  %554 = vmatmul.mubr.bf16.gmra.mxu0 %v321
  %v555 = vpop.f32.mrf.mxu0
  %v556 = vadd.f32 0.0, %v555
  %v557 = vpop.f32.mrf.mxu0
  %v558 = vpop.f32.mrf.mxu0
  %v559 = vadd.f32 0.0, %v558
  %v560 = vpop.f32.mrf.mxu0
  %561 = vmatprep.mubr.bf16.mxu0 0
  %562 = vmatmul.mubr.bf16.gmra.mxu0 %v324
  %v563 = vpop.f32.mrf.mxu0
  %v564 = vadd.f32 0.0, %v563
  %v565 = vpop.f32.mrf.mxu0
  %v566 = vpop.f32.mrf.mxu0
  %v567 = vadd.f32 0.0, %v566
  %v568 = vpop.f32.mrf.mxu0
  %569 = vmatprep.mubr.bf16.mxu0 0
  %570 = vmatmul.mubr.bf16.gmra.mxu0 %v327
  %v571 = vpop.f32.mrf.mxu0
  %v572 = vadd.f32 0.0, %v571
  %v573 = vpop.f32.mrf.mxu0
  %v574 = vpop.f32.mrf.mxu0
  %v575 = vadd.f32 0.0, %v574
  %v576 = vpop.f32.mrf.mxu0
  %577 = vmatprep.mubr.bf16.mxu0 0
  %578 = vmatmul.mubr.bf16.gmra.mxu0 %v330
  %v579 = vpop.f32.mrf.mxu0
  %v580 = vadd.f32 0.0, %v579
  %v581 = vpop.f32.mrf.mxu0
  %v582 = vpop.f32.mrf.mxu0
  %v583 = vadd.f32 0.0, %v582
  %v584 = vpop.f32.mrf.mxu0
  %585 = vmatprep.mubr.bf16.mxu0 0
  %586 = vmatmul.mubr.bf16.gmra.mxu0 %v333
  %v587 = vpop.f32.mrf.mxu0
  %v588 = vadd.f32 0.0, %v587
  %v589 = vpop.f32.mrf.mxu0
  %v590 = vpop.f32.mrf.mxu0
  %v591 = vadd.f32 0.0, %v590
  %v592 = vpop.f32.mrf.mxu0
  %593 = vmatprep.mubr.bf16.mxu0 0
  %594 = vmatmul.mubr.bf16.gmra.mxu0 %v336
  %v595 = vpop.f32.mrf.mxu0
  %v596 = vadd.f32 0.0, %v595
  %v597 = vpop.f32.mrf.mxu0
  %v598 = vpop.f32.mrf.mxu0
  %v599 = vadd.f32 0.0, %v598
  %v600 = vpop.f32.mrf.mxu0
  %601 = vmatprep.mubr.bf16.mxu0 0
  %602 = vmatmul.mubr.bf16.gmra.mxu0 %v339
  %v603 = vpop.f32.mrf.mxu0
  %v604 = vadd.f32 0.0, %v603
  %v605 = vpop.f32.mrf.mxu0
  %v606 = vpop.f32.mrf.mxu0
  %v607 = vadd.f32 0.0, %v606
  %v608 = vpop.f32.mrf.mxu0
  %609 = vmatprep.mubr.bf16.mxu0 0
  %610 = vmatmul.mubr.bf16.gmra.mxu0 %v342
  %v611 = vpop.f32.mrf.mxu0
  %v612 = vadd.f32 0.0, %v611
  %v613 = vpop.f32.mrf.mxu0
  %v614 = vpop.f32.mrf.mxu0
  %v615 = vadd.f32 0.0, %v614
  %v616 = vpop.f32.mrf.mxu0
  %617 = vmatprep.mubr.bf16.mxu0 0
  %618 = vmatmul.mubr.bf16.gmra.mxu0 %v345
  %v619 = vpop.f32.mrf.mxu0
  %v620 = vadd.f32 0.0, %v619
  %v621 = vpop.f32.mrf.mxu0
  %v622 = vpop.f32.mrf.mxu0
  %v623 = vadd.f32 0.0, %v622
  %v624 = vpop.f32.mrf.mxu0
  %625 = vmatprep.mubr.bf16.mxu0 0
  %626 = vmatmul.mubr.bf16.gmra.mxu0 %v348
  %v627 = vpop.f32.mrf.mxu0
  %v628 = vadd.f32 0.0, %v627
  %v629 = vpop.f32.mrf.mxu0
  %v630 = vpop.f32.mrf.mxu0
  %v631 = vadd.f32 0.0, %v630
  %v632 = vpop.f32.mrf.mxu0
  %633 = vmatprep.mubr.bf16.mxu0 0
  %634 = vmatmul.mubr.bf16.gmra.mxu0 %v351
  %v635 = vpop.f32.mrf.mxu0
  %v636 = vadd.f32 0.0, %v635
  %v637 = vpop.f32.mrf.mxu0
  %v638 = vpop.f32.mrf.mxu0
  %v639 = vadd.f32 0.0, %v638
  %v640 = vpop.f32.mrf.mxu0
  %641 = vdwg.mxu0
  %s642 = smul.u32 0, 512
  %s643 = scalar_lea.vmem [#allocation2], %s642
  %644 = vst [vmem:[%s643] sm:$0xff] %v388
  %645 = vst [vmem:[%s643 + $0x8] sm:$0xff] %v391
  %646 = vst [vmem:[%s643 + $0x10] sm:$0xff] %v396
  %647 = vst [vmem:[%s643 + $0x18] sm:$0xff] %v399
  %648 = vst [vmem:[%s643 + $0x20] sm:$0xff] %v404
  %649 = vst [vmem:[%s643 + $0x28] sm:$0xff] %v407
  %650 = vst [vmem:[%s643 + $0x30] sm:$0xff] %v412
  %651 = vst [vmem:[%s643 + $0x38] sm:$0xff] %v415
  %652 = vst [vmem:[%s643 + $0x40] sm:$0xff] %v420
  %653 = vst [vmem:[%s643 + $0x48] sm:$0xff] %v423
  %654 = vst [vmem:[%s643 + $0x50] sm:$0xff] %v428
  %655 = vst [vmem:[%s643 + $0x58] sm:$0xff] %v431
  %656 = vst [vmem:[%s643 + $0x60] sm:$0xff] %v436
  %657 = vst [vmem:[%s643 + $0x68] sm:$0xff] %v439
  %658 = vst [vmem:[%s643 + $0x70] sm:$0xff] %v444
  %659 = vst [vmem:[%s643 + $0x78] sm:$0xff] %v447
  %660 = vst [vmem:[%s643 + $0x80] sm:$0xff] %v452
  %661 = vst [vmem:[%s643 + $0x88] sm:$0xff] %v455
  %662 = vst [vmem:[%s643 + $0x90] sm:$0xff] %v460
  %663 = vst [vmem:[%s643 + $0x98] sm:$0xff] %v463
  %664 = vst [vmem:[%s643 + $0xa0] sm:$0xff] %v468
  %665 = vst [vmem:[%s643 + $0xa8] sm:$0xff] %v471
  %666 = vst [vmem:[%s643 + $0xb0] sm:$0xff] %v476
  %667 = vst [vmem:[%s643 + $0xb8] sm:$0xff] %v479
  %668 = vst [vmem:[%s643 + $0xc0] sm:$0xff] %v484
  %669 = vst [vmem:[%s643 + $0xc8] sm:$0xff] %v487
  %670 = vst [vmem:[%s643 + $0xd0] sm:$0xff] %v492
  %671 = vst [vmem:[%s643 + $0xd8] sm:$0xff] %v495
  %672 = vst [vmem:[%s643 + $0xe0] sm:$0xff] %v500
  %673 = vst [vmem:[%s643 + $0xe8] sm:$0xff] %v503
  %674 = vst [vmem:[%s643 + $0xf0] sm:$0xff] %v508
  %675 = vst [vmem:[%s643 + $0xf8] sm:$0xff] %v511
  %676 = vst [vmem:[%s643 + $0x100] sm:$0xff] %v516
  %677 = vst [vmem:[%s643 + $0x108] sm:$0xff] %v519
  %678 = vst [vmem:[%s643 + $0x110] sm:$0xff] %v524
  %679 = vst [vmem:[%s643 + $0x118] sm:$0xff] %v527
  %680 = vst [vmem:[%s643 + $0x120] sm:$0xff] %v532
  %681 = vst [vmem:[%s643 + $0x128] sm:$0xff] %v535
  %682 = vst [vmem:[%s643 + $0x130] sm:$0xff] %v540
  %683 = vst [vmem:[%s643 + $0x138] sm:$0xff] %v543
  %684 = vst [vmem:[%s643 + $0x140] sm:$0xff] %v548
  %685 = vst [vmem:[%s643 + $0x148] sm:$0xff] %v551
  %686 = vst [vmem:[%s643 + $0x150] sm:$0xff] %v556
  %687 = vst [vmem:[%s643 + $0x158] sm:$0xff] %v559
  %688 = vst [vmem:[%s643 + $0x160] sm:$0xff] %v564
  %689 = vst [vmem:[%s643 + $0x168] sm:$0xff] %v567
  %690 = vst [vmem:[%s643 + $0x170] sm:$0xff] %v572
  %691 = vst [vmem:[%s643 + $0x178] sm:$0xff] %v575
  %692 = vst [vmem:[%s643 + $0x180] sm:$0xff] %v580
  %693 = vst [vmem:[%s643 + $0x188] sm:$0xff] %v583
  %694 = vst [vmem:[%s643 + $0x190] sm:$0xff] %v588
  %695 = vst [vmem:[%s643 + $0x198] sm:$0xff] %v591
  %696 = vst [vmem:[%s643 + $0x1a0] sm:$0xff] %v596
  %697 = vst [vmem:[%s643 + $0x1a8] sm:$0xff] %v599
  %698 = vst [vmem:[%s643 + $0x1b0] sm:$0xff] %v604
  %699 = vst [vmem:[%s643 + $0x1b8] sm:$0xff] %v607
  %700 = vst [vmem:[%s643 + $0x1c0] sm:$0xff] %v612
  %701 = vst [vmem:[%s643 + $0x1c8] sm:$0xff] %v615
  %702 = vst [vmem:[%s643 + $0x1d0] sm:$0xff] %v620
  %703 = vst [vmem:[%s643 + $0x1d8] sm:$0xff] %v623
  %704 = vst [vmem:[%s643 + $0x1e0] sm:$0xff] %v628
  %705 = vst [vmem:[%s643 + $0x1e8] sm:$0xff] %v631
  %706 = vst [vmem:[%s643 + $0x1f0] sm:$0xff] %v636
  %707 = vst [vmem:[%s643 + $0x1f8] sm:$0xff] %v639
  %v708 = vld [vmem:[#allocation3] sm:$0x1]
  %v709 = vadd.f32 %v388, %v391
  %v710 = vadd.f32 %v709, %v396
  %v711 = vadd.f32 %v710, %v399
  %v712 = vadd.f32 %v711, %v404
  %v713 = vadd.f32 %v712, %v407
  %v714 = vadd.f32 %v713, %v412
  %v715 = vadd.f32 %v714, %v415
  %v716 = vadd.f32 %v715, %v420
  %v717 = vadd.f32 %v716, %v423
  %v718 = vadd.f32 %v717, %v428
  %v719 = vadd.f32 %v718, %v431
  %v720 = vadd.f32 %v719, %v436
  %v721 = vadd.f32 %v720, %v439
  %v722 = vadd.f32 %v721, %v444
  %v723 = vadd.f32 %v722, %v447
  %v724 = vadd.f32 %v723, %v452
  %v725 = vadd.f32 %v724, %v455
  %v726 = vadd.f32 %v725, %v460
  %v727 = vadd.f32 %v726, %v463
  %v728 = vadd.f32 %v727, %v468
  %v729 = vadd.f32 %v728, %v471
  %v730 = vadd.f32 %v729, %v476
  %v731 = vadd.f32 %v730, %v479
  %v732 = vadd.f32 %v731, %v484
  %v733 = vadd.f32 %v732, %v487
  %v734 = vadd.f32 %v733, %v492
  %v735 = vadd.f32 %v734, %v495
  %v736 = vadd.f32 %v735, %v500
  %v737 = vadd.f32 %v736, %v503
  %v738 = vadd.f32 %v737, %v508
  %v739 = vadd.f32 %v738, %v511
  %v740 = vadd.f32 %v739, %v516
  %v741 = vadd.f32 %v740, %v519
  %v742 = vadd.f32 %v741, %v524
  %v743 = vadd.f32 %v742, %v527
  %v744 = vadd.f32 %v743, %v532
  %v745 = vadd.f32 %v744, %v535
  %v746 = vadd.f32 %v745, %v540
  %v747 = vadd.f32 %v746, %v543
  %v748 = vadd.f32 %v747, %v548
  %v749 = vadd.f32 %v748, %v551
  %v750 = vadd.f32 %v749, %v556
  %v751 = vadd.f32 %v750, %v559
  %v752 = vadd.f32 %v751, %v564
  %v753 = vadd.f32 %v752, %v567
  %v754 = vadd.f32 %v753, %v572
  %v755 = vadd.f32 %v754, %v575
  %v756 = vadd.f32 %v755, %v580
  %v757 = vadd.f32 %v756, %v583
  %v758 = vadd.f32 %v757, %v588
  %v759 = vadd.f32 %v758, %v591
  %v760 = vadd.f32 %v759, %v596
  %v761 = vadd.f32 %v760, %v599
  %v762 = vadd.f32 %v761, %v604
  %v763 = vadd.f32 %v762, %v607
  %v764 = vadd.f32 %v763, %v612
  %v765 = vadd.f32 %v764, %v615
  %v766 = vadd.f32 %v765, %v620
  %v767 = vadd.f32 %v766, %v623
  %v768 = vadd.f32 %v767, %v628
  %v769 = vadd.f32 %v768, %v631
  %v770 = vadd.f32 %v769, %v636
  %v771 = vadd.f32 %v770, %v639
  %v772 = vrot.slane %v771, 4
  %v773 = vadd.f32 %v771, %v772
  %v774 = vrot.slane %v773, 2
  %v775 = vadd.f32 %v773, %v774
  %v776 = vrot.slane %v775, 1
  %v777 = vadd.f32 %v775, %v776
  %v778 = vadd.f32 %v708, %v777
  %779 = vst [vmem:[#allocation3] sm:$0x1] %v778
  %v780 = vld [vmem:[#allocation4] sm:$0x1]
  %v781 = vmul.f32 %v388, %v388
  %v782 = vmul.f32 %v391, %v391
  %v783 = vmul.f32 %v396, %v396
  %v784 = vmul.f32 %v399, %v399
  %v785 = vmul.f32 %v404, %v404
  %v786 = vmul.f32 %v407, %v407
  %v787 = vmul.f32 %v412, %v412
  %v788 = vmul.f32 %v415, %v415
  %v789 = vmul.f32 %v420, %v420
  %v790 = vmul.f32 %v423, %v423
  %v791 = vmul.f32 %v428, %v428
  %v792 = vmul.f32 %v431, %v431
  %v793 = vmul.f32 %v436, %v436
  %v794 = vmul.f32 %v439, %v439
  %v795 = vmul.f32 %v444, %v444
  %v796 = vmul.f32 %v447, %v447
  %v797 = vmul.f32 %v452, %v452
  %v798 = vmul.f32 %v455, %v455
  %v799 = vmul.f32 %v460, %v460
  %v800 = vmul.f32 %v463, %v463
  %v801 = vmul.f32 %v468, %v468
  %v802 = vmul.f32 %v471, %v471
  %v803 = vmul.f32 %v476, %v476
  %v804 = vmul.f32 %v479, %v479
  %v805 = vmul.f32 %v484, %v484
  %v806 = vmul.f32 %v487, %v487
  %v807 = vmul.f32 %v492, %v492
  %v808 = vmul.f32 %v495, %v495
  %v809 = vmul.f32 %v500, %v500
  %v810 = vmul.f32 %v503, %v503
  %v811 = vmul.f32 %v508, %v508
  %v812 = vmul.f32 %v511, %v511
  %v813 = vmul.f32 %v516, %v516
  %v814 = vmul.f32 %v519, %v519
  %v815 = vmul.f32 %v524, %v524
  %v816 = vmul.f32 %v527, %v527
  %v817 = vmul.f32 %v532, %v532
  %v818 = vmul.f32 %v535, %v535
  %v819 = vmul.f32 %v540, %v540
  %v820 = vmul.f32 %v543, %v543
  %v821 = vmul.f32 %v548, %v548
  %v822 = vmul.f32 %v551, %v551
  %v823 = vmul.f32 %v556, %v556
  %v824 = vmul.f32 %v559, %v559
  %v825 = vmul.f32 %v564, %v564
  %v826 = vmul.f32 %v567, %v567
  %v827 = vmul.f32 %v572, %v572
  %v828 = vmul.f32 %v575, %v575
  %v829 = vmul.f32 %v580, %v580
  %v830 = vmul.f32 %v583, %v583
  %v831 = vmul.f32 %v588, %v588
  %v832 = vmul.f32 %v591, %v591
  %v833 = vmul.f32 %v596, %v596
  %v834 = vmul.f32 %v599, %v599
  %v835 = vmul.f32 %v604, %v604
  %v836 = vmul.f32 %v607, %v607
  %v837 = vmul.f32 %v612, %v612
  %v838 = vmul.f32 %v615, %v615
  %v839 = vmul.f32 %v620, %v620
  %v840 = vmul.f32 %v623, %v623
  %v841 = vmul.f32 %v628, %v628
  %v842 = vmul.f32 %v631, %v631
  %v843 = vmul.f32 %v636, %v636
  %v844 = vmul.f32 %v639, %v639
  %v845 = vadd.f32 %v781, %v782
  %v846 = vadd.f32 %v845, %v783
  %v847 = vadd.f32 %v846, %v784
  %v848 = vadd.f32 %v847, %v785
  %v849 = vadd.f32 %v848, %v786
  %v850 = vadd.f32 %v849, %v787
  %v851 = vadd.f32 %v850, %v788
  %v852 = vadd.f32 %v851, %v789
  %v853 = vadd.f32 %v852, %v790
  %v854 = vadd.f32 %v853, %v791
  %v855 = vadd.f32 %v854, %v792
  %v856 = vadd.f32 %v855, %v793
  %v857 = vadd.f32 %v856, %v794
  %v858 = vadd.f32 %v857, %v795
  %v859 = vadd.f32 %v858, %v796
  %v860 = vadd.f32 %v859, %v797
  %v861 = vadd.f32 %v860, %v798
  %v862 = vadd.f32 %v861, %v799
  %v863 = vadd.f32 %v862, %v800
  %v864 = vadd.f32 %v863, %v801
  %v865 = vadd.f32 %v864, %v802
  %v866 = vadd.f32 %v865, %v803
  %v867 = vadd.f32 %v866, %v804
  %v868 = vadd.f32 %v867, %v805
  %v869 = vadd.f32 %v868, %v806
  %v870 = vadd.f32 %v869, %v807
  %v871 = vadd.f32 %v870, %v808
  %v872 = vadd.f32 %v871, %v809
  %v873 = vadd.f32 %v872, %v810
  %v874 = vadd.f32 %v873, %v811
  %v875 = vadd.f32 %v874, %v812
  %v876 = vadd.f32 %v875, %v813
  %v877 = vadd.f32 %v876, %v814
  %v878 = vadd.f32 %v877, %v815
  %v879 = vadd.f32 %v878, %v816
  %v880 = vadd.f32 %v879, %v817
  %v881 = vadd.f32 %v880, %v818
  %v882 = vadd.f32 %v881, %v819
  %v883 = vadd.f32 %v882, %v820
  %v884 = vadd.f32 %v883, %v821
  %v885 = vadd.f32 %v884, %v822
  %v886 = vadd.f32 %v885, %v823
  %v887 = vadd.f32 %v886, %v824
  %v888 = vadd.f32 %v887, %v825
  %v889 = vadd.f32 %v888, %v826
  %v890 = vadd.f32 %v889, %v827
  %v891 = vadd.f32 %v890, %v828
  %v892 = vadd.f32 %v891, %v829
  %v893 = vadd.f32 %v892, %v830
  %v894 = vadd.f32 %v893, %v831
  %v895 = vadd.f32 %v894, %v832
  %v896 = vadd.f32 %v895, %v833
  %v897 = vadd.f32 %v896, %v834
  %v898 = vadd.f32 %v897, %v835
  %v899 = vadd.f32 %v898, %v836
  %v900 = vadd.f32 %v899, %v837
  %v901 = vadd.f32 %v900, %v838
  %v902 = vadd.f32 %v901, %v839
  %v903 = vadd.f32 %v902, %v840
  %v904 = vadd.f32 %v903, %v841
  %v905 = vadd.f32 %v904, %v842
  %v906 = vadd.f32 %v905, %v843
  %v907 = vadd.f32 %v906, %v844
  %v908 = vrot.slane %v907, 4
  %v909 = vadd.f32 %v907, %v908
  %v910 = vrot.slane %v909, 2
  %v911 = vadd.f32 %v909, %v910
  %v912 = vrot.slane %v911, 1
  %v913 = vadd.f32 %v911, %v912
  %v914 = vadd.f32 %v780, %v913
  %915 = vst [vmem:[#allocation4] sm:$0x1] %v914
  // Predicated region
  $region22: #{skip_encoder_forward.6} parent=0 // pred_check
    %p916 = pneg %p18
  $region23: #{skip_encoder_forward.6} parent=0 // pred_check_branch
    %918 = sbr.rel (%p916) target = $region25
  $region24: #{skip_encoder_forward.6} parent=0 // pred_region
    %v919 = vld [vmem:[#allocation3] sm:$0x1]
    %v920 = vmul.f32 %v919, 0.001953125
    %v921 = vld [vmem:[#allocation4] sm:$0x1]
    %v922 = vmul.f32 %v921, 0.001953125
    %v923 = vmul.f32 %v920, %v920
    %v924 = vsub.f32 %v922, %v923
    %v925 = vmax.f32 %v924, 0.0
    %v926 = vld [vmem:[%s2] sm:$0x1]
    %v927 = vadd.f32 %v925, 1e-05
    %v928 = vrsqrt.pop %v927
    %v929 = vmul.f32 %v926, %v928
    %v930 = vld [vmem:[%s3] sm:$0x1]
    %v931 = vmul.f32 %v920, %v929
    %v932 = vsub.f32 %v930, %v931
    %v933 = vld [vmem:[#allocation2] sm:$0xff]
    %v934 = vld [vmem:[#allocation2 + $0x8] sm:$0xff]
    %v935 = vld [vmem:[#allocation2 + $0x10] sm:$0xff]
    %v936 = vld [vmem:[#allocation2 + $0x18] sm:$0xff]
    %v937 = vld [vmem:[#allocation2 + $0x20] sm:$0xff]
    %v938 = vld [vmem:[#allocation2 + $0x28] sm:$0xff]
    %v939 = vld [vmem:[#allocation2 + $0x30] sm:$0xff]
    %v940 = vld [vmem:[#allocation2 + $0x38] sm:$0xff]
    %v941 = vld [vmem:[#allocation2 + $0x40] sm:$0xff]
    %v942 = vld [vmem:[#allocation2 + $0x48] sm:$0xff]
    %v943 = vld [vmem:[#allocation2 + $0x50] sm:$0xff]
    %v944 = vld [vmem:[#allocation2 + $0x58] sm:$0xff]
    %v945 = vld [vmem:[#allocation2 + $0x60] sm:$0xff]
    %v946 = vld [vmem:[#allocation2 + $0x68] sm:$0xff]
    %v947 = vld [vmem:[#allocation2 + $0x70] sm:$0xff]
    %v948 = vld [vmem:[#allocation2 + $0x78] sm:$0xff]
    %v949 = vld [vmem:[#allocation2 + $0x80] sm:$0xff]
    %v950 = vld [vmem:[#allocation2 + $0x88] sm:$0xff]
    %v951 = vld [vmem:[#allocation2 + $0x90] sm:$0xff]
    %v952 = vld [vmem:[#allocation2 + $0x98] sm:$0xff]
    %v953 = vld [vmem:[#allocation2 + $0xa0] sm:$0xff]
    %v954 = vld [vmem:[#allocation2 + $0xa8] sm:$0xff]
    %v955 = vld [vmem:[#allocation2 + $0xb0] sm:$0xff]
    %v956 = vld [vmem:[#allocation2 + $0xb8] sm:$0xff]
    %v957 = vld [vmem:[#allocation2 + $0xc0] sm:$0xff]
    %v958 = vld [vmem:[#allocation2 + $0xc8] sm:$0xff]
    %v959 = vld [vmem:[#allocation2 + $0xd0] sm:$0xff]
    %v960 = vld [vmem:[#allocation2 + $0xd8] sm:$0xff]
    %v961 = vld [vmem:[#allocation2 + $0xe0] sm:$0xff]
    %v962 = vld [vmem:[#allocation2 + $0xe8] sm:$0xff]
    %v963 = vld [vmem:[#allocation2 + $0xf0] sm:$0xff]
    %v964 = vld [vmem:[#allocation2 + $0xf8] sm:$0xff]
    %v965 = vld [vmem:[#allocation2 + $0x100] sm:$0xff]
    %v966 = vld [vmem:[#allocation2 + $0x108] sm:$0xff]
    %v967 = vld [vmem:[#allocation2 + $0x110] sm:$0xff]
    %v968 = vld [vmem:[#allocation2 + $0x118] sm:$0xff]
    %v969 = vld [vmem:[#allocation2 + $0x120] sm:$0xff]
    %v970 = vld [vmem:[#allocation2 + $0x128] sm:$0xff]
    %v971 = vld [vmem:[#allocation2 + $0x130] sm:$0xff]
    %v972 = vld [vmem:[#allocation2 + $0x138] sm:$0xff]
    %v973 = vld [vmem:[#allocation2 + $0x140] sm:$0xff]
    %v974 = vld [vmem:[#allocation2 + $0x148] sm:$0xff]
    %v975 = vld [vmem:[#allocation2 + $0x150] sm:$0xff]
    %v976 = vld [vmem:[#allocation2 + $0x158] sm:$0xff]
    %v977 = vld [vmem:[#allocation2 + $0x160] sm:$0xff]
    %v978 = vld [vmem:[#allocation2 + $0x168] sm:$0xff]
    %v979 = vld [vmem:[#allocation2 + $0x170] sm:$0xff]
    %v980 = vld [vmem:[#allocation2 + $0x178] sm:$0xff]
    %v981 = vld [vmem:[#allocation2 + $0x180] sm:$0xff]
    %v982 = vld [vmem:[#allocation2 + $0x188] sm:$0xff]
    %v983 = vld [vmem:[#allocation2 + $0x190] sm:$0xff]
    %v984 = vld [vmem:[#allocation2 + $0x198] sm:$0xff]
    %v985 = vld [vmem:[#allocation2 + $0x1a0] sm:$0xff]
    %v986 = vld [vmem:[#allocation2 + $0x1a8] sm:$0xff]
    %v987 = vld [vmem:[#allocation2 + $0x1b0] sm:$0xff]
    %v988 = vld [vmem:[#allocation2 + $0x1b8] sm:$0xff]
    %v989 = vld [vmem:[#allocation2 + $0x1c0] sm:$0xff]
    %v990 = vld [vmem:[#allocation2 + $0x1c8] sm:$0xff]
    %v991 = vld [vmem:[#allocation2 + $0x1d0] sm:$0xff]
    %v992 = vld [vmem:[#allocation2 + $0x1d8] sm:$0xff]
    %v993 = vld [vmem:[#allocation2 + $0x1e0] sm:$0xff]
    %v994 = vld [vmem:[#allocation2 + $0x1e8] sm:$0xff]
    %v995 = vld [vmem:[#allocation2 + $0x1f0] sm:$0xff]
    %v996 = vld [vmem:[#allocation2 + $0x1f8] sm:$0xff]
    %v998 = vlaneseq
    %v999 = vshrl.u32 %v998, 7
    %v1000 = vsub.s32 0, %v999
    %v1001 = vrot.slane %v929, %v1000
    %v1003 = vmul.f32 %v933, %v1001
    %v1004 = vmul.f32 %v934, %v1001
    %v1005 = vmul.f32 %v935, %v1001
    %v1006 = vmul.f32 %v936, %v1001
    %v1007 = vmul.f32 %v937, %v1001
    %v1008 = vmul.f32 %v938, %v1001
    %v1009 = vmul.f32 %v939, %v1001
    %v1010 = vmul.f32 %v940, %v1001
    %v1011 = vmul.f32 %v941, %v1001
    %v1012 = vmul.f32 %v942, %v1001
    %v1013 = vmul.f32 %v943, %v1001
    %v1014 = vmul.f32 %v944, %v1001
    %v1015 = vmul.f32 %v945, %v1001
    %v1016 = vmul.f32 %v946, %v1001
    %v1017 = vmul.f32 %v947, %v1001
    %v1018 = vmul.f32 %v948, %v1001
    %v1019 = vmul.f32 %v949, %v1001
    %v1020 = vmul.f32 %v950, %v1001
    %v1021 = vmul.f32 %v951, %v1001
    %v1022 = vmul.f32 %v952, %v1001
    %v1023 = vmul.f32 %v953, %v1001
    %v1024 = vmul.f32 %v954, %v1001
    %v1025 = vmul.f32 %v955, %v1001
    %v1026 = vmul.f32 %v956, %v1001
    %v1027 = vmul.f32 %v957, %v1001
    %v1028 = vmul.f32 %v958, %v1001
    %v1029 = vmul.f32 %v959, %v1001
    %v1030 = vmul.f32 %v960, %v1001
    %v1031 = vmul.f32 %v961, %v1001
    %v1032 = vmul.f32 %v962, %v1001
    %v1033 = vmul.f32 %v963, %v1001
    %v1034 = vmul.f32 %v964, %v1001
    %v1035 = vmul.f32 %v965, %v1001
    %v1036 = vmul.f32 %v966, %v1001
    %v1037 = vmul.f32 %v967, %v1001
    %v1038 = vmul.f32 %v968, %v1001
    %v1039 = vmul.f32 %v969, %v1001
    %v1040 = vmul.f32 %v970, %v1001
    %v1041 = vmul.f32 %v971, %v1001
    %v1042 = vmul.f32 %v972, %v1001
    %v1043 = vmul.f32 %v973, %v1001
    %v1044 = vmul.f32 %v974, %v1001
    %v1045 = vmul.f32 %v975, %v1001
    %v1046 = vmul.f32 %v976, %v1001
    %v1047 = vmul.f32 %v977, %v1001
    %v1048 = vmul.f32 %v978, %v1001
    %v1049 = vmul.f32 %v979, %v1001
    %v1050 = vmul.f32 %v980, %v1001
    %v1051 = vmul.f32 %v981, %v1001
    %v1052 = vmul.f32 %v982, %v1001
    %v1053 = vmul.f32 %v983, %v1001
    %v1054 = vmul.f32 %v984, %v1001
    %v1055 = vmul.f32 %v985, %v1001
    %v1056 = vmul.f32 %v986, %v1001
    %v1057 = vmul.f32 %v987, %v1001
    %v1058 = vmul.f32 %v988, %v1001
    %v1059 = vmul.f32 %v989, %v1001
    %v1060 = vmul.f32 %v990, %v1001
    %v1061 = vmul.f32 %v991, %v1001
    %v1062 = vmul.f32 %v992, %v1001
    %v1063 = vmul.f32 %v993, %v1001
    %v1064 = vmul.f32 %v994, %v1001
    %v1065 = vmul.f32 %v995, %v1001
    %v1066 = vmul.f32 %v996, %v1001
    %v1068 = vlaneseq
    %v1069 = vshrl.u32 %v1068, 7
    %v1070 = vsub.s32 0, %v1069
    %v1071 = vrot.slane %v932, %v1070
    %v1073 = vadd.f32 %v1003, %v1071
    %v1074 = vadd.f32 %v1004, %v1071
    %v1075 = vadd.f32 %v1005, %v1071
    %v1076 = vadd.f32 %v1006, %v1071
    %v1077 = vadd.f32 %v1007, %v1071
    %v1078 = vadd.f32 %v1008, %v1071
    %v1079 = vadd.f32 %v1009, %v1071
    %v1080 = vadd.f32 %v1010, %v1071
    %v1081 = vadd.f32 %v1011, %v1071
    %v1082 = vadd.f32 %v1012, %v1071
    %v1083 = vadd.f32 %v1013, %v1071
    %v1084 = vadd.f32 %v1014, %v1071
    %v1085 = vadd.f32 %v1015, %v1071
    %v1086 = vadd.f32 %v1016, %v1071
    %v1087 = vadd.f32 %v1017, %v1071
    %v1088 = vadd.f32 %v1018, %v1071
    %v1089 = vadd.f32 %v1019, %v1071
    %v1090 = vadd.f32 %v1020, %v1071
    %v1091 = vadd.f32 %v1021, %v1071
    %v1092 = vadd.f32 %v1022, %v1071
    %v1093 = vadd.f32 %v1023, %v1071
    %v1094 = vadd.f32 %v1024, %v1071
    %v1095 = vadd.f32 %v1025, %v1071
    %v1096 = vadd.f32 %v1026, %v1071
    %v1097 = vadd.f32 %v1027, %v1071
    %v1098 = vadd.f32 %v1028, %v1071
    %v1099 = vadd.f32 %v1029, %v1071
    %v1100 = vadd.f32 %v1030, %v1071
    %v1101 = vadd.f32 %v1031, %v1071
    %v1102 = vadd.f32 %v1032, %v1071
    %v1103 = vadd.f32 %v1033, %v1071
    %v1104 = vadd.f32 %v1034, %v1071
    %v1105 = vadd.f32 %v1035, %v1071
    %v1106 = vadd.f32 %v1036, %v1071
    %v1107 = vadd.f32 %v1037, %v1071
    %v1108 = vadd.f32 %v1038, %v1071
    %v1109 = vadd.f32 %v1039, %v1071
    %v1110 = vadd.f32 %v1040, %v1071
    %v1111 = vadd.f32 %v1041, %v1071
    %v1112 = vadd.f32 %v1042, %v1071
    %v1113 = vadd.f32 %v1043, %v1071
    %v1114 = vadd.f32 %v1044, %v1071
    %v1115 = vadd.f32 %v1045, %v1071
    %v1116 = vadd.f32 %v1046, %v1071
    %v1117 = vadd.f32 %v1047, %v1071
    %v1118 = vadd.f32 %v1048, %v1071
    %v1119 = vadd.f32 %v1049, %v1071
    %v1120 = vadd.f32 %v1050, %v1071
    %v1121 = vadd.f32 %v1051, %v1071
    %v1122 = vadd.f32 %v1052, %v1071
    %v1123 = vadd.f32 %v1053, %v1071
    %v1124 = vadd.f32 %v1054, %v1071
    %v1125 = vadd.f32 %v1055, %v1071
    %v1126 = vadd.f32 %v1056, %v1071
    %v1127 = vadd.f32 %v1057, %v1071
    %v1128 = vadd.f32 %v1058, %v1071
    %v1129 = vadd.f32 %v1059, %v1071
    %v1130 = vadd.f32 %v1060, %v1071
    %v1131 = vadd.f32 %v1061, %v1071
    %v1132 = vadd.f32 %v1062, %v1071
    %v1133 = vadd.f32 %v1063, %v1071
    %v1134 = vadd.f32 %v1064, %v1071
    %v1135 = vadd.f32 %v1065, %v1071
    %v1136 = vadd.f32 %v1066, %v1071
    %vm1137 = vcmp.gt.f32.partialorder %v1073, 0.0
    %vm1138 = vcmp.gt.f32.partialorder %v1074, 0.0
    %vm1139 = vcmp.gt.f32.partialorder %v1075, 0.0
    %vm1140 = vcmp.gt.f32.partialorder %v1076, 0.0
    %vm1141 = vcmp.gt.f32.partialorder %v1077, 0.0
    %vm1142 = vcmp.gt.f32.partialorder %v1078, 0.0
    %vm1143 = vcmp.gt.f32.partialorder %v1079, 0.0
    %vm1144 = vcmp.gt.f32.partialorder %v1080, 0.0
    %vm1145 = vcmp.gt.f32.partialorder %v1081, 0.0
    %vm1146 = vcmp.gt.f32.partialorder %v1082, 0.0
    %vm1147 = vcmp.gt.f32.partialorder %v1083, 0.0
    %vm1148 = vcmp.gt.f32.partialorder %v1084, 0.0
    %vm1149 = vcmp.gt.f32.partialorder %v1085, 0.0
    %vm1150 = vcmp.gt.f32.partialorder %v1086, 0.0
    %vm1151 = vcmp.gt.f32.partialorder %v1087, 0.0
    %vm1152 = vcmp.gt.f32.partialorder %v1088, 0.0
    %vm1153 = vcmp.gt.f32.partialorder %v1089, 0.0
    %vm1154 = vcmp.gt.f32.partialorder %v1090, 0.0
    %vm1155 = vcmp.gt.f32.partialorder %v1091, 0.0
    %vm1156 = vcmp.gt.f32.partialorder %v1092, 0.0
    %vm1157 = vcmp.gt.f32.partialorder %v1093, 0.0
    %vm1158 = vcmp.gt.f32.partialorder %v1094, 0.0
    %vm1159 = vcmp.gt.f32.partialorder %v1095, 0.0
    %vm1160 = vcmp.gt.f32.partialorder %v1096, 0.0
    %vm1161 = vcmp.gt.f32.partialorder %v1097, 0.0
    %vm1162 = vcmp.gt.f32.partialorder %v1098, 0.0
    %vm1163 = vcmp.gt.f32.partialorder %v1099, 0.0
    %vm1164 = vcmp.gt.f32.partialorder %v1100, 0.0
    %vm1165 = vcmp.gt.f32.partialorder %v1101, 0.0
    %vm1166 = vcmp.gt.f32.partialorder %v1102, 0.0
    %vm1167 = vcmp.gt.f32.partialorder %v1103, 0.0
    %vm1168 = vcmp.gt.f32.partialorder %v1104, 0.0
    %vm1169 = vcmp.gt.f32.partialorder %v1105, 0.0
    %vm1170 = vcmp.gt.f32.partialorder %v1106, 0.0
    %vm1171 = vcmp.gt.f32.partialorder %v1107, 0.0
    %vm1172 = vcmp.gt.f32.partialorder %v1108, 0.0
    %vm1173 = vcmp.gt.f32.partialorder %v1109, 0.0
    %vm1174 = vcmp.gt.f32.partialorder %v1110, 0.0
    %vm1175 = vcmp.gt.f32.partialorder %v1111, 0.0
    %vm1176 = vcmp.gt.f32.partialorder %v1112, 0.0
    %vm1177 = vcmp.gt.f32.partialorder %v1113, 0.0
    %vm1178 = vcmp.gt.f32.partialorder %v1114, 0.0
    %vm1179 = vcmp.gt.f32.partialorder %v1115, 0.0
    %vm1180 = vcmp.gt.f32.partialorder %v1116, 0.0
    %vm1181 = vcmp.gt.f32.partialorder %v1117, 0.0
    %vm1182 = vcmp.gt.f32.partialorder %v1118, 0.0
    %vm1183 = vcmp.gt.f32.partialorder %v1119, 0.0
    %vm1184 = vcmp.gt.f32.partialorder %v1120, 0.0
    %vm1185 = vcmp.gt.f32.partialorder %v1121, 0.0
    %vm1186 = vcmp.gt.f32.partialorder %v1122, 0.0
    %vm1187 = vcmp.gt.f32.partialorder %v1123, 0.0
    %vm1188 = vcmp.gt.f32.partialorder %v1124, 0.0
    %vm1189 = vcmp.gt.f32.partialorder %v1125, 0.0
    %vm1190 = vcmp.gt.f32.partialorder %v1126, 0.0
    %vm1191 = vcmp.gt.f32.partialorder %v1127, 0.0
    %vm1192 = vcmp.gt.f32.partialorder %v1128, 0.0
    %vm1193 = vcmp.gt.f32.partialorder %v1129, 0.0
    %vm1194 = vcmp.gt.f32.partialorder %v1130, 0.0
    %vm1195 = vcmp.gt.f32.partialorder %v1131, 0.0
    %vm1196 = vcmp.gt.f32.partialorder %v1132, 0.0
    %vm1197 = vcmp.gt.f32.partialorder %v1133, 0.0
    %vm1198 = vcmp.gt.f32.partialorder %v1134, 0.0
    %vm1199 = vcmp.gt.f32.partialorder %v1135, 0.0
    %vm1200 = vcmp.gt.f32.partialorder %v1136, 0.0
    %v1201 = vmul.f32 %v1073, 0.2
    %v1202 = vmul.f32 %v1074, 0.2
    %v1203 = vmul.f32 %v1075, 0.2
    %v1204 = vmul.f32 %v1076, 0.2
    %v1205 = vmul.f32 %v1077, 0.2
    %v1206 = vmul.f32 %v1078, 0.2
    %v1207 = vmul.f32 %v1079, 0.2
    %v1208 = vmul.f32 %v1080, 0.2
    %v1209 = vmul.f32 %v1081, 0.2
    %v1210 = vmul.f32 %v1082, 0.2
    %v1211 = vmul.f32 %v1083, 0.2
    %v1212 = vmul.f32 %v1084, 0.2
    %v1213 = vmul.f32 %v1085, 0.2
    %v1214 = vmul.f32 %v1086, 0.2
    %v1215 = vmul.f32 %v1087, 0.2
    %v1216 = vmul.f32 %v1088, 0.2
    %v1217 = vmul.f32 %v1089, 0.2
    %v1218 = vmul.f32 %v1090, 0.2
    %v1219 = vmul.f32 %v1091, 0.2
    %v1220 = vmul.f32 %v1092, 0.2
    %v1221 = vmul.f32 %v1093, 0.2
    %v1222 = vmul.f32 %v1094, 0.2
    %v1223 = vmul.f32 %v1095, 0.2
    %v1224 = vmul.f32 %v1096, 0.2
    %v1225 = vmul.f32 %v1097, 0.2
    %v1226 = vmul.f32 %v1098, 0.2
    %v1227 = vmul.f32 %v1099, 0.2
    %v1228 = vmul.f32 %v1100, 0.2
    %v1229 = vmul.f32 %v1101, 0.2
    %v1230 = vmul.f32 %v1102, 0.2
    %v1231 = vmul.f32 %v1103, 0.2
    %v1232 = vmul.f32 %v1104, 0.2
    %v1233 = vmul.f32 %v1105, 0.2
    %v1234 = vmul.f32 %v1106, 0.2
    %v1235 = vmul.f32 %v1107, 0.2
    %v1236 = vmul.f32 %v1108, 0.2
    %v1237 = vmul.f32 %v1109, 0.2
    %v1238 = vmul.f32 %v1110, 0.2
    %v1239 = vmul.f32 %v1111, 0.2
    %v1240 = vmul.f32 %v1112, 0.2
    %v1241 = vmul.f32 %v1113, 0.2
    %v1242 = vmul.f32 %v1114, 0.2
    %v1243 = vmul.f32 %v1115, 0.2
    %v1244 = vmul.f32 %v1116, 0.2
    %v1245 = vmul.f32 %v1117, 0.2
    %v1246 = vmul.f32 %v1118, 0.2
    %v1247 = vmul.f32 %v1119, 0.2
    %v1248 = vmul.f32 %v1120, 0.2
    %v1249 = vmul.f32 %v1121, 0.2
    %v1250 = vmul.f32 %v1122, 0.2
    %v1251 = vmul.f32 %v1123, 0.2
    %v1252 = vmul.f32 %v1124, 0.2
    %v1253 = vmul.f32 %v1125, 0.2
    %v1254 = vmul.f32 %v1126, 0.2
    %v1255 = vmul.f32 %v1127, 0.2
    %v1256 = vmul.f32 %v1128, 0.2
    %v1257 = vmul.f32 %v1129, 0.2
    %v1258 = vmul.f32 %v1130, 0.2
    %v1259 = vmul.f32 %v1131, 0.2
    %v1260 = vmul.f32 %v1132, 0.2
    %v1261 = vmul.f32 %v1133, 0.2
    %v1262 = vmul.f32 %v1134, 0.2
    %v1263 = vmul.f32 %v1135, 0.2
    %v1264 = vmul.f32 %v1136, 0.2
    %v1265 = vsel %vm1137, %v1073, %v1201
    %v1266 = vsel %vm1138, %v1074, %v1202
    %v1267 = vsel %vm1139, %v1075, %v1203
    %v1268 = vsel %vm1140, %v1076, %v1204
    %v1269 = vsel %vm1141, %v1077, %v1205
    %v1270 = vsel %vm1142, %v1078, %v1206
    %v1271 = vsel %vm1143, %v1079, %v1207
    %v1272 = vsel %vm1144, %v1080, %v1208
    %v1273 = vsel %vm1145, %v1081, %v1209
    %v1274 = vsel %vm1146, %v1082, %v1210
    %v1275 = vsel %vm1147, %v1083, %v1211
    %v1276 = vsel %vm1148, %v1084, %v1212
    %v1277 = vsel %vm1149, %v1085, %v1213
    %v1278 = vsel %vm1150, %v1086, %v1214
    %v1279 = vsel %vm1151, %v1087, %v1215
    %v1280 = vsel %vm1152, %v1088, %v1216
    %v1281 = vsel %vm1153, %v1089, %v1217
    %v1282 = vsel %vm1154, %v1090, %v1218
    %v1283 = vsel %vm1155, %v1091, %v1219
    %v1284 = vsel %vm1156, %v1092, %v1220
    %v1285 = vsel %vm1157, %v1093, %v1221
    %v1286 = vsel %vm1158, %v1094, %v1222
    %v1287 = vsel %vm1159, %v1095, %v1223
    %v1288 = vsel %vm1160, %v1096, %v1224
    %v1289 = vsel %vm1161, %v1097, %v1225
    %v1290 = vsel %vm1162, %v1098, %v1226
    %v1291 = vsel %vm1163, %v1099, %v1227
    %v1292 = vsel %vm1164, %v1100, %v1228
    %v1293 = vsel %vm1165, %v1101, %v1229
    %v1294 = vsel %vm1166, %v1102, %v1230
    %v1295 = vsel %vm1167, %v1103, %v1231
    %v1296 = vsel %vm1168, %v1104, %v1232
    %v1297 = vsel %vm1169, %v1105, %v1233
    %v1298 = vsel %vm1170, %v1106, %v1234
    %v1299 = vsel %vm1171, %v1107, %v1235
    %v1300 = vsel %vm1172, %v1108, %v1236
    %v1301 = vsel %vm1173, %v1109, %v1237
    %v1302 = vsel %vm1174, %v1110, %v1238
    %v1303 = vsel %vm1175, %v1111, %v1239
    %v1304 = vsel %vm1176, %v1112, %v1240
    %v1305 = vsel %vm1177, %v1113, %v1241
    %v1306 = vsel %vm1178, %v1114, %v1242
    %v1307 = vsel %vm1179, %v1115, %v1243
    %v1308 = vsel %vm1180, %v1116, %v1244
    %v1309 = vsel %vm1181, %v1117, %v1245
    %v1310 = vsel %vm1182, %v1118, %v1246
    %v1311 = vsel %vm1183, %v1119, %v1247
    %v1312 = vsel %vm1184, %v1120, %v1248
    %v1313 = vsel %vm1185, %v1121, %v1249
    %v1314 = vsel %vm1186, %v1122, %v1250
    %v1315 = vsel %vm1187, %v1123, %v1251
    %v1316 = vsel %vm1188, %v1124, %v1252
    %v1317 = vsel %vm1189, %v1125, %v1253
    %v1318 = vsel %vm1190, %v1126, %v1254
    %v1319 = vsel %vm1191, %v1127, %v1255
    %v1320 = vsel %vm1192, %v1128, %v1256
    %v1321 = vsel %vm1193, %v1129, %v1257
    %v1322 = vsel %vm1194, %v1130, %v1258
    %v1323 = vsel %vm1195, %v1131, %v1259
    %v1324 = vsel %vm1196, %v1132, %v1260
    %v1325 = vsel %vm1197, %v1133, %v1261
    %v1326 = vsel %vm1198, %v1134, %v1262
    %v1327 = vsel %vm1199, %v1135, %v1263
    %v1328 = vsel %vm1200, %v1136, %v1264
    %v1329 = vpack.c.bf16 %v1266, %v1265
    %v1330 = vpack.c.bf16 %v1268, %v1267
    %v1331 = vpack.c.bf16 %v1270, %v1269
    %v1332 = vpack.c.bf16 %v1272, %v1271
    %v1333 = vpack.c.bf16 %v1274, %v1273
    %v1334 = vpack.c.bf16 %v1276, %v1275
    %v1335 = vpack.c.bf16 %v1278, %v1277
    %v1336 = vpack.c.bf16 %v1280, %v1279
    %v1337 = vpack.c.bf16 %v1282, %v1281
    %v1338 = vpack.c.bf16 %v1284, %v1283
    %v1339 = vpack.c.bf16 %v1286, %v1285
    %v1340 = vpack.c.bf16 %v1288, %v1287
    %v1341 = vpack.c.bf16 %v1290, %v1289
    %v1342 = vpack.c.bf16 %v1292, %v1291
    %v1343 = vpack.c.bf16 %v1294, %v1293
    %v1344 = vpack.c.bf16 %v1296, %v1295
    %v1345 = vpack.c.bf16 %v1298, %v1297
    %v1346 = vpack.c.bf16 %v1300, %v1299
    %v1347 = vpack.c.bf16 %v1302, %v1301
    %v1348 = vpack.c.bf16 %v1304, %v1303
    %v1349 = vpack.c.bf16 %v1306, %v1305
    %v1350 = vpack.c.bf16 %v1308, %v1307
    %v1351 = vpack.c.bf16 %v1310, %v1309
    %v1352 = vpack.c.bf16 %v1312, %v1311
    %v1353 = vpack.c.bf16 %v1314, %v1313
    %v1354 = vpack.c.bf16 %v1316, %v1315
    %v1355 = vpack.c.bf16 %v1318, %v1317
    %v1356 = vpack.c.bf16 %v1320, %v1319
    %v1357 = vpack.c.bf16 %v1322, %v1321
    %v1358 = vpack.c.bf16 %v1324, %v1323
    %v1359 = vpack.c.bf16 %v1326, %v1325
    %v1360 = vpack.c.bf16 %v1328, %v1327
    %v1393 = vunpack.c.l.b16 %v1329
    %v1394 = vunpack.c.h.b16 %v1329
    %v1395 = vunpack.c.l.b16 %v1330
    %v1396 = vunpack.c.h.b16 %v1330
    %v1397 = vunpack.c.l.b16 %v1331
    %v1398 = vunpack.c.h.b16 %v1331
    %v1399 = vunpack.c.l.b16 %v1332
    %v1400 = vunpack.c.h.b16 %v1332
    %v1401 = vunpack.c.l.b16 %v1333
    %v1402 = vunpack.c.h.b16 %v1333
    %v1403 = vunpack.c.l.b16 %v1334
    %v1404 = vunpack.c.h.b16 %v1334
    %v1405 = vunpack.c.l.b16 %v1335
    %v1406 = vunpack.c.h.b16 %v1335
    %v1407 = vunpack.c.l.b16 %v1336
    %v1408 = vunpack.c.h.b16 %v1336
    %v1409 = vunpack.c.l.b16 %v1337
    %v1410 = vunpack.c.h.b16 %v1337
    %v1411 = vunpack.c.l.b16 %v1338
    %v1412 = vunpack.c.h.b16 %v1338
    %v1413 = vunpack.c.l.b16 %v1339
    %v1414 = vunpack.c.h.b16 %v1339
    %v1415 = vunpack.c.l.b16 %v1340
    %v1416 = vunpack.c.h.b16 %v1340
    %v1417 = vunpack.c.l.b16 %v1341
    %v1418 = vunpack.c.h.b16 %v1341
    %v1419 = vunpack.c.l.b16 %v1342
    %v1420 = vunpack.c.h.b16 %v1342
    %v1421 = vunpack.c.l.b16 %v1343
    %v1422 = vunpack.c.h.b16 %v1343
    %v1423 = vunpack.c.l.b16 %v1344
    %v1424 = vunpack.c.h.b16 %v1344
    %v1425 = vunpack.c.l.b16 %v1345
    %v1426 = vunpack.c.h.b16 %v1345
    %v1427 = vunpack.c.l.b16 %v1346
    %v1428 = vunpack.c.h.b16 %v1346
    %v1429 = vunpack.c.l.b16 %v1347
    %v1430 = vunpack.c.h.b16 %v1347
    %v1431 = vunpack.c.l.b16 %v1348
    %v1432 = vunpack.c.h.b16 %v1348
    %v1433 = vunpack.c.l.b16 %v1349
    %v1434 = vunpack.c.h.b16 %v1349
    %v1435 = vunpack.c.l.b16 %v1350
    %v1436 = vunpack.c.h.b16 %v1350
    %v1437 = vunpack.c.l.b16 %v1351
    %v1438 = vunpack.c.h.b16 %v1351
    %v1439 = vunpack.c.l.b16 %v1352
    %v1440 = vunpack.c.h.b16 %v1352
    %v1441 = vunpack.c.l.b16 %v1353
    %v1442 = vunpack.c.h.b16 %v1353
    %v1443 = vunpack.c.l.b16 %v1354
    %v1444 = vunpack.c.h.b16 %v1354
    %v1445 = vunpack.c.l.b16 %v1355
    %v1446 = vunpack.c.h.b16 %v1355
    %v1447 = vunpack.c.l.b16 %v1356
    %v1448 = vunpack.c.h.b16 %v1356
    %v1449 = vunpack.c.l.b16 %v1357
    %v1450 = vunpack.c.h.b16 %v1357
    %v1451 = vunpack.c.l.b16 %v1358
    %v1452 = vunpack.c.h.b16 %v1358
    %v1453 = vunpack.c.l.b16 %v1359
    %v1454 = vunpack.c.h.b16 %v1359
    %v1455 = vunpack.c.l.b16 %v1360
    %v1456 = vunpack.c.h.b16 %v1360
    %v1457 = vpack.c.b16 %v1393, %v1393
    %v1458 = vpack.c.b16 %v1394, %v1394
    %v1459 = vpack.c.b16 %v1395, %v1395
    %v1460 = vpack.c.b16 %v1396, %v1396
    %v1461 = vpack.c.b16 %v1397, %v1397
    %v1462 = vpack.c.b16 %v1398, %v1398
    %v1463 = vpack.c.b16 %v1399, %v1399
    %v1464 = vpack.c.b16 %v1400, %v1400
    %v1465 = vpack.c.b16 %v1401, %v1401
    %v1466 = vpack.c.b16 %v1402, %v1402
    %v1467 = vpack.c.b16 %v1403, %v1403
    %v1468 = vpack.c.b16 %v1404, %v1404
    %v1469 = vpack.c.b16 %v1405, %v1405
    %v1470 = vpack.c.b16 %v1406, %v1406
    %v1471 = vpack.c.b16 %v1407, %v1407
    %v1472 = vpack.c.b16 %v1408, %v1408
    %v1473 = vpack.c.b16 %v1409, %v1409
    %v1474 = vpack.c.b16 %v1410, %v1410
    %v1475 = vpack.c.b16 %v1411, %v1411
    %v1476 = vpack.c.b16 %v1412, %v1412
    %v1477 = vpack.c.b16 %v1413, %v1413
    %v1478 = vpack.c.b16 %v1414, %v1414
    %v1479 = vpack.c.b16 %v1415, %v1415
    %v1480 = vpack.c.b16 %v1416, %v1416
    %v1481 = vpack.c.b16 %v1417, %v1417
    %v1482 = vpack.c.b16 %v1418, %v1418
    %v1483 = vpack.c.b16 %v1419, %v1419
    %v1484 = vpack.c.b16 %v1420, %v1420
    %v1485 = vpack.c.b16 %v1421, %v1421
    %v1486 = vpack.c.b16 %v1422, %v1422
    %v1487 = vpack.c.b16 %v1423, %v1423
    %v1488 = vpack.c.b16 %v1424, %v1424
    %v1489 = vpack.c.b16 %v1425, %v1425
    %v1490 = vpack.c.b16 %v1426, %v1426
    %v1491 = vpack.c.b16 %v1427, %v1427
    %v1492 = vpack.c.b16 %v1428, %v1428
    %v1493 = vpack.c.b16 %v1429, %v1429
    %v1494 = vpack.c.b16 %v1430, %v1430
    %v1495 = vpack.c.b16 %v1431, %v1431
    %v1496 = vpack.c.b16 %v1432, %v1432
    %v1497 = vpack.c.b16 %v1433, %v1433
    %v1498 = vpack.c.b16 %v1434, %v1434
    %v1499 = vpack.c.b16 %v1435, %v1435
    %v1500 = vpack.c.b16 %v1436, %v1436
    %v1501 = vpack.c.b16 %v1437, %v1437
    %v1502 = vpack.c.b16 %v1438, %v1438
    %v1503 = vpack.c.b16 %v1439, %v1439
    %v1504 = vpack.c.b16 %v1440, %v1440
    %v1505 = vpack.c.b16 %v1441, %v1441
    %v1506 = vpack.c.b16 %v1442, %v1442
    %v1507 = vpack.c.b16 %v1443, %v1443
    %v1508 = vpack.c.b16 %v1444, %v1444
    %v1509 = vpack.c.b16 %v1445, %v1445
    %v1510 = vpack.c.b16 %v1446, %v1446
    %v1511 = vpack.c.b16 %v1447, %v1447
    %v1512 = vpack.c.b16 %v1448, %v1448
    %v1513 = vpack.c.b16 %v1449, %v1449
    %v1514 = vpack.c.b16 %v1450, %v1450
    %v1515 = vpack.c.b16 %v1451, %v1451
    %v1516 = vpack.c.b16 %v1452, %v1452
    %v1517 = vpack.c.b16 %v1453, %v1453
    %v1518 = vpack.c.b16 %v1454, %v1454
    %v1519 = vpack.c.b16 %v1455, %v1455
    %v1520 = vpack.c.b16 %v1456, %v1456
    %1585 = vst [vmem:[%s4] sm:$0xf] %v1457
    %1586 = vst [vmem:[%s4 + $0x4] sm:$0xf] %v1458
    %1587 = vst [vmem:[%s4 + $0x8] sm:$0xf] %v1459
    %1588 = vst [vmem:[%s4 + $0xc] sm:$0xf] %v1460
    %1589 = vst [vmem:[%s4 + $0x10] sm:$0xf] %v1461
    %1590 = vst [vmem:[%s4 + $0x14] sm:$0xf] %v1462
    %1591 = vst [vmem:[%s4 + $0x18] sm:$0xf] %v1463
    %1592 = vst [vmem:[%s4 + $0x1c] sm:$0xf] %v1464
    %1593 = vst [vmem:[%s4 + $0x20] sm:$0xf] %v1465
    %1594 = vst [vmem:[%s4 + $0x24] sm:$0xf] %v1466
    %1595 = vst [vmem:[%s4 + $0x28] sm:$0xf] %v1467
    %1596 = vst [vmem:[%s4 + $0x2c] sm:$0xf] %v1468
    %1597 = vst [vmem:[%s4 + $0x30] sm:$0xf] %v1469
    %1598 = vst [vmem:[%s4 + $0x34] sm:$0xf] %v1470
    %1599 = vst [vmem:[%s4 + $0x38] sm:$0xf] %v1471
    %1600 = vst [vmem:[%s4 + $0x3c] sm:$0xf] %v1472
    %1601 = vst [vmem:[%s4 + $0x40] sm:$0xf] %v1473
    %1602 = vst [vmem:[%s4 + $0x44] sm:$0xf] %v1474
    %1603 = vst [vmem:[%s4 + $0x48] sm:$0xf] %v1475
    %1604 = vst [vmem:[%s4 + $0x4c] sm:$0xf] %v1476
    %1605 = vst [vmem:[%s4 + $0x50] sm:$0xf] %v1477
    %1606 = vst [vmem:[%s4 + $0x54] sm:$0xf] %v1478
    %1607 = vst [vmem:[%s4 + $0x58] sm:$0xf] %v1479
    %1608 = vst [vmem:[%s4 + $0x5c] sm:$0xf] %v1480
    %1609 = vst [vmem:[%s4 + $0x60] sm:$0xf] %v1481
    %1610 = vst [vmem:[%s4 + $0x64] sm:$0xf] %v1482
    %1611 = vst [vmem:[%s4 + $0x68] sm:$0xf] %v1483
    %1612 = vst [vmem:[%s4 + $0x6c] sm:$0xf] %v1484
    %1613 = vst [vmem:[%s4 + $0x70] sm:$0xf] %v1485
    %1614 = vst [vmem:[%s4 + $0x74] sm:$0xf] %v1486
    %1615 = vst [vmem:[%s4 + $0x78] sm:$0xf] %v1487
    %1616 = vst [vmem:[%s4 + $0x7c] sm:$0xf] %v1488
    %1617 = vst [vmem:[%s4 + $0x80] sm:$0xf] %v1489
    %1618 = vst [vmem:[%s4 + $0x84] sm:$0xf] %v1490
    %1619 = vst [vmem:[%s4 + $0x88] sm:$0xf] %v1491
    %1620 = vst [vmem:[%s4 + $0x8c] sm:$0xf] %v1492
    %1621 = vst [vmem:[%s4 + $0x90] sm:$0xf] %v1493
    %1622 = vst [vmem:[%s4 + $0x94] sm:$0xf] %v1494
    %1623 = vst [vmem:[%s4 + $0x98] sm:$0xf] %v1495
    %1624 = vst [vmem:[%s4 + $0x9c] sm:$0xf] %v1496
    %1625 = vst [vmem:[%s4 + $0xa0] sm:$0xf] %v1497
    %1626 = vst [vmem:[%s4 + $0xa4] sm:$0xf] %v1498
    %1627 = vst [vmem:[%s4 + $0xa8] sm:$0xf] %v1499
    %1628 = vst [vmem:[%s4 + $0xac] sm:$0xf] %v1500
    %1629 = vst [vmem:[%s4 + $0xb0] sm:$0xf] %v1501
    %1630 = vst [vmem:[%s4 + $0xb4] sm:$0xf] %v1502
    %1631 = vst [vmem:[%s4 + $0xb8] sm:$0xf] %v1503
    %1632 = vst [vmem:[%s4 + $0xbc] sm:$0xf] %v1504
    %1633 = vst [vmem:[%s4 + $0xc0] sm:$0xf] %v1505
    %1634 = vst [vmem:[%s4 + $0xc4] sm:$0xf] %v1506
    %1635 = vst [vmem:[%s4 + $0xc8] sm:$0xf] %v1507
    %1636 = vst [vmem:[%s4 + $0xcc] sm:$0xf] %v1508
    %1637 = vst [vmem:[%s4 + $0xd0] sm:$0xf] %v1509
    %1638 = vst [vmem:[%s4 + $0xd4] sm:$0xf] %v1510
    %1639 = vst [vmem:[%s4 + $0xd8] sm:$0xf] %v1511
    %1640 = vst [vmem:[%s4 + $0xdc] sm:$0xf] %v1512
    %1641 = vst [vmem:[%s4 + $0xe0] sm:$0xf] %v1513
    %1642 = vst [vmem:[%s4 + $0xe4] sm:$0xf] %v1514
    %1643 = vst [vmem:[%s4 + $0xe8] sm:$0xf] %v1515
    %1644 = vst [vmem:[%s4 + $0xec] sm:$0xf] %v1516
    %1645 = vst [vmem:[%s4 + $0xf0] sm:$0xf] %v1517
    %1646 = vst [vmem:[%s4 + $0xf4] sm:$0xf] %v1518
    %1647 = vst [vmem:[%s4 + $0xf8] sm:$0xf] %v1519
    %1648 = vst [vmem:[%s4 + $0xfc] sm:$0xf] %v1520
  $region25: #{skip_encoder_forward.6} parent=0 // pred_fallthru
    _
  // Predicated region
  $region26: #{skip_encoder_forward.6} parent=0 // pred_check
    _
  $region27: #{skip_encoder_forward.6} parent=0 // pred_check_branch
    %1650 = sbr.rel (0) target = $region29
  $region28: #{skip_encoder_forward.6} parent=0 // pred_region
    _
  $region29: #{skip_encoder_forward.6} parent=0 // pred_fallthru
    _
  // Predicated region
  $region30: #{skip_encoder_forward.6} parent=0 // pred_check
    _
  $region31: #{skip_encoder_forward.6} parent=0 // pred_check_branch
    %1652 = sbr.rel (0) target = $region33
  $region32: #{skip_encoder_forward.6} parent=0 // pred_region
    _
  $region33: #{skip_encoder_forward.6} parent=0 // pred_fallthru
    _

</llo_original>
